<compile_context>
chip_gen: v6e
topology: v6e:2x2x1
jax: 0.10.0
libtpu: 0.0.40
codegen_flags: <defaults>
</compile_context>

<pallas_src>
import numpy as np
import jax
import jax.numpy as jnp
from jax.experimental import pallas as pl
from jax.experimental.pallas import tpu as pltpu


def make_model2_kernel(H, W, Cin, Cout, HID, BB):
    Wp = W + 2
    NB = (H - 1) * Wp + W  # rows of the wrap-including "full" conv per batch elem

    def kernel(xp_ref,     # (BB, (H+2)*(W+2), Cin)  padded NHWC, spatial flattened
               wcol_ref,   # (9*Cin, Cout)           conv weight, im2col K ordering
               pool_ref,   # (BB, BB*NB)             block-diag masked 1/(H*W) pool
               pred_ref,   # (BB, 2)                 model1_pred rows for this block
               w1_ref,     # (Cout + 2, HID)         fc1 weight, rows = [pooled | pred]
               w2_ref,     # (HID, 128)              fc2 weight, lanes padded to 128
               bias_ref,   # (3, 128)                rows: conv bias, fc1 bias, fc2 bias
               out_ref,    # (BB, 128)               lane-dense logits (padding sliced off)
               col_ref):   # (BB*NB, 9*Cin)          VMEM im2col scratch
        # In-kernel im2col: 9 shifted (NB, Cin) slices per batch element packed
        # into one K-major slab.  Every element of col_ref is written each step.
        for b in range(BB):
            rows = slice(b * NB, (b + 1) * NB)
            for t in range(9):
                kh, kw = divmod(t, 3)
                off = kh * Wp + kw                               # static row offset
                col_ref[rows, t * Cin:(t + 1) * Cin] = xp_ref[b, off:off + NB, :]

        # Whole conv as ONE K = 9*Cin MXU matmul, then bias + ReLU.
        conv = jnp.dot(col_ref[...], wcol_ref[...],
                       preferred_element_type=jnp.float32)       # (BB*NB, Cout)
        conv = jnp.maximum(conv + bias_ref[0:1, 0:Cout], 0.0)

        # Global average pool: the block-diagonal pooling matrix carries the
        # 1/(H*W) scale and zeroes the row-wrap garbage rows of the "full" conv.
        pooled = jnp.dot(pool_ref[...], conv,
                         preferred_element_type=jnp.float32)     # (BB, Cout)

        # fc1 on cat([pooled, pred]): pooled part on the MXU, the two pred
        # features folded in as VPU broadcast-multiply-adds (no concat).
        h = jnp.dot(pooled, w1_ref[0:Cout, :],
                    preferred_element_type=jnp.float32)
        h = h + pred_ref[:, 0:1] * w1_ref[Cout:Cout + 1, :]
        h = h + pred_ref[:, 1:2] * w1_ref[Cout + 1:Cout + 2, :]
        h = jnp.maximum(h + bias_ref[1:2, 0:HID], 0.0)           # (BB, HID)

        # fc2 against the 128-lane padded weight -> single unmasked store.
        out = jnp.dot(h, w2_ref[...], preferred_element_type=jnp.float32)
        out_ref[...] = (out + bias_ref[2:3, :]).astype(out_ref.dtype)

    return kernel, NB


def model2_forward(x_nchw, model1_pred, params, block_batch=None):
    """Layout-only prep in the wrapper; all compute inside the Pallas kernel."""
    cw_hwio, cb, w1a, w1b, b1, w2, b2 = params
    B, Cin, H, W = x_nchw.shape
    Cout = cw_hwio.shape[-1]
    HID = w1a.shape[-1]
    NC = w2.shape[-1]
    Hp, Wp = H + 2, W + 2
    LANES = 128
    assert max(Cout, HID, NC) <= LANES, "packed slabs assume feature dims <= 128"

    BB = B if block_batch is None else block_batch      # batch elems per grid step
    assert B % BB == 0, "batch must divide evenly into batch blocks"
    assert BB == B or BB % 8 == 0, "partial batch blocks must be sublane aligned"

    kernel, NB = make_model2_kernel(H, W, Cin, Cout, HID, BB)

    # NCHW -> padded NHWC with spatial dims flattened (no 9x im2col in HBM).
    x_nhwc = jnp.transpose(x_nchw, (0, 2, 3, 1))
    xp = jnp.pad(x_nhwc, ((0, 0), (1, 1), (1, 1), (0, 0)))
    xflat = xp.reshape(B, Hp * Wp, Cin)

    # Conv weight in im2col K ordering: (kh, kw, cin) major -> minor.
    wcol = cw_hwio.reshape(9 * Cin, Cout)

    # Host-side constant block-diagonal pooling matrix: 1/(H*W) on valid rows,
    # 0 on the row-wrap rows ((idx % Wp) >= W) of the "full" conv output.
    idx = np.arange(NB)
    valid = ((idx % Wp) < W).astype(np.float32) / float(H * W)
    pool_np = np.zeros((BB, BB * NB), np.float32)
    for b in range(BB):
        pool_np[b, b * NB:(b + 1) * NB] = valid
    pool = jnp.asarray(pool_np)

    # Pack fc1 rows ([pooled | pred]); pad fc2 weight and all biases to 128
    # lanes so every bias add and the final store are lane-dense.
    w1 = jnp.concatenate([w1a, w1b], axis=0)                        # (Cout+2, HID)
    w2p = jnp.pad(w2, ((0, 0), (0, LANES - NC)))                    # (HID, 128)
    biases = jnp.stack([jnp.pad(cb, (0, LANES - Cout)),
                        jnp.pad(b1, (0, LANES - HID)),
                        jnp.pad(b2, (0, LANES - NC))])              # (3, 128)

    flops = B * (2 * NB * 9 * Cin * Cout + 2 * NB * Cout
                 + 2 * Cout * HID + 4 * HID + 2 * HID * LANES)
    bytes_accessed = 4 * (xflat.size + wcol.size + pool.size + model1_pred.size
                          + w1.size + w2p.size + biases.size + B * LANES)

    out = pl.pallas_call(
        kernel,
        out_shape=jax.ShapeDtypeStruct((B, LANES), jnp.float32),
        grid=(B // BB,),
        in_specs=[
            pl.BlockSpec((BB, Hp * Wp, Cin), lambda g: (g, 0, 0)),  # padded input
            pl.BlockSpec((9 * Cin, Cout), lambda g: (0, 0)),        # conv weight
            pl.BlockSpec((BB, BB * NB), lambda g: (0, 0)),          # pooling matrix
            pl.BlockSpec((BB, 2), lambda g: (g, 0)),                # model1_pred
            pl.BlockSpec((Cout + 2, HID), lambda g: (0, 0)),        # fc1 weight
            pl.BlockSpec((HID, LANES), lambda g: (0, 0)),           # fc2 weight
            pl.BlockSpec((3, LANES), lambda g: (0, 0)),             # packed biases
        ],
        out_specs=pl.BlockSpec((BB, LANES), lambda g: (g, 0)),
        scratch_shapes=[pltpu.VMEM((BB * NB, 9 * Cin), jnp.float32)],
        compiler_params=pltpu.CompilerParams(
            dimension_semantics=("parallel",),
            vmem_limit_bytes=8 * 1024 * 1024),
        cost_estimate=pl.CostEstimate(flops=flops, transcendentals=0,
                                      bytes_accessed=bytes_accessed),
    )(xflat, wcol, pool, model1_pred, w1, w2p, biases)
    return out[:, :NC]


def reference_forward(x_nchw, model1_pred, params):
    """Pure-JAX reference matching the PyTorch Model2.forward semantics."""
    cw_hwio, cb, w1a, w1b, b1, w2, b2 = params
    w_oihw = jnp.transpose(cw_hwio, (3, 2, 0, 1))    # (Cout, Cin, 3, 3)
    out = jax.lax.conv_general_dilated(
        x_nchw, w_oihw, window_strides=(1, 1), padding="SAME",
        dimension_numbers=("NCHW", "OIHW", "NCHW"))
    out = jax.nn.relu(out + cb.reshape(1, -1, 1, 1))
    pooled = out.mean(axis=(2, 3))                   # (B, Cout)
    cat = jnp.concatenate([pooled, model1_pred], axis=1)
    w1 = jnp.concatenate([w1a, w1b], axis=0)         # (Cout + 2, 64)
    h = jax.nn.relu(cat @ w1 + b1)
    return h @ w2 + b2


if __name__ == "__main__":
    B, Cin, H, W = 2, 18, 16, 16
    Cout, hidden, num_classes = 32, 64, 10

    key = jax.random.PRNGKey(0)
    keys = jax.random.split(key, 9)

    # Deterministic parameter init (shapes from Model2.__init__).
    cw_hwio = 0.05 * jax.random.normal(keys[0], (3, 3, Cin, Cout), jnp.float32)
    cb = 0.05 * jax.random.normal(keys[1], (Cout,), jnp.float32)
    w1a = 0.05 * jax.random.normal(keys[2], (Cout, hidden), jnp.float32)
    w1b = 0.05 * jax.random.normal(keys[3], (2, hidden), jnp.float32)
    b1 = 0.05 * jax.random.normal(keys[4], (hidden,), jnp.float32)
    w2 = 0.05 * jax.random.normal(keys[5], (hidden, num_classes), jnp.float32)
    b2 = 0.05 * jax.random.normal(keys[6], (num_classes,), jnp.float32)
    params = (cw_hwio, cb, w1a, w1b, b1, w2, b2)

    # Example inputs.
    x = jax.random.normal(keys[7], (B, Cin, H, W), jnp.float32)
    model1_pred = jax.nn.softmax(
        jax.random.normal(keys[8], (B, 2), jnp.float32), axis=-1)

    out = model2_forward(x, model1_pred, params)
    out = jax.block_until_ready(out)

    ref = jax.block_until_ready(reference_forward(x, model1_pred, params))
    assert out.shape == (B, num_classes)
    assert jnp.allclose(out, ref, atol=1e-4, rtol=1e-4), "mismatch vs reference"

    print("KERNEL_OK")
</pallas_src>

<mosaic_0001>
module attributes {stable_mosaic.version = 11 : i64} {
  func.func @kernel(%arg0: i32, %arg1: memref<2x324x18xf32, #tpu.memory_space<vmem>>, %arg2: memref<162x32xf32, #tpu.memory_space<vmem>>, %arg3: memref<2x572xf32, #tpu.memory_space<vmem>>, %arg4: memref<2x2xf32, #tpu.memory_space<vmem>>, %arg5: memref<34x64xf32, #tpu.memory_space<vmem>>, %arg6: memref<64x128xf32, #tpu.memory_space<vmem>>, %arg7: memref<3x128xf32, #tpu.memory_space<vmem>>, %arg8: memref<2x128xf32, #tpu.memory_space<vmem>>, %arg9: memref<572x162xf32, #tpu.memory_space<vmem>>) attributes {dimension_semantics = [#tpu.dimension_semantics<parallel>], iteration_bounds = array<i64: 1>, scalar_prefetch = 0 : i64, scratch_operands = 1 : i64, tpu.core_type = #tpu.core_type<tc>, window_params = [{transform_indices = @transform_0, window_bounds = array<i64: 2, 324, 18>}, {pipeline_mode = #tpu.pipeline_mode<synchronous>, transform_indices = @transform_1, window_bounds = array<i64: 162, 32>}, {pipeline_mode = #tpu.pipeline_mode<synchronous>, transform_indices = @transform_2, window_bounds = array<i64: 2, 572>}, {transform_indices = @transform_3, window_bounds = array<i64: 2, 2>}, {pipeline_mode = #tpu.pipeline_mode<synchronous>, transform_indices = @transform_4, window_bounds = array<i64: 34, 64>}, {pipeline_mode = #tpu.pipeline_mode<synchronous>, transform_indices = @transform_5, window_bounds = array<i64: 64, 128>}, {pipeline_mode = #tpu.pipeline_mode<synchronous>, transform_indices = @transform_6, window_bounds = array<i64: 3, 128>}, {transform_indices = @transform_7, window_bounds = array<i64: 2, 128>}]} {
    %c0 = arith.constant 0 : index
    %c0_0 = arith.constant 0 : index
    %c0_1 = arith.constant 0 : index
    %0 = vector.load %arg1[%c0, %c0_0, %c0_1] : memref<2x324x18xf32, #tpu.memory_space<vmem>>, vector<1x286x18xf32>
    %1 = vector.shape_cast %0 : vector<1x286x18xf32> to vector<286x18xf32>
    %c0_2 = arith.constant 0 : index
    %c0_3 = arith.constant 0 : index
    %2 = vector.load %arg9[%c0_2, %c0_3] : memref<572x162xf32, #tpu.memory_space<vmem>>, vector<286x18xf32>
    tpu.vector_store %arg9[%c0_2, %c0_3], %1 {strides = array<i32>} : memref<572x162xf32, #tpu.memory_space<vmem>>, vector<286x18xf32>,
    %c0_4 = arith.constant 0 : index
    %c1 = arith.constant 1 : index
    %c0_5 = arith.constant 0 : index
    %3 = vector.load %arg1[%c0_4, %c1, %c0_5] : memref<2x324x18xf32, #tpu.memory_space<vmem>>, vector<1x286x18xf32>
    %4 = vector.shape_cast %3 : vector<1x286x18xf32> to vector<286x18xf32>
    %c0_6 = arith.constant 0 : index
    %c18 = arith.constant 18 : index
    %5 = vector.load %arg9[%c0_6, %c18] : memref<572x162xf32, #tpu.memory_space<vmem>>, vector<286x18xf32>
    tpu.vector_store %arg9[%c0_6, %c18], %4 {strides = array<i32>} : memref<572x162xf32, #tpu.memory_space<vmem>>, vector<286x18xf32>,
    %c0_7 = arith.constant 0 : index
    %c2 = arith.constant 2 : index
    %c0_8 = arith.constant 0 : index
    %6 = vector.load %arg1[%c0_7, %c2, %c0_8] : memref<2x324x18xf32, #tpu.memory_space<vmem>>, vector<1x286x18xf32>
    %7 = vector.shape_cast %6 : vector<1x286x18xf32> to vector<286x18xf32>
    %c0_9 = arith.constant 0 : index
    %c36 = arith.constant 36 : index
    %8 = vector.load %arg9[%c0_9, %c36] : memref<572x162xf32, #tpu.memory_space<vmem>>, vector<286x18xf32>
    tpu.vector_store %arg9[%c0_9, %c36], %7 {strides = array<i32>} : memref<572x162xf32, #tpu.memory_space<vmem>>, vector<286x18xf32>,
    %c0_10 = arith.constant 0 : index
    %c18_11 = arith.constant 18 : index
    %c0_12 = arith.constant 0 : index
    %9 = vector.load %arg1[%c0_10, %c18_11, %c0_12] : memref<2x324x18xf32, #tpu.memory_space<vmem>>, vector<1x286x18xf32>
    %10 = vector.shape_cast %9 : vector<1x286x18xf32> to vector<286x18xf32>
    %c0_13 = arith.constant 0 : index
    %c54 = arith.constant 54 : index
    %11 = vector.load %arg9[%c0_13, %c54] : memref<572x162xf32, #tpu.memory_space<vmem>>, vector<286x18xf32>
    tpu.vector_store %arg9[%c0_13, %c54], %10 {strides = array<i32>} : memref<572x162xf32, #tpu.memory_space<vmem>>, vector<286x18xf32>,
    %c0_14 = arith.constant 0 : index
    %c19 = arith.constant 19 : index
    %c0_15 = arith.constant 0 : index
    %12 = vector.load %arg1[%c0_14, %c19, %c0_15] : memref<2x324x18xf32, #tpu.memory_space<vmem>>, vector<1x286x18xf32>
    %13 = vector.shape_cast %12 : vector<1x286x18xf32> to vector<286x18xf32>
    %c0_16 = arith.constant 0 : index
    %c72 = arith.constant 72 : index
    %14 = vector.load %arg9[%c0_16, %c72] : memref<572x162xf32, #tpu.memory_space<vmem>>, vector<286x18xf32>
    tpu.vector_store %arg9[%c0_16, %c72], %13 {strides = array<i32>} : memref<572x162xf32, #tpu.memory_space<vmem>>, vector<286x18xf32>,
    %c0_17 = arith.constant 0 : index
    %c20 = arith.constant 20 : index
    %c0_18 = arith.constant 0 : index
    %15 = vector.load %arg1[%c0_17, %c20, %c0_18] : memref<2x324x18xf32, #tpu.memory_space<vmem>>, vector<1x286x18xf32>
    %16 = vector.shape_cast %15 : vector<1x286x18xf32> to vector<286x18xf32>
    %c0_19 = arith.constant 0 : index
    %c90 = arith.constant 90 : index
    %17 = vector.load %arg9[%c0_19, %c90] : memref<572x162xf32, #tpu.memory_space<vmem>>, vector<286x18xf32>
    tpu.vector_store %arg9[%c0_19, %c90], %16 {strides = array<i32>} : memref<572x162xf32, #tpu.memory_space<vmem>>, vector<286x18xf32>,
    %c0_20 = arith.constant 0 : index
    %c36_21 = arith.constant 36 : index
    %c0_22 = arith.constant 0 : index
    %18 = vector.load %arg1[%c0_20, %c36_21, %c0_22] : memref<2x324x18xf32, #tpu.memory_space<vmem>>, vector<1x286x18xf32>
    %19 = vector.shape_cast %18 : vector<1x286x18xf32> to vector<286x18xf32>
    %c0_23 = arith.constant 0 : index
    %c108 = arith.constant 108 : index
    %20 = vector.load %arg9[%c0_23, %c108] : memref<572x162xf32, #tpu.memory_space<vmem>>, vector<286x18xf32>
    tpu.vector_store %arg9[%c0_23, %c108], %19 {strides = array<i32>} : memref<572x162xf32, #tpu.memory_space<vmem>>, vector<286x18xf32>,
    %c0_24 = arith.constant 0 : index
    %c37 = arith.constant 37 : index
    %c0_25 = arith.constant 0 : index
    %21 = vector.load %arg1[%c0_24, %c37, %c0_25] : memref<2x324x18xf32, #tpu.memory_space<vmem>>, vector<1x286x18xf32>
    %22 = vector.shape_cast %21 : vector<1x286x18xf32> to vector<286x18xf32>
    %c0_26 = arith.constant 0 : index
    %c126 = arith.constant 126 : index
    %23 = vector.load %arg9[%c0_26, %c126] : memref<572x162xf32, #tpu.memory_space<vmem>>, vector<286x18xf32>
    tpu.vector_store %arg9[%c0_26, %c126], %22 {strides = array<i32>} : memref<572x162xf32, #tpu.memory_space<vmem>>, vector<286x18xf32>,
    %c0_27 = arith.constant 0 : index
    %c38 = arith.constant 38 : index
    %c0_28 = arith.constant 0 : index
    %24 = vector.load %arg1[%c0_27, %c38, %c0_28] : memref<2x324x18xf32, #tpu.memory_space<vmem>>, vector<1x286x18xf32>
    %25 = vector.shape_cast %24 : vector<1x286x18xf32> to vector<286x18xf32>
    %c0_29 = arith.constant 0 : index
    %c144 = arith.constant 144 : index
    %26 = vector.load %arg9[%c0_29, %c144] : memref<572x162xf32, #tpu.memory_space<vmem>>, vector<286x18xf32>
    tpu.vector_store %arg9[%c0_29, %c144], %25 {strides = array<i32>} : memref<572x162xf32, #tpu.memory_space<vmem>>, vector<286x18xf32>,
    %c1_30 = arith.constant 1 : index
    %c0_31 = arith.constant 0 : index
    %c0_32 = arith.constant 0 : index
    %27 = vector.load %arg1[%c1_30, %c0_31, %c0_32] : memref<2x324x18xf32, #tpu.memory_space<vmem>>, vector<1x286x18xf32>
    %28 = vector.shape_cast %27 : vector<1x286x18xf32> to vector<286x18xf32>
    %c286 = arith.constant 286 : index
    %c0_33 = arith.constant 0 : index
    %29 = vector.load %arg9[%c286, %c0_33] : memref<572x162xf32, #tpu.memory_space<vmem>>, vector<286x18xf32>
    tpu.vector_store %arg9[%c286, %c0_33], %28 {strides = array<i32>} : memref<572x162xf32, #tpu.memory_space<vmem>>, vector<286x18xf32>,
    %c1_34 = arith.constant 1 : index
    %c1_35 = arith.constant 1 : index
    %c0_36 = arith.constant 0 : index
    %30 = vector.load %arg1[%c1_34, %c1_35, %c0_36] : memref<2x324x18xf32, #tpu.memory_space<vmem>>, vector<1x286x18xf32>
    %31 = vector.shape_cast %30 : vector<1x286x18xf32> to vector<286x18xf32>
    %c286_37 = arith.constant 286 : index
    %c18_38 = arith.constant 18 : index
    %32 = vector.load %arg9[%c286_37, %c18_38] : memref<572x162xf32, #tpu.memory_space<vmem>>, vector<286x18xf32>
    tpu.vector_store %arg9[%c286_37, %c18_38], %31 {strides = array<i32>} : memref<572x162xf32, #tpu.memory_space<vmem>>, vector<286x18xf32>,
    %c1_39 = arith.constant 1 : index
    %c2_40 = arith.constant 2 : index
    %c0_41 = arith.constant 0 : index
    %33 = vector.load %arg1[%c1_39, %c2_40, %c0_41] : memref<2x324x18xf32, #tpu.memory_space<vmem>>, vector<1x286x18xf32>
    %34 = vector.shape_cast %33 : vector<1x286x18xf32> to vector<286x18xf32>
    %c286_42 = arith.constant 286 : index
    %c36_43 = arith.constant 36 : index
    %35 = vector.load %arg9[%c286_42, %c36_43] : memref<572x162xf32, #tpu.memory_space<vmem>>, vector<286x18xf32>
    tpu.vector_store %arg9[%c286_42, %c36_43], %34 {strides = array<i32>} : memref<572x162xf32, #tpu.memory_space<vmem>>, vector<286x18xf32>,
    %c1_44 = arith.constant 1 : index
    %c18_45 = arith.constant 18 : index
    %c0_46 = arith.constant 0 : index
    %36 = vector.load %arg1[%c1_44, %c18_45, %c0_46] : memref<2x324x18xf32, #tpu.memory_space<vmem>>, vector<1x286x18xf32>
    %37 = vector.shape_cast %36 : vector<1x286x18xf32> to vector<286x18xf32>
    %c286_47 = arith.constant 286 : index
    %c54_48 = arith.constant 54 : index
    %38 = vector.load %arg9[%c286_47, %c54_48] : memref<572x162xf32, #tpu.memory_space<vmem>>, vector<286x18xf32>
    tpu.vector_store %arg9[%c286_47, %c54_48], %37 {strides = array<i32>} : memref<572x162xf32, #tpu.memory_space<vmem>>, vector<286x18xf32>,
    %c1_49 = arith.constant 1 : index
    %c19_50 = arith.constant 19 : index
    %c0_51 = arith.constant 0 : index
    %39 = vector.load %arg1[%c1_49, %c19_50, %c0_51] : memref<2x324x18xf32, #tpu.memory_space<vmem>>, vector<1x286x18xf32>
    %40 = vector.shape_cast %39 : vector<1x286x18xf32> to vector<286x18xf32>
    %c286_52 = arith.constant 286 : index
    %c72_53 = arith.constant 72 : index
    %41 = vector.load %arg9[%c286_52, %c72_53] : memref<572x162xf32, #tpu.memory_space<vmem>>, vector<286x18xf32>
    tpu.vector_store %arg9[%c286_52, %c72_53], %40 {strides = array<i32>} : memref<572x162xf32, #tpu.memory_space<vmem>>, vector<286x18xf32>,
    %c1_54 = arith.constant 1 : index
    %c20_55 = arith.constant 20 : index
    %c0_56 = arith.constant 0 : index
    %42 = vector.load %arg1[%c1_54, %c20_55, %c0_56] : memref<2x324x18xf32, #tpu.memory_space<vmem>>, vector<1x286x18xf32>
    %43 = vector.shape_cast %42 : vector<1x286x18xf32> to vector<286x18xf32>
    %c286_57 = arith.constant 286 : index
    %c90_58 = arith.constant 90 : index
    %44 = vector.load %arg9[%c286_57, %c90_58] : memref<572x162xf32, #tpu.memory_space<vmem>>, vector<286x18xf32>
    tpu.vector_store %arg9[%c286_57, %c90_58], %43 {strides = array<i32>} : memref<572x162xf32, #tpu.memory_space<vmem>>, vector<286x18xf32>,
    %c1_59 = arith.constant 1 : index
    %c36_60 = arith.constant 36 : index
    %c0_61 = arith.constant 0 : index
    %45 = vector.load %arg1[%c1_59, %c36_60, %c0_61] : memref<2x324x18xf32, #tpu.memory_space<vmem>>, vector<1x286x18xf32>
    %46 = vector.shape_cast %45 : vector<1x286x18xf32> to vector<286x18xf32>
    %c286_62 = arith.constant 286 : index
    %c108_63 = arith.constant 108 : index
    %47 = vector.load %arg9[%c286_62, %c108_63] : memref<572x162xf32, #tpu.memory_space<vmem>>, vector<286x18xf32>
    tpu.vector_store %arg9[%c286_62, %c108_63], %46 {strides = array<i32>} : memref<572x162xf32, #tpu.memory_space<vmem>>, vector<286x18xf32>,
    %c1_64 = arith.constant 1 : index
    %c37_65 = arith.constant 37 : index
    %c0_66 = arith.constant 0 : index
    %48 = vector.load %arg1[%c1_64, %c37_65, %c0_66] : memref<2x324x18xf32, #tpu.memory_space<vmem>>, vector<1x286x18xf32>
    %49 = vector.shape_cast %48 : vector<1x286x18xf32> to vector<286x18xf32>
    %c286_67 = arith.constant 286 : index
    %c126_68 = arith.constant 126 : index
    %50 = vector.load %arg9[%c286_67, %c126_68] : memref<572x162xf32, #tpu.memory_space<vmem>>, vector<286x18xf32>
    tpu.vector_store %arg9[%c286_67, %c126_68], %49 {strides = array<i32>} : memref<572x162xf32, #tpu.memory_space<vmem>>, vector<286x18xf32>,
    %c1_69 = arith.constant 1 : index
    %c38_70 = arith.constant 38 : index
    %c0_71 = arith.constant 0 : index
    %51 = vector.load %arg1[%c1_69, %c38_70, %c0_71] : memref<2x324x18xf32, #tpu.memory_space<vmem>>, vector<1x286x18xf32>
    %52 = vector.shape_cast %51 : vector<1x286x18xf32> to vector<286x18xf32>
    %c286_72 = arith.constant 286 : index
    %c144_73 = arith.constant 144 : index
    %53 = vector.load %arg9[%c286_72, %c144_73] : memref<572x162xf32, #tpu.memory_space<vmem>>, vector<286x18xf32>
    tpu.vector_store %arg9[%c286_72, %c144_73], %52 {strides = array<i32>} : memref<572x162xf32, #tpu.memory_space<vmem>>, vector<286x18xf32>,
    %c0_74 = arith.constant 0 : index
    %c0_75 = arith.constant 0 : index
    %54 = vector.load %arg9[%c0_74, %c0_75] : memref<572x162xf32, #tpu.memory_space<vmem>>, vector<572x162xf32>
    %c0_76 = arith.constant 0 : index
    %c0_77 = arith.constant 0 : index
    %55 = vector.load %arg2[%c0_76, %c0_77] : memref<162x32xf32, #tpu.memory_space<vmem>>, vector<162x32xf32>
    %cst = arith.constant dense<0.000000e+00> : vector<572x32xf32>
    %56 = tpu.matmul %54, %55, %cst {dimension_numbers = #tpu.dot_dimension_numbers<[1], [0], [0], [1], [0, 0, 1, 1], [], []>} : vector<572x162xf32>, vector<162x32xf32>, vector<572x32xf32> -> vector<572x32xf32>
    %c0_78 = arith.constant 0 : index
    %c0_79 = arith.constant 0 : index
    %57 = vector.load %arg7[%c0_78, %c0_79] : memref<3x128xf32, #tpu.memory_space<vmem>>, vector<1x32xf32>
    %58 = vector.broadcast %57 : vector<1x32xf32> to vector<572x32xf32>
    %59 = arith.addf %56, %58 : vector<572x32xf32>
    %cst_80 = arith.constant 0.000000e+00 : f32
    %60 = vector.broadcast %cst_80 : f32 to vector<572x32xf32>
    %61 = arith.maximumf %59, %60 : vector<572x32xf32>
    %c0_81 = arith.constant 0 : index
    %c0_82 = arith.constant 0 : index
    %62 = vector.load %arg3[%c0_81, %c0_82] : memref<2x572xf32, #tpu.memory_space<vmem>>, vector<2x572xf32>
    %cst_83 = arith.constant dense<0.000000e+00> : vector<2x32xf32>
    %63 = tpu.matmul %62, %61, %cst_83 {dimension_numbers = #tpu.dot_dimension_numbers<[1], [0], [0], [1], [0, 0, 1, 1], [], []>} : vector<2x572xf32>, vector<572x32xf32>, vector<2x32xf32> -> vector<2x32xf32>
    %c0_84 = arith.constant 0 : index
    %c0_85 = arith.constant 0 : index
    %64 = vector.load %arg5[%c0_84, %c0_85] : memref<34x64xf32, #tpu.memory_space<vmem>>, vector<32x64xf32>
    %cst_86 = arith.constant dense<0.000000e+00> : vector<2x64xf32>
    %65 = tpu.matmul %63, %64, %cst_86 {dimension_numbers = #tpu.dot_dimension_numbers<[1], [0], [0], [1], [0, 0, 1, 1], [], []>} : vector<2x32xf32>, vector<32x64xf32>, vector<2x64xf32> -> vector<2x64xf32>
    %c0_87 = arith.constant 0 : index
    %c0_88 = arith.constant 0 : index
    %66 = vector.load %arg4[%c0_87, %c0_88] : memref<2x2xf32, #tpu.memory_space<vmem>>, vector<2x1xf32>
    %c32 = arith.constant 32 : index
    %c0_89 = arith.constant 0 : index
    %67 = vector.load %arg5[%c32, %c0_89] : memref<34x64xf32, #tpu.memory_space<vmem>>, vector<1x64xf32>
    %68 = vector.broadcast %66 : vector<2x1xf32> to vector<2x64xf32>
    %69 = vector.broadcast %67 : vector<1x64xf32> to vector<2x64xf32>
    %70 = arith.mulf %68, %69 : vector<2x64xf32>
    %71 = arith.addf %65, %70 : vector<2x64xf32>
    %c0_90 = arith.constant 0 : index
    %c1_91 = arith.constant 1 : index
    %72 = vector.load %arg4[%c0_90, %c1_91] : memref<2x2xf32, #tpu.memory_space<vmem>>, vector<2x1xf32>
    %c33 = arith.constant 33 : index
    %c0_92 = arith.constant 0 : index
    %73 = vector.load %arg5[%c33, %c0_92] : memref<34x64xf32, #tpu.memory_space<vmem>>, vector<1x64xf32>
    %74 = vector.broadcast %72 : vector<2x1xf32> to vector<2x64xf32>
    %75 = vector.broadcast %73 : vector<1x64xf32> to vector<2x64xf32>
    %76 = arith.mulf %74, %75 : vector<2x64xf32>
    %77 = arith.addf %71, %76 : vector<2x64xf32>
    %c1_93 = arith.constant 1 : index
    %c0_94 = arith.constant 0 : index
    %78 = vector.load %arg7[%c1_93, %c0_94] : memref<3x128xf32, #tpu.memory_space<vmem>>, vector<1x64xf32>
    %79 = vector.broadcast %78 : vector<1x64xf32> to vector<2x64xf32>
    %80 = arith.addf %77, %79 : vector<2x64xf32>
    %cst_95 = arith.constant 0.000000e+00 : f32
    %81 = vector.broadcast %cst_95 : f32 to vector<2x64xf32>
    %82 = arith.maximumf %80, %81 : vector<2x64xf32>
    %c0_96 = arith.constant 0 : index
    %c0_97 = arith.constant 0 : index
    %83 = vector.load %arg6[%c0_96, %c0_97] : memref<64x128xf32, #tpu.memory_space<vmem>>, vector<64x128xf32>
    %cst_98 = arith.constant dense<0.000000e+00> : vector<2x128xf32>
    %84 = tpu.matmul %82, %83, %cst_98 {dimension_numbers = #tpu.dot_dimension_numbers<[1], [0], [0], [1], [0, 0, 1, 1], [], []>} : vector<2x64xf32>, vector<64x128xf32>, vector<2x128xf32> -> vector<2x128xf32>
    %c2_99 = arith.constant 2 : index
    %c0_100 = arith.constant 0 : index
    %85 = vector.load %arg7[%c2_99, %c0_100] : memref<3x128xf32, #tpu.memory_space<vmem>>, vector<1x128xf32>
    %86 = vector.broadcast %85 : vector<1x128xf32> to vector<2x128xf32>
    %87 = arith.addf %84, %86 : vector<2x128xf32>
    %c0_101 = arith.constant 0 : index
    %c0_102 = arith.constant 0 : index
    %88 = vector.load %arg8[%c0_101, %c0_102] : memref<2x128xf32, #tpu.memory_space<vmem>>, vector<2x128xf32>
    tpu.vector_store %arg8[%c0_101, %c0_102], %87 {strides = array<i32>} : memref<2x128xf32, #tpu.memory_space<vmem>>, vector<2x128xf32>,
    return
  }
  func.func @transform_0(%arg0: i32) -> (i32, i32, i32) {
    %c0_i32 = arith.constant 0 : i32
    %c0_i32_0 = arith.constant 0 : i32
    %c0_i32_1 = arith.constant 0 : i32
    return %arg0, %c0_i32, %c0_i32_0 : i32, i32, i32
  }
  func.func @transform_1(%arg0: i32) -> (i32, i32) {
    %c0_i32 = arith.constant 0 : i32
    %c0_i32_0 = arith.constant 0 : i32
    %c0_i32_1 = arith.constant 0 : i32
    return %c0_i32, %c0_i32_0 : i32, i32
  }
  func.func @transform_2(%arg0: i32) -> (i32, i32) {
    %c0_i32 = arith.constant 0 : i32
    %c0_i32_0 = arith.constant 0 : i32
    %c0_i32_1 = arith.constant 0 : i32
    return %c0_i32, %c0_i32_0 : i32, i32
  }
  func.func @transform_3(%arg0: i32) -> (i32, i32) {
    %c0_i32 = arith.constant 0 : i32
    %c0_i32_0 = arith.constant 0 : i32
    return %arg0, %c0_i32 : i32, i32
  }
  func.func @transform_4(%arg0: i32) -> (i32, i32) {
    %c0_i32 = arith.constant 0 : i32
    %c0_i32_0 = arith.constant 0 : i32
    %c0_i32_1 = arith.constant 0 : i32
    return %c0_i32, %c0_i32_0 : i32, i32
  }
  func.func @transform_5(%arg0: i32) -> (i32, i32) {
    %c0_i32 = arith.constant 0 : i32
    %c0_i32_0 = arith.constant 0 : i32
    %c0_i32_1 = arith.constant 0 : i32
    return %c0_i32, %c0_i32_0 : i32, i32
  }
  func.func @transform_6(%arg0: i32) -> (i32, i32) {
    %c0_i32 = arith.constant 0 : i32
    %c0_i32_0 = arith.constant 0 : i32
    %c0_i32_1 = arith.constant 0 : i32
    return %c0_i32, %c0_i32_0 : i32, i32
  }
  func.func @transform_7(%arg0: i32) -> (i32, i32) {
    %c0_i32 = arith.constant 0 : i32
    %c0_i32_0 = arith.constant 0 : i32
    return %arg0, %c0_i32 : i32, i32
  }
}

</mosaic_0001>

<llo_original>
// kernel: tpu_custom_call.1
$region0: #{tpu_custom_call.1}
  #allocation0 [shape = 'u32[]', space=smem, size = 0x4, offset = 0x4, fixed_abs, tag = 'smem constant byte address 0x4 - core index']
  #allocation1 [shape = 'u32[144,128]{1,0:T(1,128)}', space=vmem, size = 0x12000, scoped, tag = 'internal scratch']
  #allocation2 [shape = 'f32[572,162]{1,0:T(8,128)}', space=vmem, size = 0x90000, scoped, tag = 'scratch operand']
  %s0 = inlined_call_operand.vmem [shape: f32[2,324,18], index: 0, kind: input, shape index: {}]
  %s1 = inlined_call_operand.vmem [shape: f32[162,32], index: 1, kind: input, shape index: {}]
  %s2 = inlined_call_operand.vmem [shape: f32[2,572], index: 2, kind: input, shape index: {}]
  %s3 = inlined_call_operand.vmem [shape: f32[2,2], index: 3, kind: input, shape index: {}]
  %s4 = inlined_call_operand.vmem [shape: f32[34,64], index: 4, kind: input, shape index: {}]
  %s5 = inlined_call_operand.vmem [shape: f32[64,128], index: 5, kind: input, shape index: {}]
  %s6 = inlined_call_operand.vmem [shape: f32[3,128], index: 6, kind: input, shape index: {}]
  %s7 = inlined_call_operand.hbm [shape: f32[2,128], index: 7, kind: output, shape index: {}]
  %s8 = sld [smem:[#allocation0]]
  $region38: #{tpu_custom_call.1} parent=0
    _
  %s10 = ssub.s32 1, %s8
  %s11 = scalar_select 0, %s10, %s8
  $region1: #{tpu_custom_call.1} parent=0
    #allocation3 [shape = 'u8[1024]{0}', space=vmem, size = 0x400, scoped, tag = 'output window, operand 0, single buffered']
    #allocation4 [shape = 's32[1]{0}', space=sflag, size = 0x4, scoped, tag = 'scoped memory for tpu_custom_call.1']
    %12 = vsyncpa [#allocation4], 0
    // Predicated region
    $region2: #{tpu_custom_call.1} parent=1 // pred_check
      _
    $region3: #{tpu_custom_call.1} parent=1 // pred_check_branch
      %14 = sbr.rel (0) target = $region5
    $region4: #{tpu_custom_call.1} parent=1 // pred_region
      _
    $region5: #{tpu_custom_call.1} parent=1 // pred_fallthru
      _
    // Predicated region
    $region6: #{tpu_custom_call.1} parent=1 // pred_check
      _
    $region7: #{tpu_custom_call.1} parent=1 // pred_check_branch
      %16 = sbr.rel (0) target = $region9
    $region8: #{tpu_custom_call.1} parent=1 // pred_region
      _
    $region9: #{tpu_custom_call.1} parent=1 // pred_fallthru
      _
    // Predicated region
    $region10: #{tpu_custom_call.1} parent=1 // pred_check
      _
    $region11: #{tpu_custom_call.1} parent=1 // pred_check_branch
      %18 = sbr.rel (0) target = $region13
    $region12: #{tpu_custom_call.1} parent=1 // pred_region
      _
    $region13: #{tpu_custom_call.1} parent=1 // pred_fallthru
      _
    // Predicated region
    $region14: #{tpu_custom_call.1} parent=1 // pred_check
      _
    $region15: #{tpu_custom_call.1} parent=1 // pred_check_branch
      %20 = sbr.rel (0) target = $region17
    $region16: #{tpu_custom_call.1} parent=1 // pred_region
      _
    $region17: #{tpu_custom_call.1} parent=1 // pred_fallthru
      _
    // Predicated region
    $region18: #{tpu_custom_call.1} parent=1 // pred_check
      _
    $region19: #{tpu_custom_call.1} parent=1 // pred_check_branch
      %22 = sbr.rel (0) target = $region21
    $region20: #{tpu_custom_call.1} parent=1 // pred_region
      _
    $region21: #{tpu_custom_call.1} parent=1 // pred_fallthru
      _
    // Predicated region
    $region22: #{tpu_custom_call.1} parent=1 // pred_check
      _
    $region23: #{tpu_custom_call.1} parent=1 // pred_check_branch
      %24 = sbr.rel (0) target = $region25
    $region24: #{tpu_custom_call.1} parent=1 // pred_region
      _
    $region25: #{tpu_custom_call.1} parent=1 // pred_fallthru
      _
    // Predicated region
    $region26: #{tpu_custom_call.1} parent=1 // pred_check
      _
    $region27: #{tpu_custom_call.1} parent=1 // pred_check_branch
      %26 = sbr.rel (0) target = $region29
    $region28: #{tpu_custom_call.1} parent=1 // pred_region
      _
    $region29: #{tpu_custom_call.1} parent=1 // pred_fallthru
      _
    %v27 = vld [vmem:[%s0] sm:$0xff]
    %v28 = vld [vmem:[%s0 + $0x8] sm:$0xff]
    %v29 = vld [vmem:[%s0 + $0x10] sm:$0xff]
    %v30 = vld [vmem:[%s0 + $0x18] sm:$0xff]
    %v31 = vld [vmem:[%s0 + $0x20] sm:$0xff]
    %v32 = vld [vmem:[%s0 + $0x28] sm:$0xff]
    %v33 = vld [vmem:[%s0 + $0x30] sm:$0xff]
    %v34 = vld [vmem:[%s0 + $0x38] sm:$0xff]
    %v35 = vld [vmem:[%s0 + $0x40] sm:$0xff]
    %v36 = vld [vmem:[%s0 + $0x48] sm:$0xff]
    %v37 = vld [vmem:[%s0 + $0x50] sm:$0xff]
    %v38 = vld [vmem:[%s0 + $0x58] sm:$0xff]
    %v39 = vld [vmem:[%s0 + $0x60] sm:$0xff]
    %v40 = vld [vmem:[%s0 + $0x68] sm:$0xff]
    %v41 = vld [vmem:[%s0 + $0x70] sm:$0xff]
    %v42 = vld [vmem:[%s0 + $0x78] sm:$0xff]
    %v43 = vld [vmem:[%s0 + $0x80] sm:$0xff]
    %v44 = vld [vmem:[%s0 + $0x88] sm:$0xff]
    %v45 = vld [vmem:[%s0 + $0x90] sm:$0xff]
    %v46 = vld [vmem:[%s0 + $0x98] sm:$0xff]
    %v47 = vld [vmem:[%s0 + $0xa0] sm:$0xff]
    %v48 = vld [vmem:[%s0 + $0xa8] sm:$0xff]
    %v49 = vld [vmem:[%s0 + $0xb0] sm:$0xff]
    %v50 = vld [vmem:[%s0 + $0xb8] sm:$0xff]
    %v51 = vld [vmem:[%s0 + $0xc0] sm:$0xff]
    %v52 = vld [vmem:[%s0 + $0xc8] sm:$0xff]
    %v53 = vld [vmem:[%s0 + $0xd0] sm:$0xff]
    %v54 = vld [vmem:[%s0 + $0xd8] sm:$0xff]
    %v55 = vld [vmem:[%s0 + $0xe0] sm:$0xff]
    %v56 = vld [vmem:[%s0 + $0xe8] sm:$0xff]
    %v57 = vld [vmem:[%s0 + $0xf0] sm:$0xff]
    %v58 = vld [vmem:[%s0 + $0xf8] sm:$0xff]
    %v59 = vld [vmem:[%s0 + $0x100] sm:$0xff]
    %v60 = vld [vmem:[%s0 + $0x108] sm:$0xff]
    %v61 = vld [vmem:[%s0 + $0x110] sm:$0xff]
    %v62 = vld [vmem:[%s0 + $0x118] sm:$0x3f]
    %vm63 = vcmask 146432
    %64 = vst.msk [vmem:[#allocation2] sm:$0xff] %vm63, %v27
    %65 = vst.msk [vmem:[#allocation2 + $0x10] sm:$0xff] %vm63, %v28
    %66 = vst.msk [vmem:[#allocation2 + $0x20] sm:$0xff] %vm63, %v29
    %67 = vst.msk [vmem:[#allocation2 + $0x30] sm:$0xff] %vm63, %v30
    %68 = vst.msk [vmem:[#allocation2 + $0x40] sm:$0xff] %vm63, %v31
    %69 = vst.msk [vmem:[#allocation2 + $0x50] sm:$0xff] %vm63, %v32
    %70 = vst.msk [vmem:[#allocation2 + $0x60] sm:$0xff] %vm63, %v33
    %71 = vst.msk [vmem:[#allocation2 + $0x70] sm:$0xff] %vm63, %v34
    %72 = vst.msk [vmem:[#allocation2 + $0x80] sm:$0xff] %vm63, %v35
    %73 = vst.msk [vmem:[#allocation2 + $0x90] sm:$0xff] %vm63, %v36
    %74 = vst.msk [vmem:[#allocation2 + $0xa0] sm:$0xff] %vm63, %v37
    %75 = vst.msk [vmem:[#allocation2 + $0xb0] sm:$0xff] %vm63, %v38
    %76 = vst.msk [vmem:[#allocation2 + $0xc0] sm:$0xff] %vm63, %v39
    %77 = vst.msk [vmem:[#allocation2 + $0xd0] sm:$0xff] %vm63, %v40
    %78 = vst.msk [vmem:[#allocation2 + $0xe0] sm:$0xff] %vm63, %v41
    %79 = vst.msk [vmem:[#allocation2 + $0xf0] sm:$0xff] %vm63, %v42
    %80 = vst.msk [vmem:[#allocation2 + $0x100] sm:$0xff] %vm63, %v43
    %81 = vst.msk [vmem:[#allocation2 + $0x110] sm:$0xff] %vm63, %v44
    %82 = vst.msk [vmem:[#allocation2 + $0x120] sm:$0xff] %vm63, %v45
    %83 = vst.msk [vmem:[#allocation2 + $0x130] sm:$0xff] %vm63, %v46
    %84 = vst.msk [vmem:[#allocation2 + $0x140] sm:$0xff] %vm63, %v47
    %85 = vst.msk [vmem:[#allocation2 + $0x150] sm:$0xff] %vm63, %v48
    %86 = vst.msk [vmem:[#allocation2 + $0x160] sm:$0xff] %vm63, %v49
    %87 = vst.msk [vmem:[#allocation2 + $0x170] sm:$0xff] %vm63, %v50
    %88 = vst.msk [vmem:[#allocation2 + $0x180] sm:$0xff] %vm63, %v51
    %89 = vst.msk [vmem:[#allocation2 + $0x190] sm:$0xff] %vm63, %v52
    %90 = vst.msk [vmem:[#allocation2 + $0x1a0] sm:$0xff] %vm63, %v53
    %91 = vst.msk [vmem:[#allocation2 + $0x1b0] sm:$0xff] %vm63, %v54
    %92 = vst.msk [vmem:[#allocation2 + $0x1c0] sm:$0xff] %vm63, %v55
    %93 = vst.msk [vmem:[#allocation2 + $0x1d0] sm:$0xff] %vm63, %v56
    %94 = vst.msk [vmem:[#allocation2 + $0x1e0] sm:$0xff] %vm63, %v57
    %95 = vst.msk [vmem:[#allocation2 + $0x1f0] sm:$0xff] %vm63, %v58
    %96 = vst.msk [vmem:[#allocation2 + $0x200] sm:$0xff] %vm63, %v59
    %97 = vst.msk [vmem:[#allocation2 + $0x210] sm:$0xff] %vm63, %v60
    %98 = vst.msk [vmem:[#allocation2 + $0x220] sm:$0xff] %vm63, %v61
    %vm99 = vcmask 144384
    %100 = vst.msk [vmem:[#allocation2 + $0x230] sm:$0x3f] %vm99, %v62
    %v101 = vld [vmem:[%s0 + $0x1] sm:$0xff]
    %v102 = vld [vmem:[%s0 + $0x9] sm:$0xff]
    %v103 = vld [vmem:[%s0 + $0x11] sm:$0xff]
    %v104 = vld [vmem:[%s0 + $0x19] sm:$0xff]
    %v105 = vld [vmem:[%s0 + $0x21] sm:$0xff]
    %v106 = vld [vmem:[%s0 + $0x29] sm:$0xff]
    %v107 = vld [vmem:[%s0 + $0x31] sm:$0xff]
    %v108 = vld [vmem:[%s0 + $0x39] sm:$0xff]
    %v109 = vld [vmem:[%s0 + $0x41] sm:$0xff]
    %v110 = vld [vmem:[%s0 + $0x49] sm:$0xff]
    %v111 = vld [vmem:[%s0 + $0x51] sm:$0xff]
    %v112 = vld [vmem:[%s0 + $0x59] sm:$0xff]
    %v113 = vld [vmem:[%s0 + $0x61] sm:$0xff]
    %v114 = vld [vmem:[%s0 + $0x69] sm:$0xff]
    %v115 = vld [vmem:[%s0 + $0x71] sm:$0xff]
    %v116 = vld [vmem:[%s0 + $0x79] sm:$0xff]
    %v117 = vld [vmem:[%s0 + $0x81] sm:$0xff]
    %v118 = vld [vmem:[%s0 + $0x89] sm:$0xff]
    %v119 = vld [vmem:[%s0 + $0x91] sm:$0xff]
    %v120 = vld [vmem:[%s0 + $0x99] sm:$0xff]
    %v121 = vld [vmem:[%s0 + $0xa1] sm:$0xff]
    %v122 = vld [vmem:[%s0 + $0xa9] sm:$0xff]
    %v123 = vld [vmem:[%s0 + $0xb1] sm:$0xff]
    %v124 = vld [vmem:[%s0 + $0xb9] sm:$0xff]
    %v125 = vld [vmem:[%s0 + $0xc1] sm:$0xff]
    %v126 = vld [vmem:[%s0 + $0xc9] sm:$0xff]
    %v127 = vld [vmem:[%s0 + $0xd1] sm:$0xff]
    %v128 = vld [vmem:[%s0 + $0xd9] sm:$0xff]
    %v129 = vld [vmem:[%s0 + $0xe1] sm:$0xff]
    %v130 = vld [vmem:[%s0 + $0xe9] sm:$0xff]
    %v131 = vld [vmem:[%s0 + $0xf1] sm:$0xff]
    %v132 = vld [vmem:[%s0 + $0xf9] sm:$0xff]
    %v133 = vld [vmem:[%s0 + $0x101] sm:$0xff]
    %v134 = vld [vmem:[%s0 + $0x109] sm:$0xff]
    %v135 = vld [vmem:[%s0 + $0x111] sm:$0xff]
    %v136 = vld [vmem:[%s0 + $0x119] sm:$0x3f]
    %173 = vrot.lane.b32.xlu0 %v101, 18
    %v174 = vpop.permute.xlu0 %173
    %175 = vrot.lane.b32.xlu0 %v102, 18
    %v176 = vpop.permute.xlu0 %175
    %177 = vrot.lane.b32.xlu0 %v103, 18
    %v178 = vpop.permute.xlu0 %177
    %179 = vrot.lane.b32.xlu0 %v104, 18
    %v180 = vpop.permute.xlu0 %179
    %181 = vrot.lane.b32.xlu0 %v105, 18
    %v182 = vpop.permute.xlu0 %181
    %183 = vrot.lane.b32.xlu0 %v106, 18
    %v184 = vpop.permute.xlu0 %183
    %185 = vrot.lane.b32.xlu0 %v107, 18
    %v186 = vpop.permute.xlu0 %185
    %187 = vrot.lane.b32.xlu0 %v108, 18
    %v188 = vpop.permute.xlu0 %187
    %189 = vrot.lane.b32.xlu0 %v109, 18
    %v190 = vpop.permute.xlu0 %189
    %191 = vrot.lane.b32.xlu0 %v110, 18
    %v192 = vpop.permute.xlu0 %191
    %193 = vrot.lane.b32.xlu0 %v111, 18
    %v194 = vpop.permute.xlu0 %193
    %195 = vrot.lane.b32.xlu0 %v112, 18
    %v196 = vpop.permute.xlu0 %195
    %197 = vrot.lane.b32.xlu0 %v113, 18
    %v198 = vpop.permute.xlu0 %197
    %199 = vrot.lane.b32.xlu0 %v114, 18
    %v200 = vpop.permute.xlu0 %199
    %201 = vrot.lane.b32.xlu0 %v115, 18
    %v202 = vpop.permute.xlu0 %201
    %203 = vrot.lane.b32.xlu0 %v116, 18
    %v204 = vpop.permute.xlu0 %203
    %205 = vrot.lane.b32.xlu0 %v117, 18
    %v206 = vpop.permute.xlu0 %205
    %207 = vrot.lane.b32.xlu0 %v118, 18
    %v208 = vpop.permute.xlu0 %207
    %209 = vrot.lane.b32.xlu0 %v119, 18
    %v210 = vpop.permute.xlu0 %209
    %211 = vrot.lane.b32.xlu0 %v120, 18
    %v212 = vpop.permute.xlu0 %211
    %213 = vrot.lane.b32.xlu0 %v121, 18
    %v214 = vpop.permute.xlu0 %213
    %215 = vrot.lane.b32.xlu0 %v122, 18
    %v216 = vpop.permute.xlu0 %215
    %217 = vrot.lane.b32.xlu0 %v123, 18
    %v218 = vpop.permute.xlu0 %217
    %219 = vrot.lane.b32.xlu0 %v124, 18
    %v220 = vpop.permute.xlu0 %219
    %221 = vrot.lane.b32.xlu0 %v125, 18
    %v222 = vpop.permute.xlu0 %221
    %223 = vrot.lane.b32.xlu0 %v126, 18
    %v224 = vpop.permute.xlu0 %223
    %225 = vrot.lane.b32.xlu0 %v127, 18
    %v226 = vpop.permute.xlu0 %225
    %227 = vrot.lane.b32.xlu0 %v128, 18
    %v228 = vpop.permute.xlu0 %227
    %229 = vrot.lane.b32.xlu0 %v129, 18
    %v230 = vpop.permute.xlu0 %229
    %231 = vrot.lane.b32.xlu0 %v130, 18
    %v232 = vpop.permute.xlu0 %231
    %233 = vrot.lane.b32.xlu0 %v131, 18
    %v234 = vpop.permute.xlu0 %233
    %235 = vrot.lane.b32.xlu0 %v132, 18
    %v236 = vpop.permute.xlu0 %235
    %237 = vrot.lane.b32.xlu0 %v133, 18
    %v238 = vpop.permute.xlu0 %237
    %239 = vrot.lane.b32.xlu0 %v134, 18
    %v240 = vpop.permute.xlu0 %239
    %241 = vrot.lane.b32.xlu0 %v135, 18
    %v242 = vpop.permute.xlu0 %241
    %243 = vrot.lane.b32.xlu0 %v136, 18
    %v244 = vpop.permute.xlu0 %243
    %vm281 = vcmask 294032
    %282 = vst.msk [vmem:[#allocation2] sm:$0xff] %vm281, %v174
    %283 = vst.msk [vmem:[#allocation2 + $0x10] sm:$0xff] %vm281, %v176
    %284 = vst.msk [vmem:[#allocation2 + $0x20] sm:$0xff] %vm281, %v178
    %285 = vst.msk [vmem:[#allocation2 + $0x30] sm:$0xff] %vm281, %v180
    %286 = vst.msk [vmem:[#allocation2 + $0x40] sm:$0xff] %vm281, %v182
    %287 = vst.msk [vmem:[#allocation2 + $0x50] sm:$0xff] %vm281, %v184
    %288 = vst.msk [vmem:[#allocation2 + $0x60] sm:$0xff] %vm281, %v186
    %289 = vst.msk [vmem:[#allocation2 + $0x70] sm:$0xff] %vm281, %v188
    %290 = vst.msk [vmem:[#allocation2 + $0x80] sm:$0xff] %vm281, %v190
    %291 = vst.msk [vmem:[#allocation2 + $0x90] sm:$0xff] %vm281, %v192
    %292 = vst.msk [vmem:[#allocation2 + $0xa0] sm:$0xff] %vm281, %v194
    %293 = vst.msk [vmem:[#allocation2 + $0xb0] sm:$0xff] %vm281, %v196
    %294 = vst.msk [vmem:[#allocation2 + $0xc0] sm:$0xff] %vm281, %v198
    %295 = vst.msk [vmem:[#allocation2 + $0xd0] sm:$0xff] %vm281, %v200
    %296 = vst.msk [vmem:[#allocation2 + $0xe0] sm:$0xff] %vm281, %v202
    %297 = vst.msk [vmem:[#allocation2 + $0xf0] sm:$0xff] %vm281, %v204
    %298 = vst.msk [vmem:[#allocation2 + $0x100] sm:$0xff] %vm281, %v206
    %299 = vst.msk [vmem:[#allocation2 + $0x110] sm:$0xff] %vm281, %v208
    %300 = vst.msk [vmem:[#allocation2 + $0x120] sm:$0xff] %vm281, %v210
    %301 = vst.msk [vmem:[#allocation2 + $0x130] sm:$0xff] %vm281, %v212
    %302 = vst.msk [vmem:[#allocation2 + $0x140] sm:$0xff] %vm281, %v214
    %303 = vst.msk [vmem:[#allocation2 + $0x150] sm:$0xff] %vm281, %v216
    %304 = vst.msk [vmem:[#allocation2 + $0x160] sm:$0xff] %vm281, %v218
    %305 = vst.msk [vmem:[#allocation2 + $0x170] sm:$0xff] %vm281, %v220
    %306 = vst.msk [vmem:[#allocation2 + $0x180] sm:$0xff] %vm281, %v222
    %307 = vst.msk [vmem:[#allocation2 + $0x190] sm:$0xff] %vm281, %v224
    %308 = vst.msk [vmem:[#allocation2 + $0x1a0] sm:$0xff] %vm281, %v226
    %309 = vst.msk [vmem:[#allocation2 + $0x1b0] sm:$0xff] %vm281, %v228
    %310 = vst.msk [vmem:[#allocation2 + $0x1c0] sm:$0xff] %vm281, %v230
    %311 = vst.msk [vmem:[#allocation2 + $0x1d0] sm:$0xff] %vm281, %v232
    %312 = vst.msk [vmem:[#allocation2 + $0x1e0] sm:$0xff] %vm281, %v234
    %313 = vst.msk [vmem:[#allocation2 + $0x1f0] sm:$0xff] %vm281, %v236
    %314 = vst.msk [vmem:[#allocation2 + $0x200] sm:$0xff] %vm281, %v238
    %315 = vst.msk [vmem:[#allocation2 + $0x210] sm:$0xff] %vm281, %v240
    %316 = vst.msk [vmem:[#allocation2 + $0x220] sm:$0xff] %vm281, %v242
    %vm317 = vcmask 291984
    %318 = vst.msk [vmem:[#allocation2 + $0x230] sm:$0x3f] %vm317, %v244
    %v319 = vld [vmem:[%s0 + $0x2] sm:$0xff]
    %v320 = vld [vmem:[%s0 + $0xa] sm:$0xff]
    %v321 = vld [vmem:[%s0 + $0x12] sm:$0xff]
    %v322 = vld [vmem:[%s0 + $0x1a] sm:$0xff]
    %v323 = vld [vmem:[%s0 + $0x22] sm:$0xff]
    %v324 = vld [vmem:[%s0 + $0x2a] sm:$0xff]
    %v325 = vld [vmem:[%s0 + $0x32] sm:$0xff]
    %v326 = vld [vmem:[%s0 + $0x3a] sm:$0xff]
    %v327 = vld [vmem:[%s0 + $0x42] sm:$0xff]
    %v328 = vld [vmem:[%s0 + $0x4a] sm:$0xff]
    %v329 = vld [vmem:[%s0 + $0x52] sm:$0xff]
    %v330 = vld [vmem:[%s0 + $0x5a] sm:$0xff]
    %v331 = vld [vmem:[%s0 + $0x62] sm:$0xff]
    %v332 = vld [vmem:[%s0 + $0x6a] sm:$0xff]
    %v333 = vld [vmem:[%s0 + $0x72] sm:$0xff]
    %v334 = vld [vmem:[%s0 + $0x7a] sm:$0xff]
    %v335 = vld [vmem:[%s0 + $0x82] sm:$0xff]
    %v336 = vld [vmem:[%s0 + $0x8a] sm:$0xff]
    %v337 = vld [vmem:[%s0 + $0x92] sm:$0xff]
    %v338 = vld [vmem:[%s0 + $0x9a] sm:$0xff]
    %v339 = vld [vmem:[%s0 + $0xa2] sm:$0xff]
    %v340 = vld [vmem:[%s0 + $0xaa] sm:$0xff]
    %v341 = vld [vmem:[%s0 + $0xb2] sm:$0xff]
    %v342 = vld [vmem:[%s0 + $0xba] sm:$0xff]
    %v343 = vld [vmem:[%s0 + $0xc2] sm:$0xff]
    %v344 = vld [vmem:[%s0 + $0xca] sm:$0xff]
    %v345 = vld [vmem:[%s0 + $0xd2] sm:$0xff]
    %v346 = vld [vmem:[%s0 + $0xda] sm:$0xff]
    %v347 = vld [vmem:[%s0 + $0xe2] sm:$0xff]
    %v348 = vld [vmem:[%s0 + $0xea] sm:$0xff]
    %v349 = vld [vmem:[%s0 + $0xf2] sm:$0xff]
    %v350 = vld [vmem:[%s0 + $0xfa] sm:$0xff]
    %v351 = vld [vmem:[%s0 + $0x102] sm:$0xff]
    %v352 = vld [vmem:[%s0 + $0x10a] sm:$0xff]
    %v353 = vld [vmem:[%s0 + $0x112] sm:$0xff]
    %v354 = vld [vmem:[%s0 + $0x11a] sm:$0x3f]
    %391 = vrot.lane.b32.xlu0 %v319, 36
    %v392 = vpop.permute.xlu0 %391
    %393 = vrot.lane.b32.xlu0 %v320, 36
    %v394 = vpop.permute.xlu0 %393
    %395 = vrot.lane.b32.xlu0 %v321, 36
    %v396 = vpop.permute.xlu0 %395
    %397 = vrot.lane.b32.xlu0 %v322, 36
    %v398 = vpop.permute.xlu0 %397
    %399 = vrot.lane.b32.xlu0 %v323, 36
    %v400 = vpop.permute.xlu0 %399
    %401 = vrot.lane.b32.xlu0 %v324, 36
    %v402 = vpop.permute.xlu0 %401
    %403 = vrot.lane.b32.xlu0 %v325, 36
    %v404 = vpop.permute.xlu0 %403
    %405 = vrot.lane.b32.xlu0 %v326, 36
    %v406 = vpop.permute.xlu0 %405
    %407 = vrot.lane.b32.xlu0 %v327, 36
    %v408 = vpop.permute.xlu0 %407
    %409 = vrot.lane.b32.xlu0 %v328, 36
    %v410 = vpop.permute.xlu0 %409
    %411 = vrot.lane.b32.xlu0 %v329, 36
    %v412 = vpop.permute.xlu0 %411
    %413 = vrot.lane.b32.xlu0 %v330, 36
    %v414 = vpop.permute.xlu0 %413
    %415 = vrot.lane.b32.xlu0 %v331, 36
    %v416 = vpop.permute.xlu0 %415
    %417 = vrot.lane.b32.xlu0 %v332, 36
    %v418 = vpop.permute.xlu0 %417
    %419 = vrot.lane.b32.xlu0 %v333, 36
    %v420 = vpop.permute.xlu0 %419
    %421 = vrot.lane.b32.xlu0 %v334, 36
    %v422 = vpop.permute.xlu0 %421
    %423 = vrot.lane.b32.xlu0 %v335, 36
    %v424 = vpop.permute.xlu0 %423
    %425 = vrot.lane.b32.xlu0 %v336, 36
    %v426 = vpop.permute.xlu0 %425
    %427 = vrot.lane.b32.xlu0 %v337, 36
    %v428 = vpop.permute.xlu0 %427
    %429 = vrot.lane.b32.xlu0 %v338, 36
    %v430 = vpop.permute.xlu0 %429
    %431 = vrot.lane.b32.xlu0 %v339, 36
    %v432 = vpop.permute.xlu0 %431
    %433 = vrot.lane.b32.xlu0 %v340, 36
    %v434 = vpop.permute.xlu0 %433
    %435 = vrot.lane.b32.xlu0 %v341, 36
    %v436 = vpop.permute.xlu0 %435
    %437 = vrot.lane.b32.xlu0 %v342, 36
    %v438 = vpop.permute.xlu0 %437
    %439 = vrot.lane.b32.xlu0 %v343, 36
    %v440 = vpop.permute.xlu0 %439
    %441 = vrot.lane.b32.xlu0 %v344, 36
    %v442 = vpop.permute.xlu0 %441
    %443 = vrot.lane.b32.xlu0 %v345, 36
    %v444 = vpop.permute.xlu0 %443
    %445 = vrot.lane.b32.xlu0 %v346, 36
    %v446 = vpop.permute.xlu0 %445
    %447 = vrot.lane.b32.xlu0 %v347, 36
    %v448 = vpop.permute.xlu0 %447
    %449 = vrot.lane.b32.xlu0 %v348, 36
    %v450 = vpop.permute.xlu0 %449
    %451 = vrot.lane.b32.xlu0 %v349, 36
    %v452 = vpop.permute.xlu0 %451
    %453 = vrot.lane.b32.xlu0 %v350, 36
    %v454 = vpop.permute.xlu0 %453
    %455 = vrot.lane.b32.xlu0 %v351, 36
    %v456 = vpop.permute.xlu0 %455
    %457 = vrot.lane.b32.xlu0 %v352, 36
    %v458 = vpop.permute.xlu0 %457
    %459 = vrot.lane.b32.xlu0 %v353, 36
    %v460 = vpop.permute.xlu0 %459
    %461 = vrot.lane.b32.xlu0 %v354, 36
    %v462 = vpop.permute.xlu0 %461
    %vm499 = vcmask 441632
    %500 = vst.msk [vmem:[#allocation2] sm:$0xff] %vm499, %v392
    %501 = vst.msk [vmem:[#allocation2 + $0x10] sm:$0xff] %vm499, %v394
    %502 = vst.msk [vmem:[#allocation2 + $0x20] sm:$0xff] %vm499, %v396
    %503 = vst.msk [vmem:[#allocation2 + $0x30] sm:$0xff] %vm499, %v398
    %504 = vst.msk [vmem:[#allocation2 + $0x40] sm:$0xff] %vm499, %v400
    %505 = vst.msk [vmem:[#allocation2 + $0x50] sm:$0xff] %vm499, %v402
    %506 = vst.msk [vmem:[#allocation2 + $0x60] sm:$0xff] %vm499, %v404
    %507 = vst.msk [vmem:[#allocation2 + $0x70] sm:$0xff] %vm499, %v406
    %508 = vst.msk [vmem:[#allocation2 + $0x80] sm:$0xff] %vm499, %v408
    %509 = vst.msk [vmem:[#allocation2 + $0x90] sm:$0xff] %vm499, %v410
    %510 = vst.msk [vmem:[#allocation2 + $0xa0] sm:$0xff] %vm499, %v412
    %511 = vst.msk [vmem:[#allocation2 + $0xb0] sm:$0xff] %vm499, %v414
    %512 = vst.msk [vmem:[#allocation2 + $0xc0] sm:$0xff] %vm499, %v416
    %513 = vst.msk [vmem:[#allocation2 + $0xd0] sm:$0xff] %vm499, %v418
    %514 = vst.msk [vmem:[#allocation2 + $0xe0] sm:$0xff] %vm499, %v420
    %515 = vst.msk [vmem:[#allocation2 + $0xf0] sm:$0xff] %vm499, %v422
    %516 = vst.msk [vmem:[#allocation2 + $0x100] sm:$0xff] %vm499, %v424
    %517 = vst.msk [vmem:[#allocation2 + $0x110] sm:$0xff] %vm499, %v426
    %518 = vst.msk [vmem:[#allocation2 + $0x120] sm:$0xff] %vm499, %v428
    %519 = vst.msk [vmem:[#allocation2 + $0x130] sm:$0xff] %vm499, %v430
    %520 = vst.msk [vmem:[#allocation2 + $0x140] sm:$0xff] %vm499, %v432
    %521 = vst.msk [vmem:[#allocation2 + $0x150] sm:$0xff] %vm499, %v434
    %522 = vst.msk [vmem:[#allocation2 + $0x160] sm:$0xff] %vm499, %v436
    %523 = vst.msk [vmem:[#allocation2 + $0x170] sm:$0xff] %vm499, %v438
    %524 = vst.msk [vmem:[#allocation2 + $0x180] sm:$0xff] %vm499, %v440
    %525 = vst.msk [vmem:[#allocation2 + $0x190] sm:$0xff] %vm499, %v442
    %526 = vst.msk [vmem:[#allocation2 + $0x1a0] sm:$0xff] %vm499, %v444
    %527 = vst.msk [vmem:[#allocation2 + $0x1b0] sm:$0xff] %vm499, %v446
    %528 = vst.msk [vmem:[#allocation2 + $0x1c0] sm:$0xff] %vm499, %v448
    %529 = vst.msk [vmem:[#allocation2 + $0x1d0] sm:$0xff] %vm499, %v450
    %530 = vst.msk [vmem:[#allocation2 + $0x1e0] sm:$0xff] %vm499, %v452
    %531 = vst.msk [vmem:[#allocation2 + $0x1f0] sm:$0xff] %vm499, %v454
    %532 = vst.msk [vmem:[#allocation2 + $0x200] sm:$0xff] %vm499, %v456
    %533 = vst.msk [vmem:[#allocation2 + $0x210] sm:$0xff] %vm499, %v458
    %534 = vst.msk [vmem:[#allocation2 + $0x220] sm:$0xff] %vm499, %v460
    %vm535 = vcmask 439584
    %536 = vst.msk [vmem:[#allocation2 + $0x230] sm:$0x3f] %vm535, %v462
    %v537 = vld [vmem:[%s0 + $0x12] sm:$0xff]
    %v538 = vld [vmem:[%s0 + $0x1a] sm:$0xff]
    %v539 = vld [vmem:[%s0 + $0x22] sm:$0xff]
    %v540 = vld [vmem:[%s0 + $0x2a] sm:$0xff]
    %v541 = vld [vmem:[%s0 + $0x32] sm:$0xff]
    %v542 = vld [vmem:[%s0 + $0x3a] sm:$0xff]
    %v543 = vld [vmem:[%s0 + $0x42] sm:$0xff]
    %v544 = vld [vmem:[%s0 + $0x4a] sm:$0xff]
    %v545 = vld [vmem:[%s0 + $0x52] sm:$0xff]
    %v546 = vld [vmem:[%s0 + $0x5a] sm:$0xff]
    %v547 = vld [vmem:[%s0 + $0x62] sm:$0xff]
    %v548 = vld [vmem:[%s0 + $0x6a] sm:$0xff]
    %v549 = vld [vmem:[%s0 + $0x72] sm:$0xff]
    %v550 = vld [vmem:[%s0 + $0x7a] sm:$0xff]
    %v551 = vld [vmem:[%s0 + $0x82] sm:$0xff]
    %v552 = vld [vmem:[%s0 + $0x8a] sm:$0xff]
    %v553 = vld [vmem:[%s0 + $0x92] sm:$0xff]
    %v554 = vld [vmem:[%s0 + $0x9a] sm:$0xff]
    %v555 = vld [vmem:[%s0 + $0xa2] sm:$0xff]
    %v556 = vld [vmem:[%s0 + $0xaa] sm:$0xff]
    %v557 = vld [vmem:[%s0 + $0xb2] sm:$0xff]
    %v558 = vld [vmem:[%s0 + $0xba] sm:$0xff]
    %v559 = vld [vmem:[%s0 + $0xc2] sm:$0xff]
    %v560 = vld [vmem:[%s0 + $0xca] sm:$0xff]
    %v561 = vld [vmem:[%s0 + $0xd2] sm:$0xff]
    %v562 = vld [vmem:[%s0 + $0xda] sm:$0xff]
    %v563 = vld [vmem:[%s0 + $0xe2] sm:$0xff]
    %v564 = vld [vmem:[%s0 + $0xea] sm:$0xff]
    %v565 = vld [vmem:[%s0 + $0xf2] sm:$0xff]
    %v566 = vld [vmem:[%s0 + $0xfa] sm:$0xff]
    %v567 = vld [vmem:[%s0 + $0x102] sm:$0xff]
    %v568 = vld [vmem:[%s0 + $0x10a] sm:$0xff]
    %v569 = vld [vmem:[%s0 + $0x112] sm:$0xff]
    %v570 = vld [vmem:[%s0 + $0x11a] sm:$0xff]
    %v571 = vld [vmem:[%s0 + $0x122] sm:$0xff]
    %v572 = vld [vmem:[%s0 + $0x12a] sm:$0x3f]
    %609 = vrot.lane.b32.xlu0 %v537, 54
    %v610 = vpop.permute.xlu0 %609
    %611 = vrot.lane.b32.xlu0 %v538, 54
    %v612 = vpop.permute.xlu0 %611
    %613 = vrot.lane.b32.xlu0 %v539, 54
    %v614 = vpop.permute.xlu0 %613
    %615 = vrot.lane.b32.xlu0 %v540, 54
    %v616 = vpop.permute.xlu0 %615
    %617 = vrot.lane.b32.xlu0 %v541, 54
    %v618 = vpop.permute.xlu0 %617
    %619 = vrot.lane.b32.xlu0 %v542, 54
    %v620 = vpop.permute.xlu0 %619
    %621 = vrot.lane.b32.xlu0 %v543, 54
    %v622 = vpop.permute.xlu0 %621
    %623 = vrot.lane.b32.xlu0 %v544, 54
    %v624 = vpop.permute.xlu0 %623
    %625 = vrot.lane.b32.xlu0 %v545, 54
    %v626 = vpop.permute.xlu0 %625
    %627 = vrot.lane.b32.xlu0 %v546, 54
    %v628 = vpop.permute.xlu0 %627
    %629 = vrot.lane.b32.xlu0 %v547, 54
    %v630 = vpop.permute.xlu0 %629
    %631 = vrot.lane.b32.xlu0 %v548, 54
    %v632 = vpop.permute.xlu0 %631
    %633 = vrot.lane.b32.xlu0 %v549, 54
    %v634 = vpop.permute.xlu0 %633
    %635 = vrot.lane.b32.xlu0 %v550, 54
    %v636 = vpop.permute.xlu0 %635
    %637 = vrot.lane.b32.xlu0 %v551, 54
    %v638 = vpop.permute.xlu0 %637
    %639 = vrot.lane.b32.xlu0 %v552, 54
    %v640 = vpop.permute.xlu0 %639
    %641 = vrot.lane.b32.xlu0 %v553, 54
    %v642 = vpop.permute.xlu0 %641
    %643 = vrot.lane.b32.xlu0 %v554, 54
    %v644 = vpop.permute.xlu0 %643
    %645 = vrot.lane.b32.xlu0 %v555, 54
    %v646 = vpop.permute.xlu0 %645
    %647 = vrot.lane.b32.xlu0 %v556, 54
    %v648 = vpop.permute.xlu0 %647
    %649 = vrot.lane.b32.xlu0 %v557, 54
    %v650 = vpop.permute.xlu0 %649
    %651 = vrot.lane.b32.xlu0 %v558, 54
    %v652 = vpop.permute.xlu0 %651
    %653 = vrot.lane.b32.xlu0 %v559, 54
    %v654 = vpop.permute.xlu0 %653
    %655 = vrot.lane.b32.xlu0 %v560, 54
    %v656 = vpop.permute.xlu0 %655
    %657 = vrot.lane.b32.xlu0 %v561, 54
    %v658 = vpop.permute.xlu0 %657
    %659 = vrot.lane.b32.xlu0 %v562, 54
    %v660 = vpop.permute.xlu0 %659
    %661 = vrot.lane.b32.xlu0 %v563, 54
    %v662 = vpop.permute.xlu0 %661
    %663 = vrot.lane.b32.xlu0 %v564, 54
    %v664 = vpop.permute.xlu0 %663
    %665 = vrot.lane.b32.xlu0 %v565, 54
    %v666 = vpop.permute.xlu0 %665
    %667 = vrot.lane.b32.xlu0 %v566, 54
    %v668 = vpop.permute.xlu0 %667
    %669 = vrot.lane.b32.xlu0 %v567, 54
    %v670 = vpop.permute.xlu0 %669
    %671 = vrot.lane.b32.xlu0 %v568, 54
    %v672 = vpop.permute.xlu0 %671
    %673 = vrot.lane.b32.xlu0 %v569, 54
    %v674 = vpop.permute.xlu0 %673
    %675 = vrot.lane.b32.xlu0 %v570, 54
    %v676 = vpop.permute.xlu0 %675
    %677 = vrot.lane.b32.xlu0 %v571, 54
    %v678 = vpop.permute.xlu0 %677
    %679 = vrot.lane.b32.xlu0 %v572, 54
    %v680 = vpop.permute.xlu0 %679
    %vm717 = vcmask 589232
    %718 = vst.msk [vmem:[#allocation2] sm:$0xff] %vm717, %v610
    %719 = vst.msk [vmem:[#allocation2 + $0x10] sm:$0xff] %vm717, %v612
    %720 = vst.msk [vmem:[#allocation2 + $0x20] sm:$0xff] %vm717, %v614
    %721 = vst.msk [vmem:[#allocation2 + $0x30] sm:$0xff] %vm717, %v616
    %722 = vst.msk [vmem:[#allocation2 + $0x40] sm:$0xff] %vm717, %v618
    %723 = vst.msk [vmem:[#allocation2 + $0x50] sm:$0xff] %vm717, %v620
    %724 = vst.msk [vmem:[#allocation2 + $0x60] sm:$0xff] %vm717, %v622
    %725 = vst.msk [vmem:[#allocation2 + $0x70] sm:$0xff] %vm717, %v624
    %726 = vst.msk [vmem:[#allocation2 + $0x80] sm:$0xff] %vm717, %v626
    %727 = vst.msk [vmem:[#allocation2 + $0x90] sm:$0xff] %vm717, %v628
    %728 = vst.msk [vmem:[#allocation2 + $0xa0] sm:$0xff] %vm717, %v630
    %729 = vst.msk [vmem:[#allocation2 + $0xb0] sm:$0xff] %vm717, %v632
    %730 = vst.msk [vmem:[#allocation2 + $0xc0] sm:$0xff] %vm717, %v634
    %731 = vst.msk [vmem:[#allocation2 + $0xd0] sm:$0xff] %vm717, %v636
    %732 = vst.msk [vmem:[#allocation2 + $0xe0] sm:$0xff] %vm717, %v638
    %733 = vst.msk [vmem:[#allocation2 + $0xf0] sm:$0xff] %vm717, %v640
    %734 = vst.msk [vmem:[#allocation2 + $0x100] sm:$0xff] %vm717, %v642
    %735 = vst.msk [vmem:[#allocation2 + $0x110] sm:$0xff] %vm717, %v644
    %736 = vst.msk [vmem:[#allocation2 + $0x120] sm:$0xff] %vm717, %v646
    %737 = vst.msk [vmem:[#allocation2 + $0x130] sm:$0xff] %vm717, %v648
    %738 = vst.msk [vmem:[#allocation2 + $0x140] sm:$0xff] %vm717, %v650
    %739 = vst.msk [vmem:[#allocation2 + $0x150] sm:$0xff] %vm717, %v652
    %740 = vst.msk [vmem:[#allocation2 + $0x160] sm:$0xff] %vm717, %v654
    %741 = vst.msk [vmem:[#allocation2 + $0x170] sm:$0xff] %vm717, %v656
    %742 = vst.msk [vmem:[#allocation2 + $0x180] sm:$0xff] %vm717, %v658
    %743 = vst.msk [vmem:[#allocation2 + $0x190] sm:$0xff] %vm717, %v660
    %744 = vst.msk [vmem:[#allocation2 + $0x1a0] sm:$0xff] %vm717, %v662
    %745 = vst.msk [vmem:[#allocation2 + $0x1b0] sm:$0xff] %vm717, %v664
    %746 = vst.msk [vmem:[#allocation2 + $0x1c0] sm:$0xff] %vm717, %v666
    %747 = vst.msk [vmem:[#allocation2 + $0x1d0] sm:$0xff] %vm717, %v668
    %748 = vst.msk [vmem:[#allocation2 + $0x1e0] sm:$0xff] %vm717, %v670
    %749 = vst.msk [vmem:[#allocation2 + $0x1f0] sm:$0xff] %vm717, %v672
    %750 = vst.msk [vmem:[#allocation2 + $0x200] sm:$0xff] %vm717, %v674
    %751 = vst.msk [vmem:[#allocation2 + $0x210] sm:$0xff] %vm717, %v676
    %752 = vst.msk [vmem:[#allocation2 + $0x220] sm:$0xff] %vm717, %v678
    %vm753 = vcmask 587184
    %754 = vst.msk [vmem:[#allocation2 + $0x230] sm:$0x3f] %vm753, %v680
    %v755 = vld [vmem:[%s0 + $0x13] sm:$0xff]
    %v756 = vld [vmem:[%s0 + $0x1b] sm:$0xff]
    %v757 = vld [vmem:[%s0 + $0x23] sm:$0xff]
    %v758 = vld [vmem:[%s0 + $0x2b] sm:$0xff]
    %v759 = vld [vmem:[%s0 + $0x33] sm:$0xff]
    %v760 = vld [vmem:[%s0 + $0x3b] sm:$0xff]
    %v761 = vld [vmem:[%s0 + $0x43] sm:$0xff]
    %v762 = vld [vmem:[%s0 + $0x4b] sm:$0xff]
    %v763 = vld [vmem:[%s0 + $0x53] sm:$0xff]
    %v764 = vld [vmem:[%s0 + $0x5b] sm:$0xff]
    %v765 = vld [vmem:[%s0 + $0x63] sm:$0xff]
    %v766 = vld [vmem:[%s0 + $0x6b] sm:$0xff]
    %v767 = vld [vmem:[%s0 + $0x73] sm:$0xff]
    %v768 = vld [vmem:[%s0 + $0x7b] sm:$0xff]
    %v769 = vld [vmem:[%s0 + $0x83] sm:$0xff]
    %v770 = vld [vmem:[%s0 + $0x8b] sm:$0xff]
    %v771 = vld [vmem:[%s0 + $0x93] sm:$0xff]
    %v772 = vld [vmem:[%s0 + $0x9b] sm:$0xff]
    %v773 = vld [vmem:[%s0 + $0xa3] sm:$0xff]
    %v774 = vld [vmem:[%s0 + $0xab] sm:$0xff]
    %v775 = vld [vmem:[%s0 + $0xb3] sm:$0xff]
    %v776 = vld [vmem:[%s0 + $0xbb] sm:$0xff]
    %v777 = vld [vmem:[%s0 + $0xc3] sm:$0xff]
    %v778 = vld [vmem:[%s0 + $0xcb] sm:$0xff]
    %v779 = vld [vmem:[%s0 + $0xd3] sm:$0xff]
    %v780 = vld [vmem:[%s0 + $0xdb] sm:$0xff]
    %v781 = vld [vmem:[%s0 + $0xe3] sm:$0xff]
    %v782 = vld [vmem:[%s0 + $0xeb] sm:$0xff]
    %v783 = vld [vmem:[%s0 + $0xf3] sm:$0xff]
    %v784 = vld [vmem:[%s0 + $0xfb] sm:$0xff]
    %v785 = vld [vmem:[%s0 + $0x103] sm:$0xff]
    %v786 = vld [vmem:[%s0 + $0x10b] sm:$0xff]
    %v787 = vld [vmem:[%s0 + $0x113] sm:$0xff]
    %v788 = vld [vmem:[%s0 + $0x11b] sm:$0xff]
    %v789 = vld [vmem:[%s0 + $0x123] sm:$0xff]
    %v790 = vld [vmem:[%s0 + $0x12b] sm:$0x3f]
    %827 = vrot.lane.b32.xlu0 %v755, 72
    %v828 = vpop.permute.xlu0 %827
    %829 = vrot.lane.b32.xlu0 %v756, 72
    %v830 = vpop.permute.xlu0 %829
    %831 = vrot.lane.b32.xlu0 %v757, 72
    %v832 = vpop.permute.xlu0 %831
    %833 = vrot.lane.b32.xlu0 %v758, 72
    %v834 = vpop.permute.xlu0 %833
    %835 = vrot.lane.b32.xlu0 %v759, 72
    %v836 = vpop.permute.xlu0 %835
    %837 = vrot.lane.b32.xlu0 %v760, 72
    %v838 = vpop.permute.xlu0 %837
    %839 = vrot.lane.b32.xlu0 %v761, 72
    %v840 = vpop.permute.xlu0 %839
    %841 = vrot.lane.b32.xlu0 %v762, 72
    %v842 = vpop.permute.xlu0 %841
    %843 = vrot.lane.b32.xlu0 %v763, 72
    %v844 = vpop.permute.xlu0 %843
    %845 = vrot.lane.b32.xlu0 %v764, 72
    %v846 = vpop.permute.xlu0 %845
    %847 = vrot.lane.b32.xlu0 %v765, 72
    %v848 = vpop.permute.xlu0 %847
    %849 = vrot.lane.b32.xlu0 %v766, 72
    %v850 = vpop.permute.xlu0 %849
    %851 = vrot.lane.b32.xlu0 %v767, 72
    %v852 = vpop.permute.xlu0 %851
    %853 = vrot.lane.b32.xlu0 %v768, 72
    %v854 = vpop.permute.xlu0 %853
    %855 = vrot.lane.b32.xlu0 %v769, 72
    %v856 = vpop.permute.xlu0 %855
    %857 = vrot.lane.b32.xlu0 %v770, 72
    %v858 = vpop.permute.xlu0 %857
    %859 = vrot.lane.b32.xlu0 %v771, 72
    %v860 = vpop.permute.xlu0 %859
    %861 = vrot.lane.b32.xlu0 %v772, 72
    %v862 = vpop.permute.xlu0 %861
    %863 = vrot.lane.b32.xlu0 %v773, 72
    %v864 = vpop.permute.xlu0 %863
    %865 = vrot.lane.b32.xlu0 %v774, 72
    %v866 = vpop.permute.xlu0 %865
    %867 = vrot.lane.b32.xlu0 %v775, 72
    %v868 = vpop.permute.xlu0 %867
    %869 = vrot.lane.b32.xlu0 %v776, 72
    %v870 = vpop.permute.xlu0 %869
    %871 = vrot.lane.b32.xlu0 %v777, 72
    %v872 = vpop.permute.xlu0 %871
    %873 = vrot.lane.b32.xlu0 %v778, 72
    %v874 = vpop.permute.xlu0 %873
    %875 = vrot.lane.b32.xlu0 %v779, 72
    %v876 = vpop.permute.xlu0 %875
    %877 = vrot.lane.b32.xlu0 %v780, 72
    %v878 = vpop.permute.xlu0 %877
    %879 = vrot.lane.b32.xlu0 %v781, 72
    %v880 = vpop.permute.xlu0 %879
    %881 = vrot.lane.b32.xlu0 %v782, 72
    %v882 = vpop.permute.xlu0 %881
    %883 = vrot.lane.b32.xlu0 %v783, 72
    %v884 = vpop.permute.xlu0 %883
    %885 = vrot.lane.b32.xlu0 %v784, 72
    %v886 = vpop.permute.xlu0 %885
    %887 = vrot.lane.b32.xlu0 %v785, 72
    %v888 = vpop.permute.xlu0 %887
    %889 = vrot.lane.b32.xlu0 %v786, 72
    %v890 = vpop.permute.xlu0 %889
    %891 = vrot.lane.b32.xlu0 %v787, 72
    %v892 = vpop.permute.xlu0 %891
    %893 = vrot.lane.b32.xlu0 %v788, 72
    %v894 = vpop.permute.xlu0 %893
    %895 = vrot.lane.b32.xlu0 %v789, 72
    %v896 = vpop.permute.xlu0 %895
    %897 = vrot.lane.b32.xlu0 %v790, 72
    %v898 = vpop.permute.xlu0 %897
    %vm935 = vcmask 736832
    %936 = vst.msk [vmem:[#allocation2] sm:$0xff] %vm935, %v828
    %937 = vst.msk [vmem:[#allocation2 + $0x10] sm:$0xff] %vm935, %v830
    %938 = vst.msk [vmem:[#allocation2 + $0x20] sm:$0xff] %vm935, %v832
    %939 = vst.msk [vmem:[#allocation2 + $0x30] sm:$0xff] %vm935, %v834
    %940 = vst.msk [vmem:[#allocation2 + $0x40] sm:$0xff] %vm935, %v836
    %941 = vst.msk [vmem:[#allocation2 + $0x50] sm:$0xff] %vm935, %v838
    %942 = vst.msk [vmem:[#allocation2 + $0x60] sm:$0xff] %vm935, %v840
    %943 = vst.msk [vmem:[#allocation2 + $0x70] sm:$0xff] %vm935, %v842
    %944 = vst.msk [vmem:[#allocation2 + $0x80] sm:$0xff] %vm935, %v844
    %945 = vst.msk [vmem:[#allocation2 + $0x90] sm:$0xff] %vm935, %v846
    %946 = vst.msk [vmem:[#allocation2 + $0xa0] sm:$0xff] %vm935, %v848
    %947 = vst.msk [vmem:[#allocation2 + $0xb0] sm:$0xff] %vm935, %v850
    %948 = vst.msk [vmem:[#allocation2 + $0xc0] sm:$0xff] %vm935, %v852
    %949 = vst.msk [vmem:[#allocation2 + $0xd0] sm:$0xff] %vm935, %v854
    %950 = vst.msk [vmem:[#allocation2 + $0xe0] sm:$0xff] %vm935, %v856
    %951 = vst.msk [vmem:[#allocation2 + $0xf0] sm:$0xff] %vm935, %v858
    %952 = vst.msk [vmem:[#allocation2 + $0x100] sm:$0xff] %vm935, %v860
    %953 = vst.msk [vmem:[#allocation2 + $0x110] sm:$0xff] %vm935, %v862
    %954 = vst.msk [vmem:[#allocation2 + $0x120] sm:$0xff] %vm935, %v864
    %955 = vst.msk [vmem:[#allocation2 + $0x130] sm:$0xff] %vm935, %v866
    %956 = vst.msk [vmem:[#allocation2 + $0x140] sm:$0xff] %vm935, %v868
    %957 = vst.msk [vmem:[#allocation2 + $0x150] sm:$0xff] %vm935, %v870
    %958 = vst.msk [vmem:[#allocation2 + $0x160] sm:$0xff] %vm935, %v872
    %959 = vst.msk [vmem:[#allocation2 + $0x170] sm:$0xff] %vm935, %v874
    %960 = vst.msk [vmem:[#allocation2 + $0x180] sm:$0xff] %vm935, %v876
    %961 = vst.msk [vmem:[#allocation2 + $0x190] sm:$0xff] %vm935, %v878
    %962 = vst.msk [vmem:[#allocation2 + $0x1a0] sm:$0xff] %vm935, %v880
    %963 = vst.msk [vmem:[#allocation2 + $0x1b0] sm:$0xff] %vm935, %v882
    %964 = vst.msk [vmem:[#allocation2 + $0x1c0] sm:$0xff] %vm935, %v884
    %965 = vst.msk [vmem:[#allocation2 + $0x1d0] sm:$0xff] %vm935, %v886
    %966 = vst.msk [vmem:[#allocation2 + $0x1e0] sm:$0xff] %vm935, %v888
    %967 = vst.msk [vmem:[#allocation2 + $0x1f0] sm:$0xff] %vm935, %v890
    %968 = vst.msk [vmem:[#allocation2 + $0x200] sm:$0xff] %vm935, %v892
    %969 = vst.msk [vmem:[#allocation2 + $0x210] sm:$0xff] %vm935, %v894
    %970 = vst.msk [vmem:[#allocation2 + $0x220] sm:$0xff] %vm935, %v896
    %vm971 = vcmask 734784
    %972 = vst.msk [vmem:[#allocation2 + $0x230] sm:$0x3f] %vm971, %v898
    %v973 = vld [vmem:[%s0 + $0x14] sm:$0xff]
    %v974 = vld [vmem:[%s0 + $0x1c] sm:$0xff]
    %v975 = vld [vmem:[%s0 + $0x24] sm:$0xff]
    %v976 = vld [vmem:[%s0 + $0x2c] sm:$0xff]
    %v977 = vld [vmem:[%s0 + $0x34] sm:$0xff]
    %v978 = vld [vmem:[%s0 + $0x3c] sm:$0xff]
    %v979 = vld [vmem:[%s0 + $0x44] sm:$0xff]
    %v980 = vld [vmem:[%s0 + $0x4c] sm:$0xff]
    %v981 = vld [vmem:[%s0 + $0x54] sm:$0xff]
    %v982 = vld [vmem:[%s0 + $0x5c] sm:$0xff]
    %v983 = vld [vmem:[%s0 + $0x64] sm:$0xff]
    %v984 = vld [vmem:[%s0 + $0x6c] sm:$0xff]
    %v985 = vld [vmem:[%s0 + $0x74] sm:$0xff]
    %v986 = vld [vmem:[%s0 + $0x7c] sm:$0xff]
    %v987 = vld [vmem:[%s0 + $0x84] sm:$0xff]
    %v988 = vld [vmem:[%s0 + $0x8c] sm:$0xff]
    %v989 = vld [vmem:[%s0 + $0x94] sm:$0xff]
    %v990 = vld [vmem:[%s0 + $0x9c] sm:$0xff]
    %v991 = vld [vmem:[%s0 + $0xa4] sm:$0xff]
    %v992 = vld [vmem:[%s0 + $0xac] sm:$0xff]
    %v993 = vld [vmem:[%s0 + $0xb4] sm:$0xff]
    %v994 = vld [vmem:[%s0 + $0xbc] sm:$0xff]
    %v995 = vld [vmem:[%s0 + $0xc4] sm:$0xff]
    %v996 = vld [vmem:[%s0 + $0xcc] sm:$0xff]
    %v997 = vld [vmem:[%s0 + $0xd4] sm:$0xff]
    %v998 = vld [vmem:[%s0 + $0xdc] sm:$0xff]
    %v999 = vld [vmem:[%s0 + $0xe4] sm:$0xff]
    %v1000 = vld [vmem:[%s0 + $0xec] sm:$0xff]
    %v1001 = vld [vmem:[%s0 + $0xf4] sm:$0xff]
    %v1002 = vld [vmem:[%s0 + $0xfc] sm:$0xff]
    %v1003 = vld [vmem:[%s0 + $0x104] sm:$0xff]
    %v1004 = vld [vmem:[%s0 + $0x10c] sm:$0xff]
    %v1005 = vld [vmem:[%s0 + $0x114] sm:$0xff]
    %v1006 = vld [vmem:[%s0 + $0x11c] sm:$0xff]
    %v1007 = vld [vmem:[%s0 + $0x124] sm:$0xff]
    %v1008 = vld [vmem:[%s0 + $0x12c] sm:$0x3f]
    %1045 = vrot.lane.b32.xlu0 %v973, 90
    %v1046 = vpop.permute.xlu0 %1045
    %1047 = vrot.lane.b32.xlu0 %v974, 90
    %v1048 = vpop.permute.xlu0 %1047
    %1049 = vrot.lane.b32.xlu0 %v975, 90
    %v1050 = vpop.permute.xlu0 %1049
    %1051 = vrot.lane.b32.xlu0 %v976, 90
    %v1052 = vpop.permute.xlu0 %1051
    %1053 = vrot.lane.b32.xlu0 %v977, 90
    %v1054 = vpop.permute.xlu0 %1053
    %1055 = vrot.lane.b32.xlu0 %v978, 90
    %v1056 = vpop.permute.xlu0 %1055
    %1057 = vrot.lane.b32.xlu0 %v979, 90
    %v1058 = vpop.permute.xlu0 %1057
    %1059 = vrot.lane.b32.xlu0 %v980, 90
    %v1060 = vpop.permute.xlu0 %1059
    %1061 = vrot.lane.b32.xlu0 %v981, 90
    %v1062 = vpop.permute.xlu0 %1061
    %1063 = vrot.lane.b32.xlu0 %v982, 90
    %v1064 = vpop.permute.xlu0 %1063
    %1065 = vrot.lane.b32.xlu0 %v983, 90
    %v1066 = vpop.permute.xlu0 %1065
    %1067 = vrot.lane.b32.xlu0 %v984, 90
    %v1068 = vpop.permute.xlu0 %1067
    %1069 = vrot.lane.b32.xlu0 %v985, 90
    %v1070 = vpop.permute.xlu0 %1069
    %1071 = vrot.lane.b32.xlu0 %v986, 90
    %v1072 = vpop.permute.xlu0 %1071
    %1073 = vrot.lane.b32.xlu0 %v987, 90
    %v1074 = vpop.permute.xlu0 %1073
    %1075 = vrot.lane.b32.xlu0 %v988, 90
    %v1076 = vpop.permute.xlu0 %1075
    %1077 = vrot.lane.b32.xlu0 %v989, 90
    %v1078 = vpop.permute.xlu0 %1077
    %1079 = vrot.lane.b32.xlu0 %v990, 90
    %v1080 = vpop.permute.xlu0 %1079
    %1081 = vrot.lane.b32.xlu0 %v991, 90
    %v1082 = vpop.permute.xlu0 %1081
    %1083 = vrot.lane.b32.xlu0 %v992, 90
    %v1084 = vpop.permute.xlu0 %1083
    %1085 = vrot.lane.b32.xlu0 %v993, 90
    %v1086 = vpop.permute.xlu0 %1085
    %1087 = vrot.lane.b32.xlu0 %v994, 90
    %v1088 = vpop.permute.xlu0 %1087
    %1089 = vrot.lane.b32.xlu0 %v995, 90
    %v1090 = vpop.permute.xlu0 %1089
    %1091 = vrot.lane.b32.xlu0 %v996, 90
    %v1092 = vpop.permute.xlu0 %1091
    %1093 = vrot.lane.b32.xlu0 %v997, 90
    %v1094 = vpop.permute.xlu0 %1093
    %1095 = vrot.lane.b32.xlu0 %v998, 90
    %v1096 = vpop.permute.xlu0 %1095
    %1097 = vrot.lane.b32.xlu0 %v999, 90
    %v1098 = vpop.permute.xlu0 %1097
    %1099 = vrot.lane.b32.xlu0 %v1000, 90
    %v1100 = vpop.permute.xlu0 %1099
    %1101 = vrot.lane.b32.xlu0 %v1001, 90
    %v1102 = vpop.permute.xlu0 %1101
    %1103 = vrot.lane.b32.xlu0 %v1002, 90
    %v1104 = vpop.permute.xlu0 %1103
    %1105 = vrot.lane.b32.xlu0 %v1003, 90
    %v1106 = vpop.permute.xlu0 %1105
    %1107 = vrot.lane.b32.xlu0 %v1004, 90
    %v1108 = vpop.permute.xlu0 %1107
    %1109 = vrot.lane.b32.xlu0 %v1005, 90
    %v1110 = vpop.permute.xlu0 %1109
    %1111 = vrot.lane.b32.xlu0 %v1006, 90
    %v1112 = vpop.permute.xlu0 %1111
    %1113 = vrot.lane.b32.xlu0 %v1007, 90
    %v1114 = vpop.permute.xlu0 %1113
    %1115 = vrot.lane.b32.xlu0 %v1008, 90
    %v1116 = vpop.permute.xlu0 %1115
    %vm1153 = vcmask 884432
    %1154 = vst.msk [vmem:[#allocation2] sm:$0xff] %vm1153, %v1046
    %1155 = vst.msk [vmem:[#allocation2 + $0x10] sm:$0xff] %vm1153, %v1048
    %1156 = vst.msk [vmem:[#allocation2 + $0x20] sm:$0xff] %vm1153, %v1050
    %1157 = vst.msk [vmem:[#allocation2 + $0x30] sm:$0xff] %vm1153, %v1052
    %1158 = vst.msk [vmem:[#allocation2 + $0x40] sm:$0xff] %vm1153, %v1054
    %1159 = vst.msk [vmem:[#allocation2 + $0x50] sm:$0xff] %vm1153, %v1056
    %1160 = vst.msk [vmem:[#allocation2 + $0x60] sm:$0xff] %vm1153, %v1058
    %1161 = vst.msk [vmem:[#allocation2 + $0x70] sm:$0xff] %vm1153, %v1060
    %1162 = vst.msk [vmem:[#allocation2 + $0x80] sm:$0xff] %vm1153, %v1062
    %1163 = vst.msk [vmem:[#allocation2 + $0x90] sm:$0xff] %vm1153, %v1064
    %1164 = vst.msk [vmem:[#allocation2 + $0xa0] sm:$0xff] %vm1153, %v1066
    %1165 = vst.msk [vmem:[#allocation2 + $0xb0] sm:$0xff] %vm1153, %v1068
    %1166 = vst.msk [vmem:[#allocation2 + $0xc0] sm:$0xff] %vm1153, %v1070
    %1167 = vst.msk [vmem:[#allocation2 + $0xd0] sm:$0xff] %vm1153, %v1072
    %1168 = vst.msk [vmem:[#allocation2 + $0xe0] sm:$0xff] %vm1153, %v1074
    %1169 = vst.msk [vmem:[#allocation2 + $0xf0] sm:$0xff] %vm1153, %v1076
    %1170 = vst.msk [vmem:[#allocation2 + $0x100] sm:$0xff] %vm1153, %v1078
    %1171 = vst.msk [vmem:[#allocation2 + $0x110] sm:$0xff] %vm1153, %v1080
    %1172 = vst.msk [vmem:[#allocation2 + $0x120] sm:$0xff] %vm1153, %v1082
    %1173 = vst.msk [vmem:[#allocation2 + $0x130] sm:$0xff] %vm1153, %v1084
    %1174 = vst.msk [vmem:[#allocation2 + $0x140] sm:$0xff] %vm1153, %v1086
    %1175 = vst.msk [vmem:[#allocation2 + $0x150] sm:$0xff] %vm1153, %v1088
    %1176 = vst.msk [vmem:[#allocation2 + $0x160] sm:$0xff] %vm1153, %v1090
    %1177 = vst.msk [vmem:[#allocation2 + $0x170] sm:$0xff] %vm1153, %v1092
    %1178 = vst.msk [vmem:[#allocation2 + $0x180] sm:$0xff] %vm1153, %v1094
    %1179 = vst.msk [vmem:[#allocation2 + $0x190] sm:$0xff] %vm1153, %v1096
    %1180 = vst.msk [vmem:[#allocation2 + $0x1a0] sm:$0xff] %vm1153, %v1098
    %1181 = vst.msk [vmem:[#allocation2 + $0x1b0] sm:$0xff] %vm1153, %v1100
    %1182 = vst.msk [vmem:[#allocation2 + $0x1c0] sm:$0xff] %vm1153, %v1102
    %1183 = vst.msk [vmem:[#allocation2 + $0x1d0] sm:$0xff] %vm1153, %v1104
    %1184 = vst.msk [vmem:[#allocation2 + $0x1e0] sm:$0xff] %vm1153, %v1106
    %1185 = vst.msk [vmem:[#allocation2 + $0x1f0] sm:$0xff] %vm1153, %v1108
    %1186 = vst.msk [vmem:[#allocation2 + $0x200] sm:$0xff] %vm1153, %v1110
    %1187 = vst.msk [vmem:[#allocation2 + $0x210] sm:$0xff] %vm1153, %v1112
    %1188 = vst.msk [vmem:[#allocation2 + $0x220] sm:$0xff] %vm1153, %v1114
    %vm1189 = vcmask 882384
    %1190 = vst.msk [vmem:[#allocation2 + $0x230] sm:$0x3f] %vm1189, %v1116
    %v1191 = vld [vmem:[%s0 + $0x24] sm:$0xff]
    %v1192 = vld [vmem:[%s0 + $0x2c] sm:$0xff]
    %v1193 = vld [vmem:[%s0 + $0x34] sm:$0xff]
    %v1194 = vld [vmem:[%s0 + $0x3c] sm:$0xff]
    %v1195 = vld [vmem:[%s0 + $0x44] sm:$0xff]
    %v1196 = vld [vmem:[%s0 + $0x4c] sm:$0xff]
    %v1197 = vld [vmem:[%s0 + $0x54] sm:$0xff]
    %v1198 = vld [vmem:[%s0 + $0x5c] sm:$0xff]
    %v1199 = vld [vmem:[%s0 + $0x64] sm:$0xff]
    %v1200 = vld [vmem:[%s0 + $0x6c] sm:$0xff]
    %v1201 = vld [vmem:[%s0 + $0x74] sm:$0xff]
    %v1202 = vld [vmem:[%s0 + $0x7c] sm:$0xff]
    %v1203 = vld [vmem:[%s0 + $0x84] sm:$0xff]
    %v1204 = vld [vmem:[%s0 + $0x8c] sm:$0xff]
    %v1205 = vld [vmem:[%s0 + $0x94] sm:$0xff]
    %v1206 = vld [vmem:[%s0 + $0x9c] sm:$0xff]
    %v1207 = vld [vmem:[%s0 + $0xa4] sm:$0xff]
    %v1208 = vld [vmem:[%s0 + $0xac] sm:$0xff]
    %v1209 = vld [vmem:[%s0 + $0xb4] sm:$0xff]
    %v1210 = vld [vmem:[%s0 + $0xbc] sm:$0xff]
    %v1211 = vld [vmem:[%s0 + $0xc4] sm:$0xff]
    %v1212 = vld [vmem:[%s0 + $0xcc] sm:$0xff]
    %v1213 = vld [vmem:[%s0 + $0xd4] sm:$0xff]
    %v1214 = vld [vmem:[%s0 + $0xdc] sm:$0xff]
    %v1215 = vld [vmem:[%s0 + $0xe4] sm:$0xff]
    %v1216 = vld [vmem:[%s0 + $0xec] sm:$0xff]
    %v1217 = vld [vmem:[%s0 + $0xf4] sm:$0xff]
    %v1218 = vld [vmem:[%s0 + $0xfc] sm:$0xff]
    %v1219 = vld [vmem:[%s0 + $0x104] sm:$0xff]
    %v1220 = vld [vmem:[%s0 + $0x10c] sm:$0xff]
    %v1221 = vld [vmem:[%s0 + $0x114] sm:$0xff]
    %v1222 = vld [vmem:[%s0 + $0x11c] sm:$0xff]
    %v1223 = vld [vmem:[%s0 + $0x124] sm:$0xff]
    %v1224 = vld [vmem:[%s0 + $0x12c] sm:$0xff]
    %v1225 = vld [vmem:[%s0 + $0x134] sm:$0xff]
    %v1226 = vld [vmem:[%s0 + $0x13c] sm:$0x3f]
    %1263 = vrot.lane.b32.xlu0 %v1191, 108
    %v1264 = vpop.permute.xlu0 %1263
    %1265 = vrot.lane.b32.xlu0 %v1192, 108
    %v1266 = vpop.permute.xlu0 %1265
    %1267 = vrot.lane.b32.xlu0 %v1193, 108
    %v1268 = vpop.permute.xlu0 %1267
    %1269 = vrot.lane.b32.xlu0 %v1194, 108
    %v1270 = vpop.permute.xlu0 %1269
    %1271 = vrot.lane.b32.xlu0 %v1195, 108
    %v1272 = vpop.permute.xlu0 %1271
    %1273 = vrot.lane.b32.xlu0 %v1196, 108
    %v1274 = vpop.permute.xlu0 %1273
    %1275 = vrot.lane.b32.xlu0 %v1197, 108
    %v1276 = vpop.permute.xlu0 %1275
    %1277 = vrot.lane.b32.xlu0 %v1198, 108
    %v1278 = vpop.permute.xlu0 %1277
    %1279 = vrot.lane.b32.xlu0 %v1199, 108
    %v1280 = vpop.permute.xlu0 %1279
    %1281 = vrot.lane.b32.xlu0 %v1200, 108
    %v1282 = vpop.permute.xlu0 %1281
    %1283 = vrot.lane.b32.xlu0 %v1201, 108
    %v1284 = vpop.permute.xlu0 %1283
    %1285 = vrot.lane.b32.xlu0 %v1202, 108
    %v1286 = vpop.permute.xlu0 %1285
    %1287 = vrot.lane.b32.xlu0 %v1203, 108
    %v1288 = vpop.permute.xlu0 %1287
    %1289 = vrot.lane.b32.xlu0 %v1204, 108
    %v1290 = vpop.permute.xlu0 %1289
    %1291 = vrot.lane.b32.xlu0 %v1205, 108
    %v1292 = vpop.permute.xlu0 %1291
    %1293 = vrot.lane.b32.xlu0 %v1206, 108
    %v1294 = vpop.permute.xlu0 %1293
    %1295 = vrot.lane.b32.xlu0 %v1207, 108
    %v1296 = vpop.permute.xlu0 %1295
    %1297 = vrot.lane.b32.xlu0 %v1208, 108
    %v1298 = vpop.permute.xlu0 %1297
    %1299 = vrot.lane.b32.xlu0 %v1209, 108
    %v1300 = vpop.permute.xlu0 %1299
    %1301 = vrot.lane.b32.xlu0 %v1210, 108
    %v1302 = vpop.permute.xlu0 %1301
    %1303 = vrot.lane.b32.xlu0 %v1211, 108
    %v1304 = vpop.permute.xlu0 %1303
    %1305 = vrot.lane.b32.xlu0 %v1212, 108
    %v1306 = vpop.permute.xlu0 %1305
    %1307 = vrot.lane.b32.xlu0 %v1213, 108
    %v1308 = vpop.permute.xlu0 %1307
    %1309 = vrot.lane.b32.xlu0 %v1214, 108
    %v1310 = vpop.permute.xlu0 %1309
    %1311 = vrot.lane.b32.xlu0 %v1215, 108
    %v1312 = vpop.permute.xlu0 %1311
    %1313 = vrot.lane.b32.xlu0 %v1216, 108
    %v1314 = vpop.permute.xlu0 %1313
    %1315 = vrot.lane.b32.xlu0 %v1217, 108
    %v1316 = vpop.permute.xlu0 %1315
    %1317 = vrot.lane.b32.xlu0 %v1218, 108
    %v1318 = vpop.permute.xlu0 %1317
    %1319 = vrot.lane.b32.xlu0 %v1219, 108
    %v1320 = vpop.permute.xlu0 %1319
    %1321 = vrot.lane.b32.xlu0 %v1220, 108
    %v1322 = vpop.permute.xlu0 %1321
    %1323 = vrot.lane.b32.xlu0 %v1221, 108
    %v1324 = vpop.permute.xlu0 %1323
    %1325 = vrot.lane.b32.xlu0 %v1222, 108
    %v1326 = vpop.permute.xlu0 %1325
    %1327 = vrot.lane.b32.xlu0 %v1223, 108
    %v1328 = vpop.permute.xlu0 %1327
    %1329 = vrot.lane.b32.xlu0 %v1224, 108
    %v1330 = vpop.permute.xlu0 %1329
    %1331 = vrot.lane.b32.xlu0 %v1225, 108
    %v1332 = vpop.permute.xlu0 %1331
    %1333 = vrot.lane.b32.xlu0 %v1226, 108
    %v1334 = vpop.permute.xlu0 %1333
    %vm1371 = vcmask 1032032
    %1372 = vst.msk [vmem:[#allocation2] sm:$0xff] %vm1371, %v1264
    %1373 = vst.msk [vmem:[#allocation2 + $0x10] sm:$0xff] %vm1371, %v1266
    %1374 = vst.msk [vmem:[#allocation2 + $0x20] sm:$0xff] %vm1371, %v1268
    %1375 = vst.msk [vmem:[#allocation2 + $0x30] sm:$0xff] %vm1371, %v1270
    %1376 = vst.msk [vmem:[#allocation2 + $0x40] sm:$0xff] %vm1371, %v1272
    %1377 = vst.msk [vmem:[#allocation2 + $0x50] sm:$0xff] %vm1371, %v1274
    %1378 = vst.msk [vmem:[#allocation2 + $0x60] sm:$0xff] %vm1371, %v1276
    %1379 = vst.msk [vmem:[#allocation2 + $0x70] sm:$0xff] %vm1371, %v1278
    %1380 = vst.msk [vmem:[#allocation2 + $0x80] sm:$0xff] %vm1371, %v1280
    %1381 = vst.msk [vmem:[#allocation2 + $0x90] sm:$0xff] %vm1371, %v1282
    %1382 = vst.msk [vmem:[#allocation2 + $0xa0] sm:$0xff] %vm1371, %v1284
    %1383 = vst.msk [vmem:[#allocation2 + $0xb0] sm:$0xff] %vm1371, %v1286
    %1384 = vst.msk [vmem:[#allocation2 + $0xc0] sm:$0xff] %vm1371, %v1288
    %1385 = vst.msk [vmem:[#allocation2 + $0xd0] sm:$0xff] %vm1371, %v1290
    %1386 = vst.msk [vmem:[#allocation2 + $0xe0] sm:$0xff] %vm1371, %v1292
    %1387 = vst.msk [vmem:[#allocation2 + $0xf0] sm:$0xff] %vm1371, %v1294
    %1388 = vst.msk [vmem:[#allocation2 + $0x100] sm:$0xff] %vm1371, %v1296
    %1389 = vst.msk [vmem:[#allocation2 + $0x110] sm:$0xff] %vm1371, %v1298
    %1390 = vst.msk [vmem:[#allocation2 + $0x120] sm:$0xff] %vm1371, %v1300
    %1391 = vst.msk [vmem:[#allocation2 + $0x130] sm:$0xff] %vm1371, %v1302
    %1392 = vst.msk [vmem:[#allocation2 + $0x140] sm:$0xff] %vm1371, %v1304
    %1393 = vst.msk [vmem:[#allocation2 + $0x150] sm:$0xff] %vm1371, %v1306
    %1394 = vst.msk [vmem:[#allocation2 + $0x160] sm:$0xff] %vm1371, %v1308
    %1395 = vst.msk [vmem:[#allocation2 + $0x170] sm:$0xff] %vm1371, %v1310
    %1396 = vst.msk [vmem:[#allocation2 + $0x180] sm:$0xff] %vm1371, %v1312
    %1397 = vst.msk [vmem:[#allocation2 + $0x190] sm:$0xff] %vm1371, %v1314
    %1398 = vst.msk [vmem:[#allocation2 + $0x1a0] sm:$0xff] %vm1371, %v1316
    %1399 = vst.msk [vmem:[#allocation2 + $0x1b0] sm:$0xff] %vm1371, %v1318
    %1400 = vst.msk [vmem:[#allocation2 + $0x1c0] sm:$0xff] %vm1371, %v1320
    %1401 = vst.msk [vmem:[#allocation2 + $0x1d0] sm:$0xff] %vm1371, %v1322
    %1402 = vst.msk [vmem:[#allocation2 + $0x1e0] sm:$0xff] %vm1371, %v1324
    %1403 = vst.msk [vmem:[#allocation2 + $0x1f0] sm:$0xff] %vm1371, %v1326
    %1404 = vst.msk [vmem:[#allocation2 + $0x200] sm:$0xff] %vm1371, %v1328
    %1405 = vst.msk [vmem:[#allocation2 + $0x210] sm:$0xff] %vm1371, %v1330
    %1406 = vst.msk [vmem:[#allocation2 + $0x220] sm:$0xff] %vm1371, %v1332
    %vm1407 = vcmask 1029984
    %1408 = vst.msk [vmem:[#allocation2 + $0x230] sm:$0x3f] %vm1407, %v1334
    %v1409 = vld [vmem:[%s0 + $0x25] sm:$0xff]
    %v1410 = vld [vmem:[%s0 + $0x2d] sm:$0xff]
    %v1411 = vld [vmem:[%s0 + $0x35] sm:$0xff]
    %v1412 = vld [vmem:[%s0 + $0x3d] sm:$0xff]
    %v1413 = vld [vmem:[%s0 + $0x45] sm:$0xff]
    %v1414 = vld [vmem:[%s0 + $0x4d] sm:$0xff]
    %v1415 = vld [vmem:[%s0 + $0x55] sm:$0xff]
    %v1416 = vld [vmem:[%s0 + $0x5d] sm:$0xff]
    %v1417 = vld [vmem:[%s0 + $0x65] sm:$0xff]
    %v1418 = vld [vmem:[%s0 + $0x6d] sm:$0xff]
    %v1419 = vld [vmem:[%s0 + $0x75] sm:$0xff]
    %v1420 = vld [vmem:[%s0 + $0x7d] sm:$0xff]
    %v1421 = vld [vmem:[%s0 + $0x85] sm:$0xff]
    %v1422 = vld [vmem:[%s0 + $0x8d] sm:$0xff]
    %v1423 = vld [vmem:[%s0 + $0x95] sm:$0xff]
    %v1424 = vld [vmem:[%s0 + $0x9d] sm:$0xff]
    %v1425 = vld [vmem:[%s0 + $0xa5] sm:$0xff]
    %v1426 = vld [vmem:[%s0 + $0xad] sm:$0xff]
    %v1427 = vld [vmem:[%s0 + $0xb5] sm:$0xff]
    %v1428 = vld [vmem:[%s0 + $0xbd] sm:$0xff]
    %v1429 = vld [vmem:[%s0 + $0xc5] sm:$0xff]
    %v1430 = vld [vmem:[%s0 + $0xcd] sm:$0xff]
    %v1431 = vld [vmem:[%s0 + $0xd5] sm:$0xff]
    %v1432 = vld [vmem:[%s0 + $0xdd] sm:$0xff]
    %v1433 = vld [vmem:[%s0 + $0xe5] sm:$0xff]
    %v1434 = vld [vmem:[%s0 + $0xed] sm:$0xff]
    %v1435 = vld [vmem:[%s0 + $0xf5] sm:$0xff]
    %v1436 = vld [vmem:[%s0 + $0xfd] sm:$0xff]
    %v1437 = vld [vmem:[%s0 + $0x105] sm:$0xff]
    %v1438 = vld [vmem:[%s0 + $0x10d] sm:$0xff]
    %v1439 = vld [vmem:[%s0 + $0x115] sm:$0xff]
    %v1440 = vld [vmem:[%s0 + $0x11d] sm:$0xff]
    %v1441 = vld [vmem:[%s0 + $0x125] sm:$0xff]
    %v1442 = vld [vmem:[%s0 + $0x12d] sm:$0xff]
    %v1443 = vld [vmem:[%s0 + $0x135] sm:$0xff]
    %v1444 = vld [vmem:[%s0 + $0x13d] sm:$0x3f]
    %1481 = vrot.lane.b32.xlu0 %v1409, 126
    %v1482 = vpop.permute.xlu0 %1481
    %1483 = vrot.lane.b32.xlu0 %v1410, 126
    %v1484 = vpop.permute.xlu0 %1483
    %1485 = vrot.lane.b32.xlu0 %v1411, 126
    %v1486 = vpop.permute.xlu0 %1485
    %1487 = vrot.lane.b32.xlu0 %v1412, 126
    %v1488 = vpop.permute.xlu0 %1487
    %1489 = vrot.lane.b32.xlu0 %v1413, 126
    %v1490 = vpop.permute.xlu0 %1489
    %1491 = vrot.lane.b32.xlu0 %v1414, 126
    %v1492 = vpop.permute.xlu0 %1491
    %1493 = vrot.lane.b32.xlu0 %v1415, 126
    %v1494 = vpop.permute.xlu0 %1493
    %1495 = vrot.lane.b32.xlu0 %v1416, 126
    %v1496 = vpop.permute.xlu0 %1495
    %1497 = vrot.lane.b32.xlu0 %v1417, 126
    %v1498 = vpop.permute.xlu0 %1497
    %1499 = vrot.lane.b32.xlu0 %v1418, 126
    %v1500 = vpop.permute.xlu0 %1499
    %1501 = vrot.lane.b32.xlu0 %v1419, 126
    %v1502 = vpop.permute.xlu0 %1501
    %1503 = vrot.lane.b32.xlu0 %v1420, 126
    %v1504 = vpop.permute.xlu0 %1503
    %1505 = vrot.lane.b32.xlu0 %v1421, 126
    %v1506 = vpop.permute.xlu0 %1505
    %1507 = vrot.lane.b32.xlu0 %v1422, 126
    %v1508 = vpop.permute.xlu0 %1507
    %1509 = vrot.lane.b32.xlu0 %v1423, 126
    %v1510 = vpop.permute.xlu0 %1509
    %1511 = vrot.lane.b32.xlu0 %v1424, 126
    %v1512 = vpop.permute.xlu0 %1511
    %1513 = vrot.lane.b32.xlu0 %v1425, 126
    %v1514 = vpop.permute.xlu0 %1513
    %1515 = vrot.lane.b32.xlu0 %v1426, 126
    %v1516 = vpop.permute.xlu0 %1515
    %1517 = vrot.lane.b32.xlu0 %v1427, 126
    %v1518 = vpop.permute.xlu0 %1517
    %1519 = vrot.lane.b32.xlu0 %v1428, 126
    %v1520 = vpop.permute.xlu0 %1519
    %1521 = vrot.lane.b32.xlu0 %v1429, 126
    %v1522 = vpop.permute.xlu0 %1521
    %1523 = vrot.lane.b32.xlu0 %v1430, 126
    %v1524 = vpop.permute.xlu0 %1523
    %1525 = vrot.lane.b32.xlu0 %v1431, 126
    %v1526 = vpop.permute.xlu0 %1525
    %1527 = vrot.lane.b32.xlu0 %v1432, 126
    %v1528 = vpop.permute.xlu0 %1527
    %1529 = vrot.lane.b32.xlu0 %v1433, 126
    %v1530 = vpop.permute.xlu0 %1529
    %1531 = vrot.lane.b32.xlu0 %v1434, 126
    %v1532 = vpop.permute.xlu0 %1531
    %1533 = vrot.lane.b32.xlu0 %v1435, 126
    %v1534 = vpop.permute.xlu0 %1533
    %1535 = vrot.lane.b32.xlu0 %v1436, 126
    %v1536 = vpop.permute.xlu0 %1535
    %1537 = vrot.lane.b32.xlu0 %v1437, 126
    %v1538 = vpop.permute.xlu0 %1537
    %1539 = vrot.lane.b32.xlu0 %v1438, 126
    %v1540 = vpop.permute.xlu0 %1539
    %1541 = vrot.lane.b32.xlu0 %v1439, 126
    %v1542 = vpop.permute.xlu0 %1541
    %1543 = vrot.lane.b32.xlu0 %v1440, 126
    %v1544 = vpop.permute.xlu0 %1543
    %1545 = vrot.lane.b32.xlu0 %v1441, 126
    %v1546 = vpop.permute.xlu0 %1545
    %1547 = vrot.lane.b32.xlu0 %v1442, 126
    %v1548 = vpop.permute.xlu0 %1547
    %1549 = vrot.lane.b32.xlu0 %v1443, 126
    %v1550 = vpop.permute.xlu0 %1549
    %1551 = vrot.lane.b32.xlu0 %v1444, 126
    %v1552 = vpop.permute.xlu0 %1551
    %vm1589 = vcmask 1048560
    %1590 = vst.msk [vmem:[#allocation2] sm:$0xff] %vm1589, %v1482
    %vm1591 = vcmask 130048
    %1592 = vst.msk [vmem:[#allocation2 + $0x8] sm:$0xff] %vm1591, %v1482
    %1593 = vst.msk [vmem:[#allocation2 + $0x10] sm:$0xff] %vm1589, %v1484
    %1594 = vst.msk [vmem:[#allocation2 + $0x18] sm:$0xff] %vm1591, %v1484
    %1595 = vst.msk [vmem:[#allocation2 + $0x20] sm:$0xff] %vm1589, %v1486
    %1596 = vst.msk [vmem:[#allocation2 + $0x28] sm:$0xff] %vm1591, %v1486
    %1597 = vst.msk [vmem:[#allocation2 + $0x30] sm:$0xff] %vm1589, %v1488
    %1598 = vst.msk [vmem:[#allocation2 + $0x38] sm:$0xff] %vm1591, %v1488
    %1599 = vst.msk [vmem:[#allocation2 + $0x40] sm:$0xff] %vm1589, %v1490
    %1600 = vst.msk [vmem:[#allocation2 + $0x48] sm:$0xff] %vm1591, %v1490
    %1601 = vst.msk [vmem:[#allocation2 + $0x50] sm:$0xff] %vm1589, %v1492
    %1602 = vst.msk [vmem:[#allocation2 + $0x58] sm:$0xff] %vm1591, %v1492
    %1603 = vst.msk [vmem:[#allocation2 + $0x60] sm:$0xff] %vm1589, %v1494
    %1604 = vst.msk [vmem:[#allocation2 + $0x68] sm:$0xff] %vm1591, %v1494
    %1605 = vst.msk [vmem:[#allocation2 + $0x70] sm:$0xff] %vm1589, %v1496
    %1606 = vst.msk [vmem:[#allocation2 + $0x78] sm:$0xff] %vm1591, %v1496
    %1607 = vst.msk [vmem:[#allocation2 + $0x80] sm:$0xff] %vm1589, %v1498
    %1608 = vst.msk [vmem:[#allocation2 + $0x88] sm:$0xff] %vm1591, %v1498
    %1609 = vst.msk [vmem:[#allocation2 + $0x90] sm:$0xff] %vm1589, %v1500
    %1610 = vst.msk [vmem:[#allocation2 + $0x98] sm:$0xff] %vm1591, %v1500
    %1611 = vst.msk [vmem:[#allocation2 + $0xa0] sm:$0xff] %vm1589, %v1502
    %1612 = vst.msk [vmem:[#allocation2 + $0xa8] sm:$0xff] %vm1591, %v1502
    %1613 = vst.msk [vmem:[#allocation2 + $0xb0] sm:$0xff] %vm1589, %v1504
    %1614 = vst.msk [vmem:[#allocation2 + $0xb8] sm:$0xff] %vm1591, %v1504
    %1615 = vst.msk [vmem:[#allocation2 + $0xc0] sm:$0xff] %vm1589, %v1506
    %1616 = vst.msk [vmem:[#allocation2 + $0xc8] sm:$0xff] %vm1591, %v1506
    %1617 = vst.msk [vmem:[#allocation2 + $0xd0] sm:$0xff] %vm1589, %v1508
    %1618 = vst.msk [vmem:[#allocation2 + $0xd8] sm:$0xff] %vm1591, %v1508
    %1619 = vst.msk [vmem:[#allocation2 + $0xe0] sm:$0xff] %vm1589, %v1510
    %1620 = vst.msk [vmem:[#allocation2 + $0xe8] sm:$0xff] %vm1591, %v1510
    %1621 = vst.msk [vmem:[#allocation2 + $0xf0] sm:$0xff] %vm1589, %v1512
    %1622 = vst.msk [vmem:[#allocation2 + $0xf8] sm:$0xff] %vm1591, %v1512
    %1623 = vst.msk [vmem:[#allocation2 + $0x100] sm:$0xff] %vm1589, %v1514
    %1624 = vst.msk [vmem:[#allocation2 + $0x108] sm:$0xff] %vm1591, %v1514
    %1625 = vst.msk [vmem:[#allocation2 + $0x110] sm:$0xff] %vm1589, %v1516
    %1626 = vst.msk [vmem:[#allocation2 + $0x118] sm:$0xff] %vm1591, %v1516
    %1627 = vst.msk [vmem:[#allocation2 + $0x120] sm:$0xff] %vm1589, %v1518
    %1628 = vst.msk [vmem:[#allocation2 + $0x128] sm:$0xff] %vm1591, %v1518
    %1629 = vst.msk [vmem:[#allocation2 + $0x130] sm:$0xff] %vm1589, %v1520
    %1630 = vst.msk [vmem:[#allocation2 + $0x138] sm:$0xff] %vm1591, %v1520
    %1631 = vst.msk [vmem:[#allocation2 + $0x140] sm:$0xff] %vm1589, %v1522
    %1632 = vst.msk [vmem:[#allocation2 + $0x148] sm:$0xff] %vm1591, %v1522
    %1633 = vst.msk [vmem:[#allocation2 + $0x150] sm:$0xff] %vm1589, %v1524
    %1634 = vst.msk [vmem:[#allocation2 + $0x158] sm:$0xff] %vm1591, %v1524
    %1635 = vst.msk [vmem:[#allocation2 + $0x160] sm:$0xff] %vm1589, %v1526
    %1636 = vst.msk [vmem:[#allocation2 + $0x168] sm:$0xff] %vm1591, %v1526
    %1637 = vst.msk [vmem:[#allocation2 + $0x170] sm:$0xff] %vm1589, %v1528
    %1638 = vst.msk [vmem:[#allocation2 + $0x178] sm:$0xff] %vm1591, %v1528
    %1639 = vst.msk [vmem:[#allocation2 + $0x180] sm:$0xff] %vm1589, %v1530
    %1640 = vst.msk [vmem:[#allocation2 + $0x188] sm:$0xff] %vm1591, %v1530
    %1641 = vst.msk [vmem:[#allocation2 + $0x190] sm:$0xff] %vm1589, %v1532
    %1642 = vst.msk [vmem:[#allocation2 + $0x198] sm:$0xff] %vm1591, %v1532
    %1643 = vst.msk [vmem:[#allocation2 + $0x1a0] sm:$0xff] %vm1589, %v1534
    %1644 = vst.msk [vmem:[#allocation2 + $0x1a8] sm:$0xff] %vm1591, %v1534
    %1645 = vst.msk [vmem:[#allocation2 + $0x1b0] sm:$0xff] %vm1589, %v1536
    %1646 = vst.msk [vmem:[#allocation2 + $0x1b8] sm:$0xff] %vm1591, %v1536
    %1647 = vst.msk [vmem:[#allocation2 + $0x1c0] sm:$0xff] %vm1589, %v1538
    %1648 = vst.msk [vmem:[#allocation2 + $0x1c8] sm:$0xff] %vm1591, %v1538
    %1649 = vst.msk [vmem:[#allocation2 + $0x1d0] sm:$0xff] %vm1589, %v1540
    %1650 = vst.msk [vmem:[#allocation2 + $0x1d8] sm:$0xff] %vm1591, %v1540
    %1651 = vst.msk [vmem:[#allocation2 + $0x1e0] sm:$0xff] %vm1589, %v1542
    %1652 = vst.msk [vmem:[#allocation2 + $0x1e8] sm:$0xff] %vm1591, %v1542
    %1653 = vst.msk [vmem:[#allocation2 + $0x1f0] sm:$0xff] %vm1589, %v1544
    %1654 = vst.msk [vmem:[#allocation2 + $0x1f8] sm:$0xff] %vm1591, %v1544
    %1655 = vst.msk [vmem:[#allocation2 + $0x200] sm:$0xff] %vm1589, %v1546
    %1656 = vst.msk [vmem:[#allocation2 + $0x208] sm:$0xff] %vm1591, %v1546
    %1657 = vst.msk [vmem:[#allocation2 + $0x210] sm:$0xff] %vm1589, %v1548
    %1658 = vst.msk [vmem:[#allocation2 + $0x218] sm:$0xff] %vm1591, %v1548
    %1659 = vst.msk [vmem:[#allocation2 + $0x220] sm:$0xff] %vm1589, %v1550
    %1660 = vst.msk [vmem:[#allocation2 + $0x228] sm:$0xff] %vm1591, %v1550
    %vm1661 = vcmask 1046512
    %1662 = vst.msk [vmem:[#allocation2 + $0x230] sm:$0x3f] %vm1661, %v1552
    %vm1663 = vcmask 128000
    %1664 = vst.msk [vmem:[#allocation2 + $0x238] sm:$0x3f] %vm1663, %v1552
    %v1665 = vld [vmem:[%s0 + $0x26] sm:$0xff]
    %v1666 = vld [vmem:[%s0 + $0x2e] sm:$0xff]
    %v1667 = vld [vmem:[%s0 + $0x36] sm:$0xff]
    %v1668 = vld [vmem:[%s0 + $0x3e] sm:$0xff]
    %v1669 = vld [vmem:[%s0 + $0x46] sm:$0xff]
    %v1670 = vld [vmem:[%s0 + $0x4e] sm:$0xff]
    %v1671 = vld [vmem:[%s0 + $0x56] sm:$0xff]
    %v1672 = vld [vmem:[%s0 + $0x5e] sm:$0xff]
    %v1673 = vld [vmem:[%s0 + $0x66] sm:$0xff]
    %v1674 = vld [vmem:[%s0 + $0x6e] sm:$0xff]
    %v1675 = vld [vmem:[%s0 + $0x76] sm:$0xff]
    %v1676 = vld [vmem:[%s0 + $0x7e] sm:$0xff]
    %v1677 = vld [vmem:[%s0 + $0x86] sm:$0xff]
    %v1678 = vld [vmem:[%s0 + $0x8e] sm:$0xff]
    %v1679 = vld [vmem:[%s0 + $0x96] sm:$0xff]
    %v1680 = vld [vmem:[%s0 + $0x9e] sm:$0xff]
    %v1681 = vld [vmem:[%s0 + $0xa6] sm:$0xff]
    %v1682 = vld [vmem:[%s0 + $0xae] sm:$0xff]
    %v1683 = vld [vmem:[%s0 + $0xb6] sm:$0xff]
    %v1684 = vld [vmem:[%s0 + $0xbe] sm:$0xff]
    %v1685 = vld [vmem:[%s0 + $0xc6] sm:$0xff]
    %v1686 = vld [vmem:[%s0 + $0xce] sm:$0xff]
    %v1687 = vld [vmem:[%s0 + $0xd6] sm:$0xff]
    %v1688 = vld [vmem:[%s0 + $0xde] sm:$0xff]
    %v1689 = vld [vmem:[%s0 + $0xe6] sm:$0xff]
    %v1690 = vld [vmem:[%s0 + $0xee] sm:$0xff]
    %v1691 = vld [vmem:[%s0 + $0xf6] sm:$0xff]
    %v1692 = vld [vmem:[%s0 + $0xfe] sm:$0xff]
    %v1693 = vld [vmem:[%s0 + $0x106] sm:$0xff]
    %v1694 = vld [vmem:[%s0 + $0x10e] sm:$0xff]
    %v1695 = vld [vmem:[%s0 + $0x116] sm:$0xff]
    %v1696 = vld [vmem:[%s0 + $0x11e] sm:$0xff]
    %v1697 = vld [vmem:[%s0 + $0x126] sm:$0xff]
    %v1698 = vld [vmem:[%s0 + $0x12e] sm:$0xff]
    %v1699 = vld [vmem:[%s0 + $0x136] sm:$0xff]
    %v1700 = vld [vmem:[%s0 + $0x13e] sm:$0x3f]
    %1737 = vrot.lane.b32.xlu0 %v1665, 16
    %v1738 = vpop.permute.xlu0 %1737
    %1739 = vrot.lane.b32.xlu0 %v1666, 16
    %v1740 = vpop.permute.xlu0 %1739
    %1741 = vrot.lane.b32.xlu0 %v1667, 16
    %v1742 = vpop.permute.xlu0 %1741
    %1743 = vrot.lane.b32.xlu0 %v1668, 16
    %v1744 = vpop.permute.xlu0 %1743
    %1745 = vrot.lane.b32.xlu0 %v1669, 16
    %v1746 = vpop.permute.xlu0 %1745
    %1747 = vrot.lane.b32.xlu0 %v1670, 16
    %v1748 = vpop.permute.xlu0 %1747
    %1749 = vrot.lane.b32.xlu0 %v1671, 16
    %v1750 = vpop.permute.xlu0 %1749
    %1751 = vrot.lane.b32.xlu0 %v1672, 16
    %v1752 = vpop.permute.xlu0 %1751
    %1753 = vrot.lane.b32.xlu0 %v1673, 16
    %v1754 = vpop.permute.xlu0 %1753
    %1755 = vrot.lane.b32.xlu0 %v1674, 16
    %v1756 = vpop.permute.xlu0 %1755
    %1757 = vrot.lane.b32.xlu0 %v1675, 16
    %v1758 = vpop.permute.xlu0 %1757
    %1759 = vrot.lane.b32.xlu0 %v1676, 16
    %v1760 = vpop.permute.xlu0 %1759
    %1761 = vrot.lane.b32.xlu0 %v1677, 16
    %v1762 = vpop.permute.xlu0 %1761
    %1763 = vrot.lane.b32.xlu0 %v1678, 16
    %v1764 = vpop.permute.xlu0 %1763
    %1765 = vrot.lane.b32.xlu0 %v1679, 16
    %v1766 = vpop.permute.xlu0 %1765
    %1767 = vrot.lane.b32.xlu0 %v1680, 16
    %v1768 = vpop.permute.xlu0 %1767
    %1769 = vrot.lane.b32.xlu0 %v1681, 16
    %v1770 = vpop.permute.xlu0 %1769
    %1771 = vrot.lane.b32.xlu0 %v1682, 16
    %v1772 = vpop.permute.xlu0 %1771
    %1773 = vrot.lane.b32.xlu0 %v1683, 16
    %v1774 = vpop.permute.xlu0 %1773
    %1775 = vrot.lane.b32.xlu0 %v1684, 16
    %v1776 = vpop.permute.xlu0 %1775
    %1777 = vrot.lane.b32.xlu0 %v1685, 16
    %v1778 = vpop.permute.xlu0 %1777
    %1779 = vrot.lane.b32.xlu0 %v1686, 16
    %v1780 = vpop.permute.xlu0 %1779
    %1781 = vrot.lane.b32.xlu0 %v1687, 16
    %v1782 = vpop.permute.xlu0 %1781
    %1783 = vrot.lane.b32.xlu0 %v1688, 16
    %v1784 = vpop.permute.xlu0 %1783
    %1785 = vrot.lane.b32.xlu0 %v1689, 16
    %v1786 = vpop.permute.xlu0 %1785
    %1787 = vrot.lane.b32.xlu0 %v1690, 16
    %v1788 = vpop.permute.xlu0 %1787
    %1789 = vrot.lane.b32.xlu0 %v1691, 16
    %v1790 = vpop.permute.xlu0 %1789
    %1791 = vrot.lane.b32.xlu0 %v1692, 16
    %v1792 = vpop.permute.xlu0 %1791
    %1793 = vrot.lane.b32.xlu0 %v1693, 16
    %v1794 = vpop.permute.xlu0 %1793
    %1795 = vrot.lane.b32.xlu0 %v1694, 16
    %v1796 = vpop.permute.xlu0 %1795
    %1797 = vrot.lane.b32.xlu0 %v1695, 16
    %v1798 = vpop.permute.xlu0 %1797
    %1799 = vrot.lane.b32.xlu0 %v1696, 16
    %v1800 = vpop.permute.xlu0 %1799
    %1801 = vrot.lane.b32.xlu0 %v1697, 16
    %v1802 = vpop.permute.xlu0 %1801
    %1803 = vrot.lane.b32.xlu0 %v1698, 16
    %v1804 = vpop.permute.xlu0 %1803
    %1805 = vrot.lane.b32.xlu0 %v1699, 16
    %v1806 = vpop.permute.xlu0 %1805
    %1807 = vrot.lane.b32.xlu0 %v1700, 16
    %v1808 = vpop.permute.xlu0 %1807
    %vm1845 = vcmask 277632
    %1846 = vst.msk [vmem:[#allocation2 + $0x8] sm:$0xff] %vm1845, %v1738
    %1847 = vst.msk [vmem:[#allocation2 + $0x18] sm:$0xff] %vm1845, %v1740
    %1848 = vst.msk [vmem:[#allocation2 + $0x28] sm:$0xff] %vm1845, %v1742
    %1849 = vst.msk [vmem:[#allocation2 + $0x38] sm:$0xff] %vm1845, %v1744
    %1850 = vst.msk [vmem:[#allocation2 + $0x48] sm:$0xff] %vm1845, %v1746
    %1851 = vst.msk [vmem:[#allocation2 + $0x58] sm:$0xff] %vm1845, %v1748
    %1852 = vst.msk [vmem:[#allocation2 + $0x68] sm:$0xff] %vm1845, %v1750
    %1853 = vst.msk [vmem:[#allocation2 + $0x78] sm:$0xff] %vm1845, %v1752
    %1854 = vst.msk [vmem:[#allocation2 + $0x88] sm:$0xff] %vm1845, %v1754
    %1855 = vst.msk [vmem:[#allocation2 + $0x98] sm:$0xff] %vm1845, %v1756
    %1856 = vst.msk [vmem:[#allocation2 + $0xa8] sm:$0xff] %vm1845, %v1758
    %1857 = vst.msk [vmem:[#allocation2 + $0xb8] sm:$0xff] %vm1845, %v1760
    %1858 = vst.msk [vmem:[#allocation2 + $0xc8] sm:$0xff] %vm1845, %v1762
    %1859 = vst.msk [vmem:[#allocation2 + $0xd8] sm:$0xff] %vm1845, %v1764
    %1860 = vst.msk [vmem:[#allocation2 + $0xe8] sm:$0xff] %vm1845, %v1766
    %1861 = vst.msk [vmem:[#allocation2 + $0xf8] sm:$0xff] %vm1845, %v1768
    %1862 = vst.msk [vmem:[#allocation2 + $0x108] sm:$0xff] %vm1845, %v1770
    %1863 = vst.msk [vmem:[#allocation2 + $0x118] sm:$0xff] %vm1845, %v1772
    %1864 = vst.msk [vmem:[#allocation2 + $0x128] sm:$0xff] %vm1845, %v1774
    %1865 = vst.msk [vmem:[#allocation2 + $0x138] sm:$0xff] %vm1845, %v1776
    %1866 = vst.msk [vmem:[#allocation2 + $0x148] sm:$0xff] %vm1845, %v1778
    %1867 = vst.msk [vmem:[#allocation2 + $0x158] sm:$0xff] %vm1845, %v1780
    %1868 = vst.msk [vmem:[#allocation2 + $0x168] sm:$0xff] %vm1845, %v1782
    %1869 = vst.msk [vmem:[#allocation2 + $0x178] sm:$0xff] %vm1845, %v1784
    %1870 = vst.msk [vmem:[#allocation2 + $0x188] sm:$0xff] %vm1845, %v1786
    %1871 = vst.msk [vmem:[#allocation2 + $0x198] sm:$0xff] %vm1845, %v1788
    %1872 = vst.msk [vmem:[#allocation2 + $0x1a8] sm:$0xff] %vm1845, %v1790
    %1873 = vst.msk [vmem:[#allocation2 + $0x1b8] sm:$0xff] %vm1845, %v1792
    %1874 = vst.msk [vmem:[#allocation2 + $0x1c8] sm:$0xff] %vm1845, %v1794
    %1875 = vst.msk [vmem:[#allocation2 + $0x1d8] sm:$0xff] %vm1845, %v1796
    %1876 = vst.msk [vmem:[#allocation2 + $0x1e8] sm:$0xff] %vm1845, %v1798
    %1877 = vst.msk [vmem:[#allocation2 + $0x1f8] sm:$0xff] %vm1845, %v1800
    %1878 = vst.msk [vmem:[#allocation2 + $0x208] sm:$0xff] %vm1845, %v1802
    %1879 = vst.msk [vmem:[#allocation2 + $0x218] sm:$0xff] %vm1845, %v1804
    %1880 = vst.msk [vmem:[#allocation2 + $0x228] sm:$0xff] %vm1845, %v1806
    %vm1881 = vcmask 275584
    %1882 = vst.msk [vmem:[#allocation2 + $0x238] sm:$0x3f] %vm1881, %v1808
    %s1883 = scalar_lea.vmem %s0, 328
    %v1884 = vld [vmem:[%s1883] sm:$0xff]
    %v1885 = vld [vmem:[%s1883 + $0x8] sm:$0xff]
    %v1886 = vld [vmem:[%s1883 + $0x10] sm:$0xff]
    %v1887 = vld [vmem:[%s1883 + $0x18] sm:$0xff]
    %v1888 = vld [vmem:[%s1883 + $0x20] sm:$0xff]
    %v1889 = vld [vmem:[%s1883 + $0x28] sm:$0xff]
    %v1890 = vld [vmem:[%s1883 + $0x30] sm:$0xff]
    %v1891 = vld [vmem:[%s1883 + $0x38] sm:$0xff]
    %v1892 = vld [vmem:[%s1883 + $0x40] sm:$0xff]
    %v1893 = vld [vmem:[%s1883 + $0x48] sm:$0xff]
    %v1894 = vld [vmem:[%s1883 + $0x50] sm:$0xff]
    %v1895 = vld [vmem:[%s1883 + $0x58] sm:$0xff]
    %v1896 = vld [vmem:[%s1883 + $0x60] sm:$0xff]
    %v1897 = vld [vmem:[%s1883 + $0x68] sm:$0xff]
    %v1898 = vld [vmem:[%s1883 + $0x70] sm:$0xff]
    %v1899 = vld [vmem:[%s1883 + $0x78] sm:$0xff]
    %v1900 = vld [vmem:[%s1883 + $0x80] sm:$0xff]
    %v1901 = vld [vmem:[%s1883 + $0x88] sm:$0xff]
    %v1902 = vld [vmem:[%s1883 + $0x90] sm:$0xff]
    %v1903 = vld [vmem:[%s1883 + $0x98] sm:$0xff]
    %v1904 = vld [vmem:[%s1883 + $0xa0] sm:$0xff]
    %v1905 = vld [vmem:[%s1883 + $0xa8] sm:$0xff]
    %v1906 = vld [vmem:[%s1883 + $0xb0] sm:$0xff]
    %v1907 = vld [vmem:[%s1883 + $0xb8] sm:$0xff]
    %v1908 = vld [vmem:[%s1883 + $0xc0] sm:$0xff]
    %v1909 = vld [vmem:[%s1883 + $0xc8] sm:$0xff]
    %v1910 = vld [vmem:[%s1883 + $0xd0] sm:$0xff]
    %v1911 = vld [vmem:[%s1883 + $0xd8] sm:$0xff]
    %v1912 = vld [vmem:[%s1883 + $0xe0] sm:$0xff]
    %v1913 = vld [vmem:[%s1883 + $0xe8] sm:$0xff]
    %v1914 = vld [vmem:[%s1883 + $0xf0] sm:$0xff]
    %v1915 = vld [vmem:[%s1883 + $0xf8] sm:$0xff]
    %v1916 = vld [vmem:[%s1883 + $0x100] sm:$0xff]
    %v1917 = vld [vmem:[%s1883 + $0x108] sm:$0xff]
    %v1918 = vld [vmem:[%s1883 + $0x110] sm:$0xff]
    %v1919 = vld [vmem:[%s1883 + $0x118] sm:$0x3f]
    %vm1956 = vcmask 1045504
    %v1957 = vrot.slane %v1884, 2
    %v1958 = vrot.slane %v1885, 2
    %v1959 = vsel %vm1956, %v1957, %v1958
    %v1960 = vrot.slane %v1886, 2
    %v1961 = vsel %vm1956, %v1958, %v1960
    %v1962 = vrot.slane %v1887, 2
    %v1963 = vsel %vm1956, %v1960, %v1962
    %v1964 = vrot.slane %v1888, 2
    %v1965 = vsel %vm1956, %v1962, %v1964
    %v1966 = vrot.slane %v1889, 2
    %v1967 = vsel %vm1956, %v1964, %v1966
    %v1968 = vrot.slane %v1890, 2
    %v1969 = vsel %vm1956, %v1966, %v1968
    %v1970 = vrot.slane %v1891, 2
    %v1971 = vsel %vm1956, %v1968, %v1970
    %v1972 = vrot.slane %v1892, 2
    %v1973 = vsel %vm1956, %v1970, %v1972
    %v1974 = vrot.slane %v1893, 2
    %v1975 = vsel %vm1956, %v1972, %v1974
    %v1976 = vrot.slane %v1894, 2
    %v1977 = vsel %vm1956, %v1974, %v1976
    %v1978 = vrot.slane %v1895, 2
    %v1979 = vsel %vm1956, %v1976, %v1978
    %v1980 = vrot.slane %v1896, 2
    %v1981 = vsel %vm1956, %v1978, %v1980
    %v1982 = vrot.slane %v1897, 2
    %v1983 = vsel %vm1956, %v1980, %v1982
    %v1984 = vrot.slane %v1898, 2
    %v1985 = vsel %vm1956, %v1982, %v1984
    %v1986 = vrot.slane %v1899, 2
    %v1987 = vsel %vm1956, %v1984, %v1986
    %v1988 = vrot.slane %v1900, 2
    %v1989 = vsel %vm1956, %v1986, %v1988
    %v1990 = vrot.slane %v1901, 2
    %v1991 = vsel %vm1956, %v1988, %v1990
    %v1992 = vrot.slane %v1902, 2
    %v1993 = vsel %vm1956, %v1990, %v1992
    %v1994 = vrot.slane %v1903, 2
    %v1995 = vsel %vm1956, %v1992, %v1994
    %v1996 = vrot.slane %v1904, 2
    %v1997 = vsel %vm1956, %v1994, %v1996
    %v1998 = vrot.slane %v1905, 2
    %v1999 = vsel %vm1956, %v1996, %v1998
    %v2000 = vrot.slane %v1906, 2
    %v2001 = vsel %vm1956, %v1998, %v2000
    %v2002 = vrot.slane %v1907, 2
    %v2003 = vsel %vm1956, %v2000, %v2002
    %v2004 = vrot.slane %v1908, 2
    %v2005 = vsel %vm1956, %v2002, %v2004
    %v2006 = vrot.slane %v1909, 2
    %v2007 = vsel %vm1956, %v2004, %v2006
    %v2008 = vrot.slane %v1910, 2
    %v2009 = vsel %vm1956, %v2006, %v2008
    %v2010 = vrot.slane %v1911, 2
    %v2011 = vsel %vm1956, %v2008, %v2010
    %v2012 = vrot.slane %v1912, 2
    %v2013 = vsel %vm1956, %v2010, %v2012
    %v2014 = vrot.slane %v1913, 2
    %v2015 = vsel %vm1956, %v2012, %v2014
    %v2016 = vrot.slane %v1914, 2
    %v2017 = vsel %vm1956, %v2014, %v2016
    %v2018 = vrot.slane %v1915, 2
    %v2019 = vsel %vm1956, %v2016, %v2018
    %v2020 = vrot.slane %v1916, 2
    %v2021 = vsel %vm1956, %v2018, %v2020
    %v2022 = vrot.slane %v1917, 2
    %v2023 = vsel %vm1956, %v2020, %v2022
    %v2024 = vrot.slane %v1918, 2
    %v2025 = vsel %vm1956, %v2022, %v2024
    %v2026 = vrot.slane %v1919, 2
    %v2027 = vsel %vm1956, %v2024, %v2026
    %vm2065 = vcmask 146438
    %2066 = vst.msk [vmem:[#allocation2 + $0x230] sm:$0xc0] %vm2065, %v1957
    %2067 = vst.msk [vmem:[#allocation2 + $0x240] sm:$0xff] %vm63, %v1959
    %2068 = vst.msk [vmem:[#allocation2 + $0x250] sm:$0xff] %vm63, %v1961
    %2069 = vst.msk [vmem:[#allocation2 + $0x260] sm:$0xff] %vm63, %v1963
    %2070 = vst.msk [vmem:[#allocation2 + $0x270] sm:$0xff] %vm63, %v1965
    %2071 = vst.msk [vmem:[#allocation2 + $0x280] sm:$0xff] %vm63, %v1967
    %2072 = vst.msk [vmem:[#allocation2 + $0x290] sm:$0xff] %vm63, %v1969
    %2073 = vst.msk [vmem:[#allocation2 + $0x2a0] sm:$0xff] %vm63, %v1971
    %2074 = vst.msk [vmem:[#allocation2 + $0x2b0] sm:$0xff] %vm63, %v1973
    %2075 = vst.msk [vmem:[#allocation2 + $0x2c0] sm:$0xff] %vm63, %v1975
    %2076 = vst.msk [vmem:[#allocation2 + $0x2d0] sm:$0xff] %vm63, %v1977
    %2077 = vst.msk [vmem:[#allocation2 + $0x2e0] sm:$0xff] %vm63, %v1979
    %2078 = vst.msk [vmem:[#allocation2 + $0x2f0] sm:$0xff] %vm63, %v1981
    %2079 = vst.msk [vmem:[#allocation2 + $0x300] sm:$0xff] %vm63, %v1983
    %2080 = vst.msk [vmem:[#allocation2 + $0x310] sm:$0xff] %vm63, %v1985
    %2081 = vst.msk [vmem:[#allocation2 + $0x320] sm:$0xff] %vm63, %v1987
    %2082 = vst.msk [vmem:[#allocation2 + $0x330] sm:$0xff] %vm63, %v1989
    %2083 = vst.msk [vmem:[#allocation2 + $0x340] sm:$0xff] %vm63, %v1991
    %2084 = vst.msk [vmem:[#allocation2 + $0x350] sm:$0xff] %vm63, %v1993
    %2085 = vst.msk [vmem:[#allocation2 + $0x360] sm:$0xff] %vm63, %v1995
    %2086 = vst.msk [vmem:[#allocation2 + $0x370] sm:$0xff] %vm63, %v1997
    %2087 = vst.msk [vmem:[#allocation2 + $0x380] sm:$0xff] %vm63, %v1999
    %2088 = vst.msk [vmem:[#allocation2 + $0x390] sm:$0xff] %vm63, %v2001
    %2089 = vst.msk [vmem:[#allocation2 + $0x3a0] sm:$0xff] %vm63, %v2003
    %2090 = vst.msk [vmem:[#allocation2 + $0x3b0] sm:$0xff] %vm63, %v2005
    %2091 = vst.msk [vmem:[#allocation2 + $0x3c0] sm:$0xff] %vm63, %v2007
    %2092 = vst.msk [vmem:[#allocation2 + $0x3d0] sm:$0xff] %vm63, %v2009
    %2093 = vst.msk [vmem:[#allocation2 + $0x3e0] sm:$0xff] %vm63, %v2011
    %2094 = vst.msk [vmem:[#allocation2 + $0x3f0] sm:$0xff] %vm63, %v2013
    %2095 = vst.msk [vmem:[#allocation2 + $0x400] sm:$0xff] %vm63, %v2015
    %2096 = vst.msk [vmem:[#allocation2 + $0x410] sm:$0xff] %vm63, %v2017
    %2097 = vst.msk [vmem:[#allocation2 + $0x420] sm:$0xff] %vm63, %v2019
    %2098 = vst.msk [vmem:[#allocation2 + $0x430] sm:$0xff] %vm63, %v2021
    %2099 = vst.msk [vmem:[#allocation2 + $0x440] sm:$0xff] %vm63, %v2023
    %2100 = vst.msk [vmem:[#allocation2 + $0x450] sm:$0xff] %vm63, %v2025
    %2101 = vst.msk [vmem:[#allocation2 + $0x460] sm:$0xff] %vm63, %v2027
    %vm2102 = vcmask 142336
    %2103 = vst.msk [vmem:[#allocation2 + $0x470] sm:$0xf] %vm2102, %v2026
    %v2104 = vld [vmem:[%s1883 + $0x1] sm:$0xff]
    %v2105 = vld [vmem:[%s1883 + $0x9] sm:$0xff]
    %v2106 = vld [vmem:[%s1883 + $0x11] sm:$0xff]
    %v2107 = vld [vmem:[%s1883 + $0x19] sm:$0xff]
    %v2108 = vld [vmem:[%s1883 + $0x21] sm:$0xff]
    %v2109 = vld [vmem:[%s1883 + $0x29] sm:$0xff]
    %v2110 = vld [vmem:[%s1883 + $0x31] sm:$0xff]
    %v2111 = vld [vmem:[%s1883 + $0x39] sm:$0xff]
    %v2112 = vld [vmem:[%s1883 + $0x41] sm:$0xff]
    %v2113 = vld [vmem:[%s1883 + $0x49] sm:$0xff]
    %v2114 = vld [vmem:[%s1883 + $0x51] sm:$0xff]
    %v2115 = vld [vmem:[%s1883 + $0x59] sm:$0xff]
    %v2116 = vld [vmem:[%s1883 + $0x61] sm:$0xff]
    %v2117 = vld [vmem:[%s1883 + $0x69] sm:$0xff]
    %v2118 = vld [vmem:[%s1883 + $0x71] sm:$0xff]
    %v2119 = vld [vmem:[%s1883 + $0x79] sm:$0xff]
    %v2120 = vld [vmem:[%s1883 + $0x81] sm:$0xff]
    %v2121 = vld [vmem:[%s1883 + $0x89] sm:$0xff]
    %v2122 = vld [vmem:[%s1883 + $0x91] sm:$0xff]
    %v2123 = vld [vmem:[%s1883 + $0x99] sm:$0xff]
    %v2124 = vld [vmem:[%s1883 + $0xa1] sm:$0xff]
    %v2125 = vld [vmem:[%s1883 + $0xa9] sm:$0xff]
    %v2126 = vld [vmem:[%s1883 + $0xb1] sm:$0xff]
    %v2127 = vld [vmem:[%s1883 + $0xb9] sm:$0xff]
    %v2128 = vld [vmem:[%s1883 + $0xc1] sm:$0xff]
    %v2129 = vld [vmem:[%s1883 + $0xc9] sm:$0xff]
    %v2130 = vld [vmem:[%s1883 + $0xd1] sm:$0xff]
    %v2131 = vld [vmem:[%s1883 + $0xd9] sm:$0xff]
    %v2132 = vld [vmem:[%s1883 + $0xe1] sm:$0xff]
    %v2133 = vld [vmem:[%s1883 + $0xe9] sm:$0xff]
    %v2134 = vld [vmem:[%s1883 + $0xf1] sm:$0xff]
    %v2135 = vld [vmem:[%s1883 + $0xf9] sm:$0xff]
    %v2136 = vld [vmem:[%s1883 + $0x101] sm:$0xff]
    %v2137 = vld [vmem:[%s1883 + $0x109] sm:$0xff]
    %v2138 = vld [vmem:[%s1883 + $0x111] sm:$0xff]
    %v2139 = vld [vmem:[%s1883 + $0x119] sm:$0x3f]
    %v2176 = vrot.slane %v2104, 2
    %v2177 = vrot.slane %v2105, 2
    %v2178 = vsel %vm1956, %v2176, %v2177
    %v2179 = vrot.slane %v2106, 2
    %v2180 = vsel %vm1956, %v2177, %v2179
    %v2181 = vrot.slane %v2107, 2
    %v2182 = vsel %vm1956, %v2179, %v2181
    %v2183 = vrot.slane %v2108, 2
    %v2184 = vsel %vm1956, %v2181, %v2183
    %v2185 = vrot.slane %v2109, 2
    %v2186 = vsel %vm1956, %v2183, %v2185
    %v2187 = vrot.slane %v2110, 2
    %v2188 = vsel %vm1956, %v2185, %v2187
    %v2189 = vrot.slane %v2111, 2
    %v2190 = vsel %vm1956, %v2187, %v2189
    %v2191 = vrot.slane %v2112, 2
    %v2192 = vsel %vm1956, %v2189, %v2191
    %v2193 = vrot.slane %v2113, 2
    %v2194 = vsel %vm1956, %v2191, %v2193
    %v2195 = vrot.slane %v2114, 2
    %v2196 = vsel %vm1956, %v2193, %v2195
    %v2197 = vrot.slane %v2115, 2
    %v2198 = vsel %vm1956, %v2195, %v2197
    %v2199 = vrot.slane %v2116, 2
    %v2200 = vsel %vm1956, %v2197, %v2199
    %v2201 = vrot.slane %v2117, 2
    %v2202 = vsel %vm1956, %v2199, %v2201
    %v2203 = vrot.slane %v2118, 2
    %v2204 = vsel %vm1956, %v2201, %v2203
    %v2205 = vrot.slane %v2119, 2
    %v2206 = vsel %vm1956, %v2203, %v2205
    %v2207 = vrot.slane %v2120, 2
    %v2208 = vsel %vm1956, %v2205, %v2207
    %v2209 = vrot.slane %v2121, 2
    %v2210 = vsel %vm1956, %v2207, %v2209
    %v2211 = vrot.slane %v2122, 2
    %v2212 = vsel %vm1956, %v2209, %v2211
    %v2213 = vrot.slane %v2123, 2
    %v2214 = vsel %vm1956, %v2211, %v2213
    %v2215 = vrot.slane %v2124, 2
    %v2216 = vsel %vm1956, %v2213, %v2215
    %v2217 = vrot.slane %v2125, 2
    %v2218 = vsel %vm1956, %v2215, %v2217
    %v2219 = vrot.slane %v2126, 2
    %v2220 = vsel %vm1956, %v2217, %v2219
    %v2221 = vrot.slane %v2127, 2
    %v2222 = vsel %vm1956, %v2219, %v2221
    %v2223 = vrot.slane %v2128, 2
    %v2224 = vsel %vm1956, %v2221, %v2223
    %v2225 = vrot.slane %v2129, 2
    %v2226 = vsel %vm1956, %v2223, %v2225
    %v2227 = vrot.slane %v2130, 2
    %v2228 = vsel %vm1956, %v2225, %v2227
    %v2229 = vrot.slane %v2131, 2
    %v2230 = vsel %vm1956, %v2227, %v2229
    %v2231 = vrot.slane %v2132, 2
    %v2232 = vsel %vm1956, %v2229, %v2231
    %v2233 = vrot.slane %v2133, 2
    %v2234 = vsel %vm1956, %v2231, %v2233
    %v2235 = vrot.slane %v2134, 2
    %v2236 = vsel %vm1956, %v2233, %v2235
    %v2237 = vrot.slane %v2135, 2
    %v2238 = vsel %vm1956, %v2235, %v2237
    %v2239 = vrot.slane %v2136, 2
    %v2240 = vsel %vm1956, %v2237, %v2239
    %v2241 = vrot.slane %v2137, 2
    %v2242 = vsel %vm1956, %v2239, %v2241
    %v2243 = vrot.slane %v2138, 2
    %v2244 = vsel %vm1956, %v2241, %v2243
    %v2245 = vrot.slane %v2139, 2
    %v2246 = vsel %vm1956, %v2243, %v2245
    %2247 = vrot.lane.b32.xlu0 %v2176, 18
    %v2248 = vpop.permute.xlu0 %2247
    %2249 = vrot.lane.b32.xlu0 %v2178, 18
    %v2250 = vpop.permute.xlu0 %2249
    %2251 = vrot.lane.b32.xlu0 %v2180, 18
    %v2252 = vpop.permute.xlu0 %2251
    %2253 = vrot.lane.b32.xlu0 %v2182, 18
    %v2254 = vpop.permute.xlu0 %2253
    %2255 = vrot.lane.b32.xlu0 %v2184, 18
    %v2256 = vpop.permute.xlu0 %2255
    %2257 = vrot.lane.b32.xlu0 %v2186, 18
    %v2258 = vpop.permute.xlu0 %2257
    %2259 = vrot.lane.b32.xlu0 %v2188, 18
    %v2260 = vpop.permute.xlu0 %2259
    %2261 = vrot.lane.b32.xlu0 %v2190, 18
    %v2262 = vpop.permute.xlu0 %2261
    %2263 = vrot.lane.b32.xlu0 %v2192, 18
    %v2264 = vpop.permute.xlu0 %2263
    %2265 = vrot.lane.b32.xlu0 %v2194, 18
    %v2266 = vpop.permute.xlu0 %2265
    %2267 = vrot.lane.b32.xlu0 %v2196, 18
    %v2268 = vpop.permute.xlu0 %2267
    %2269 = vrot.lane.b32.xlu0 %v2198, 18
    %v2270 = vpop.permute.xlu0 %2269
    %2271 = vrot.lane.b32.xlu0 %v2200, 18
    %v2272 = vpop.permute.xlu0 %2271
    %2273 = vrot.lane.b32.xlu0 %v2202, 18
    %v2274 = vpop.permute.xlu0 %2273
    %2275 = vrot.lane.b32.xlu0 %v2204, 18
    %v2276 = vpop.permute.xlu0 %2275
    %2277 = vrot.lane.b32.xlu0 %v2206, 18
    %v2278 = vpop.permute.xlu0 %2277
    %2279 = vrot.lane.b32.xlu0 %v2208, 18
    %v2280 = vpop.permute.xlu0 %2279
    %2281 = vrot.lane.b32.xlu0 %v2210, 18
    %v2282 = vpop.permute.xlu0 %2281
    %2283 = vrot.lane.b32.xlu0 %v2212, 18
    %v2284 = vpop.permute.xlu0 %2283
    %2285 = vrot.lane.b32.xlu0 %v2214, 18
    %v2286 = vpop.permute.xlu0 %2285
    %2287 = vrot.lane.b32.xlu0 %v2216, 18
    %v2288 = vpop.permute.xlu0 %2287
    %2289 = vrot.lane.b32.xlu0 %v2218, 18
    %v2290 = vpop.permute.xlu0 %2289
    %2291 = vrot.lane.b32.xlu0 %v2220, 18
    %v2292 = vpop.permute.xlu0 %2291
    %2293 = vrot.lane.b32.xlu0 %v2222, 18
    %v2294 = vpop.permute.xlu0 %2293
    %2295 = vrot.lane.b32.xlu0 %v2224, 18
    %v2296 = vpop.permute.xlu0 %2295
    %2297 = vrot.lane.b32.xlu0 %v2226, 18
    %v2298 = vpop.permute.xlu0 %2297
    %2299 = vrot.lane.b32.xlu0 %v2228, 18
    %v2300 = vpop.permute.xlu0 %2299
    %2301 = vrot.lane.b32.xlu0 %v2230, 18
    %v2302 = vpop.permute.xlu0 %2301
    %2303 = vrot.lane.b32.xlu0 %v2232, 18
    %v2304 = vpop.permute.xlu0 %2303
    %2305 = vrot.lane.b32.xlu0 %v2234, 18
    %v2306 = vpop.permute.xlu0 %2305
    %2307 = vrot.lane.b32.xlu0 %v2236, 18
    %v2308 = vpop.permute.xlu0 %2307
    %2309 = vrot.lane.b32.xlu0 %v2238, 18
    %v2310 = vpop.permute.xlu0 %2309
    %2311 = vrot.lane.b32.xlu0 %v2240, 18
    %v2312 = vpop.permute.xlu0 %2311
    %2313 = vrot.lane.b32.xlu0 %v2242, 18
    %v2314 = vpop.permute.xlu0 %2313
    %2315 = vrot.lane.b32.xlu0 %v2244, 18
    %v2316 = vpop.permute.xlu0 %2315
    %2317 = vrot.lane.b32.xlu0 %v2246, 18
    %v2318 = vpop.permute.xlu0 %2317
    %2319 = vrot.lane.b32.xlu0 %v2245, 18
    %v2320 = vpop.permute.xlu0 %2319
    %vm2358 = vcmask 294038
    %2359 = vst.msk [vmem:[#allocation2 + $0x230] sm:$0xc0] %vm2358, %v2248
    %2360 = vst.msk [vmem:[#allocation2 + $0x240] sm:$0xff] %vm281, %v2250
    %2361 = vst.msk [vmem:[#allocation2 + $0x250] sm:$0xff] %vm281, %v2252
    %2362 = vst.msk [vmem:[#allocation2 + $0x260] sm:$0xff] %vm281, %v2254
    %2363 = vst.msk [vmem:[#allocation2 + $0x270] sm:$0xff] %vm281, %v2256
    %2364 = vst.msk [vmem:[#allocation2 + $0x280] sm:$0xff] %vm281, %v2258
    %2365 = vst.msk [vmem:[#allocation2 + $0x290] sm:$0xff] %vm281, %v2260
    %2366 = vst.msk [vmem:[#allocation2 + $0x2a0] sm:$0xff] %vm281, %v2262
    %2367 = vst.msk [vmem:[#allocation2 + $0x2b0] sm:$0xff] %vm281, %v2264
    %2368 = vst.msk [vmem:[#allocation2 + $0x2c0] sm:$0xff] %vm281, %v2266
    %2369 = vst.msk [vmem:[#allocation2 + $0x2d0] sm:$0xff] %vm281, %v2268
    %2370 = vst.msk [vmem:[#allocation2 + $0x2e0] sm:$0xff] %vm281, %v2270
    %2371 = vst.msk [vmem:[#allocation2 + $0x2f0] sm:$0xff] %vm281, %v2272
    %2372 = vst.msk [vmem:[#allocation2 + $0x300] sm:$0xff] %vm281, %v2274
    %2373 = vst.msk [vmem:[#allocation2 + $0x310] sm:$0xff] %vm281, %v2276
    %2374 = vst.msk [vmem:[#allocation2 + $0x320] sm:$0xff] %vm281, %v2278
    %2375 = vst.msk [vmem:[#allocation2 + $0x330] sm:$0xff] %vm281, %v2280
    %2376 = vst.msk [vmem:[#allocation2 + $0x340] sm:$0xff] %vm281, %v2282
    %2377 = vst.msk [vmem:[#allocation2 + $0x350] sm:$0xff] %vm281, %v2284
    %2378 = vst.msk [vmem:[#allocation2 + $0x360] sm:$0xff] %vm281, %v2286
    %2379 = vst.msk [vmem:[#allocation2 + $0x370] sm:$0xff] %vm281, %v2288
    %2380 = vst.msk [vmem:[#allocation2 + $0x380] sm:$0xff] %vm281, %v2290
    %2381 = vst.msk [vmem:[#allocation2 + $0x390] sm:$0xff] %vm281, %v2292
    %2382 = vst.msk [vmem:[#allocation2 + $0x3a0] sm:$0xff] %vm281, %v2294
    %2383 = vst.msk [vmem:[#allocation2 + $0x3b0] sm:$0xff] %vm281, %v2296
    %2384 = vst.msk [vmem:[#allocation2 + $0x3c0] sm:$0xff] %vm281, %v2298
    %2385 = vst.msk [vmem:[#allocation2 + $0x3d0] sm:$0xff] %vm281, %v2300
    %2386 = vst.msk [vmem:[#allocation2 + $0x3e0] sm:$0xff] %vm281, %v2302
    %2387 = vst.msk [vmem:[#allocation2 + $0x3f0] sm:$0xff] %vm281, %v2304
    %2388 = vst.msk [vmem:[#allocation2 + $0x400] sm:$0xff] %vm281, %v2306
    %2389 = vst.msk [vmem:[#allocation2 + $0x410] sm:$0xff] %vm281, %v2308
    %2390 = vst.msk [vmem:[#allocation2 + $0x420] sm:$0xff] %vm281, %v2310
    %2391 = vst.msk [vmem:[#allocation2 + $0x430] sm:$0xff] %vm281, %v2312
    %2392 = vst.msk [vmem:[#allocation2 + $0x440] sm:$0xff] %vm281, %v2314
    %2393 = vst.msk [vmem:[#allocation2 + $0x450] sm:$0xff] %vm281, %v2316
    %2394 = vst.msk [vmem:[#allocation2 + $0x460] sm:$0xff] %vm281, %v2318
    %vm2395 = vcmask 289936
    %2396 = vst.msk [vmem:[#allocation2 + $0x470] sm:$0xf] %vm2395, %v2320
    %v2397 = vld [vmem:[%s1883 + $0x2] sm:$0xff]
    %v2398 = vld [vmem:[%s1883 + $0xa] sm:$0xff]
    %v2399 = vld [vmem:[%s1883 + $0x12] sm:$0xff]
    %v2400 = vld [vmem:[%s1883 + $0x1a] sm:$0xff]
    %v2401 = vld [vmem:[%s1883 + $0x22] sm:$0xff]
    %v2402 = vld [vmem:[%s1883 + $0x2a] sm:$0xff]
    %v2403 = vld [vmem:[%s1883 + $0x32] sm:$0xff]
    %v2404 = vld [vmem:[%s1883 + $0x3a] sm:$0xff]
    %v2405 = vld [vmem:[%s1883 + $0x42] sm:$0xff]
    %v2406 = vld [vmem:[%s1883 + $0x4a] sm:$0xff]
    %v2407 = vld [vmem:[%s1883 + $0x52] sm:$0xff]
    %v2408 = vld [vmem:[%s1883 + $0x5a] sm:$0xff]
    %v2409 = vld [vmem:[%s1883 + $0x62] sm:$0xff]
    %v2410 = vld [vmem:[%s1883 + $0x6a] sm:$0xff]
    %v2411 = vld [vmem:[%s1883 + $0x72] sm:$0xff]
    %v2412 = vld [vmem:[%s1883 + $0x7a] sm:$0xff]
    %v2413 = vld [vmem:[%s1883 + $0x82] sm:$0xff]
    %v2414 = vld [vmem:[%s1883 + $0x8a] sm:$0xff]
    %v2415 = vld [vmem:[%s1883 + $0x92] sm:$0xff]
    %v2416 = vld [vmem:[%s1883 + $0x9a] sm:$0xff]
    %v2417 = vld [vmem:[%s1883 + $0xa2] sm:$0xff]
    %v2418 = vld [vmem:[%s1883 + $0xaa] sm:$0xff]
    %v2419 = vld [vmem:[%s1883 + $0xb2] sm:$0xff]
    %v2420 = vld [vmem:[%s1883 + $0xba] sm:$0xff]
    %v2421 = vld [vmem:[%s1883 + $0xc2] sm:$0xff]
    %v2422 = vld [vmem:[%s1883 + $0xca] sm:$0xff]
    %v2423 = vld [vmem:[%s1883 + $0xd2] sm:$0xff]
    %v2424 = vld [vmem:[%s1883 + $0xda] sm:$0xff]
    %v2425 = vld [vmem:[%s1883 + $0xe2] sm:$0xff]
    %v2426 = vld [vmem:[%s1883 + $0xea] sm:$0xff]
    %v2427 = vld [vmem:[%s1883 + $0xf2] sm:$0xff]
    %v2428 = vld [vmem:[%s1883 + $0xfa] sm:$0xff]
    %v2429 = vld [vmem:[%s1883 + $0x102] sm:$0xff]
    %v2430 = vld [vmem:[%s1883 + $0x10a] sm:$0xff]
    %v2431 = vld [vmem:[%s1883 + $0x112] sm:$0xff]
    %v2432 = vld [vmem:[%s1883 + $0x11a] sm:$0x3f]
    %v2469 = vrot.slane %v2397, 2
    %v2470 = vrot.slane %v2398, 2
    %v2471 = vsel %vm1956, %v2469, %v2470
    %v2472 = vrot.slane %v2399, 2
    %v2473 = vsel %vm1956, %v2470, %v2472
    %v2474 = vrot.slane %v2400, 2
    %v2475 = vsel %vm1956, %v2472, %v2474
    %v2476 = vrot.slane %v2401, 2
    %v2477 = vsel %vm1956, %v2474, %v2476
    %v2478 = vrot.slane %v2402, 2
    %v2479 = vsel %vm1956, %v2476, %v2478
    %v2480 = vrot.slane %v2403, 2
    %v2481 = vsel %vm1956, %v2478, %v2480
    %v2482 = vrot.slane %v2404, 2
    %v2483 = vsel %vm1956, %v2480, %v2482
    %v2484 = vrot.slane %v2405, 2
    %v2485 = vsel %vm1956, %v2482, %v2484
    %v2486 = vrot.slane %v2406, 2
    %v2487 = vsel %vm1956, %v2484, %v2486
    %v2488 = vrot.slane %v2407, 2
    %v2489 = vsel %vm1956, %v2486, %v2488
    %v2490 = vrot.slane %v2408, 2
    %v2491 = vsel %vm1956, %v2488, %v2490
    %v2492 = vrot.slane %v2409, 2
    %v2493 = vsel %vm1956, %v2490, %v2492
    %v2494 = vrot.slane %v2410, 2
    %v2495 = vsel %vm1956, %v2492, %v2494
    %v2496 = vrot.slane %v2411, 2
    %v2497 = vsel %vm1956, %v2494, %v2496
    %v2498 = vrot.slane %v2412, 2
    %v2499 = vsel %vm1956, %v2496, %v2498
    %v2500 = vrot.slane %v2413, 2
    %v2501 = vsel %vm1956, %v2498, %v2500
    %v2502 = vrot.slane %v2414, 2
    %v2503 = vsel %vm1956, %v2500, %v2502
    %v2504 = vrot.slane %v2415, 2
    %v2505 = vsel %vm1956, %v2502, %v2504
    %v2506 = vrot.slane %v2416, 2
    %v2507 = vsel %vm1956, %v2504, %v2506
    %v2508 = vrot.slane %v2417, 2
    %v2509 = vsel %vm1956, %v2506, %v2508
    %v2510 = vrot.slane %v2418, 2
    %v2511 = vsel %vm1956, %v2508, %v2510
    %v2512 = vrot.slane %v2419, 2
    %v2513 = vsel %vm1956, %v2510, %v2512
    %v2514 = vrot.slane %v2420, 2
    %v2515 = vsel %vm1956, %v2512, %v2514
    %v2516 = vrot.slane %v2421, 2
    %v2517 = vsel %vm1956, %v2514, %v2516
    %v2518 = vrot.slane %v2422, 2
    %v2519 = vsel %vm1956, %v2516, %v2518
    %v2520 = vrot.slane %v2423, 2
    %v2521 = vsel %vm1956, %v2518, %v2520
    %v2522 = vrot.slane %v2424, 2
    %v2523 = vsel %vm1956, %v2520, %v2522
    %v2524 = vrot.slane %v2425, 2
    %v2525 = vsel %vm1956, %v2522, %v2524
    %v2526 = vrot.slane %v2426, 2
    %v2527 = vsel %vm1956, %v2524, %v2526
    %v2528 = vrot.slane %v2427, 2
    %v2529 = vsel %vm1956, %v2526, %v2528
    %v2530 = vrot.slane %v2428, 2
    %v2531 = vsel %vm1956, %v2528, %v2530
    %v2532 = vrot.slane %v2429, 2
    %v2533 = vsel %vm1956, %v2530, %v2532
    %v2534 = vrot.slane %v2430, 2
    %v2535 = vsel %vm1956, %v2532, %v2534
    %v2536 = vrot.slane %v2431, 2
    %v2537 = vsel %vm1956, %v2534, %v2536
    %v2538 = vrot.slane %v2432, 2
    %v2539 = vsel %vm1956, %v2536, %v2538
    %2540 = vrot.lane.b32.xlu0 %v2469, 36
    %v2541 = vpop.permute.xlu0 %2540
    %2542 = vrot.lane.b32.xlu0 %v2471, 36
    %v2543 = vpop.permute.xlu0 %2542
    %2544 = vrot.lane.b32.xlu0 %v2473, 36
    %v2545 = vpop.permute.xlu0 %2544
    %2546 = vrot.lane.b32.xlu0 %v2475, 36
    %v2547 = vpop.permute.xlu0 %2546
    %2548 = vrot.lane.b32.xlu0 %v2477, 36
    %v2549 = vpop.permute.xlu0 %2548
    %2550 = vrot.lane.b32.xlu0 %v2479, 36
    %v2551 = vpop.permute.xlu0 %2550
    %2552 = vrot.lane.b32.xlu0 %v2481, 36
    %v2553 = vpop.permute.xlu0 %2552
    %2554 = vrot.lane.b32.xlu0 %v2483, 36
    %v2555 = vpop.permute.xlu0 %2554
    %2556 = vrot.lane.b32.xlu0 %v2485, 36
    %v2557 = vpop.permute.xlu0 %2556
    %2558 = vrot.lane.b32.xlu0 %v2487, 36
    %v2559 = vpop.permute.xlu0 %2558
    %2560 = vrot.lane.b32.xlu0 %v2489, 36
    %v2561 = vpop.permute.xlu0 %2560
    %2562 = vrot.lane.b32.xlu0 %v2491, 36
    %v2563 = vpop.permute.xlu0 %2562
    %2564 = vrot.lane.b32.xlu0 %v2493, 36
    %v2565 = vpop.permute.xlu0 %2564
    %2566 = vrot.lane.b32.xlu0 %v2495, 36
    %v2567 = vpop.permute.xlu0 %2566
    %2568 = vrot.lane.b32.xlu0 %v2497, 36
    %v2569 = vpop.permute.xlu0 %2568
    %2570 = vrot.lane.b32.xlu0 %v2499, 36
    %v2571 = vpop.permute.xlu0 %2570
    %2572 = vrot.lane.b32.xlu0 %v2501, 36
    %v2573 = vpop.permute.xlu0 %2572
    %2574 = vrot.lane.b32.xlu0 %v2503, 36
    %v2575 = vpop.permute.xlu0 %2574
    %2576 = vrot.lane.b32.xlu0 %v2505, 36
    %v2577 = vpop.permute.xlu0 %2576
    %2578 = vrot.lane.b32.xlu0 %v2507, 36
    %v2579 = vpop.permute.xlu0 %2578
    %2580 = vrot.lane.b32.xlu0 %v2509, 36
    %v2581 = vpop.permute.xlu0 %2580
    %2582 = vrot.lane.b32.xlu0 %v2511, 36
    %v2583 = vpop.permute.xlu0 %2582
    %2584 = vrot.lane.b32.xlu0 %v2513, 36
    %v2585 = vpop.permute.xlu0 %2584
    %2586 = vrot.lane.b32.xlu0 %v2515, 36
    %v2587 = vpop.permute.xlu0 %2586
    %2588 = vrot.lane.b32.xlu0 %v2517, 36
    %v2589 = vpop.permute.xlu0 %2588
    %2590 = vrot.lane.b32.xlu0 %v2519, 36
    %v2591 = vpop.permute.xlu0 %2590
    %2592 = vrot.lane.b32.xlu0 %v2521, 36
    %v2593 = vpop.permute.xlu0 %2592
    %2594 = vrot.lane.b32.xlu0 %v2523, 36
    %v2595 = vpop.permute.xlu0 %2594
    %2596 = vrot.lane.b32.xlu0 %v2525, 36
    %v2597 = vpop.permute.xlu0 %2596
    %2598 = vrot.lane.b32.xlu0 %v2527, 36
    %v2599 = vpop.permute.xlu0 %2598
    %2600 = vrot.lane.b32.xlu0 %v2529, 36
    %v2601 = vpop.permute.xlu0 %2600
    %2602 = vrot.lane.b32.xlu0 %v2531, 36
    %v2603 = vpop.permute.xlu0 %2602
    %2604 = vrot.lane.b32.xlu0 %v2533, 36
    %v2605 = vpop.permute.xlu0 %2604
    %2606 = vrot.lane.b32.xlu0 %v2535, 36
    %v2607 = vpop.permute.xlu0 %2606
    %2608 = vrot.lane.b32.xlu0 %v2537, 36
    %v2609 = vpop.permute.xlu0 %2608
    %2610 = vrot.lane.b32.xlu0 %v2539, 36
    %v2611 = vpop.permute.xlu0 %2610
    %2612 = vrot.lane.b32.xlu0 %v2538, 36
    %v2613 = vpop.permute.xlu0 %2612
    %vm2651 = vcmask 441638
    %2652 = vst.msk [vmem:[#allocation2 + $0x230] sm:$0xc0] %vm2651, %v2541
    %2653 = vst.msk [vmem:[#allocation2 + $0x240] sm:$0xff] %vm499, %v2543
    %2654 = vst.msk [vmem:[#allocation2 + $0x250] sm:$0xff] %vm499, %v2545
    %2655 = vst.msk [vmem:[#allocation2 + $0x260] sm:$0xff] %vm499, %v2547
    %2656 = vst.msk [vmem:[#allocation2 + $0x270] sm:$0xff] %vm499, %v2549
    %2657 = vst.msk [vmem:[#allocation2 + $0x280] sm:$0xff] %vm499, %v2551
    %2658 = vst.msk [vmem:[#allocation2 + $0x290] sm:$0xff] %vm499, %v2553
    %2659 = vst.msk [vmem:[#allocation2 + $0x2a0] sm:$0xff] %vm499, %v2555
    %2660 = vst.msk [vmem:[#allocation2 + $0x2b0] sm:$0xff] %vm499, %v2557
    %2661 = vst.msk [vmem:[#allocation2 + $0x2c0] sm:$0xff] %vm499, %v2559
    %2662 = vst.msk [vmem:[#allocation2 + $0x2d0] sm:$0xff] %vm499, %v2561
    %2663 = vst.msk [vmem:[#allocation2 + $0x2e0] sm:$0xff] %vm499, %v2563
    %2664 = vst.msk [vmem:[#allocation2 + $0x2f0] sm:$0xff] %vm499, %v2565
    %2665 = vst.msk [vmem:[#allocation2 + $0x300] sm:$0xff] %vm499, %v2567
    %2666 = vst.msk [vmem:[#allocation2 + $0x310] sm:$0xff] %vm499, %v2569
    %2667 = vst.msk [vmem:[#allocation2 + $0x320] sm:$0xff] %vm499, %v2571
    %2668 = vst.msk [vmem:[#allocation2 + $0x330] sm:$0xff] %vm499, %v2573
    %2669 = vst.msk [vmem:[#allocation2 + $0x340] sm:$0xff] %vm499, %v2575
    %2670 = vst.msk [vmem:[#allocation2 + $0x350] sm:$0xff] %vm499, %v2577
    %2671 = vst.msk [vmem:[#allocation2 + $0x360] sm:$0xff] %vm499, %v2579
    %2672 = vst.msk [vmem:[#allocation2 + $0x370] sm:$0xff] %vm499, %v2581
    %2673 = vst.msk [vmem:[#allocation2 + $0x380] sm:$0xff] %vm499, %v2583
    %2674 = vst.msk [vmem:[#allocation2 + $0x390] sm:$0xff] %vm499, %v2585
    %2675 = vst.msk [vmem:[#allocation2 + $0x3a0] sm:$0xff] %vm499, %v2587
    %2676 = vst.msk [vmem:[#allocation2 + $0x3b0] sm:$0xff] %vm499, %v2589
    %2677 = vst.msk [vmem:[#allocation2 + $0x3c0] sm:$0xff] %vm499, %v2591
    %2678 = vst.msk [vmem:[#allocation2 + $0x3d0] sm:$0xff] %vm499, %v2593
    %2679 = vst.msk [vmem:[#allocation2 + $0x3e0] sm:$0xff] %vm499, %v2595
    %2680 = vst.msk [vmem:[#allocation2 + $0x3f0] sm:$0xff] %vm499, %v2597
    %2681 = vst.msk [vmem:[#allocation2 + $0x400] sm:$0xff] %vm499, %v2599
    %2682 = vst.msk [vmem:[#allocation2 + $0x410] sm:$0xff] %vm499, %v2601
    %2683 = vst.msk [vmem:[#allocation2 + $0x420] sm:$0xff] %vm499, %v2603
    %2684 = vst.msk [vmem:[#allocation2 + $0x430] sm:$0xff] %vm499, %v2605
    %2685 = vst.msk [vmem:[#allocation2 + $0x440] sm:$0xff] %vm499, %v2607
    %2686 = vst.msk [vmem:[#allocation2 + $0x450] sm:$0xff] %vm499, %v2609
    %2687 = vst.msk [vmem:[#allocation2 + $0x460] sm:$0xff] %vm499, %v2611
    %vm2688 = vcmask 437536
    %2689 = vst.msk [vmem:[#allocation2 + $0x470] sm:$0xf] %vm2688, %v2613
    %v2690 = vld [vmem:[%s1883 + $0x12] sm:$0xff]
    %v2691 = vld [vmem:[%s1883 + $0x1a] sm:$0xff]
    %v2692 = vld [vmem:[%s1883 + $0x22] sm:$0xff]
    %v2693 = vld [vmem:[%s1883 + $0x2a] sm:$0xff]
    %v2694 = vld [vmem:[%s1883 + $0x32] sm:$0xff]
    %v2695 = vld [vmem:[%s1883 + $0x3a] sm:$0xff]
    %v2696 = vld [vmem:[%s1883 + $0x42] sm:$0xff]
    %v2697 = vld [vmem:[%s1883 + $0x4a] sm:$0xff]
    %v2698 = vld [vmem:[%s1883 + $0x52] sm:$0xff]
    %v2699 = vld [vmem:[%s1883 + $0x5a] sm:$0xff]
    %v2700 = vld [vmem:[%s1883 + $0x62] sm:$0xff]
    %v2701 = vld [vmem:[%s1883 + $0x6a] sm:$0xff]
    %v2702 = vld [vmem:[%s1883 + $0x72] sm:$0xff]
    %v2703 = vld [vmem:[%s1883 + $0x7a] sm:$0xff]
    %v2704 = vld [vmem:[%s1883 + $0x82] sm:$0xff]
    %v2705 = vld [vmem:[%s1883 + $0x8a] sm:$0xff]
    %v2706 = vld [vmem:[%s1883 + $0x92] sm:$0xff]
    %v2707 = vld [vmem:[%s1883 + $0x9a] sm:$0xff]
    %v2708 = vld [vmem:[%s1883 + $0xa2] sm:$0xff]
    %v2709 = vld [vmem:[%s1883 + $0xaa] sm:$0xff]
    %v2710 = vld [vmem:[%s1883 + $0xb2] sm:$0xff]
    %v2711 = vld [vmem:[%s1883 + $0xba] sm:$0xff]
    %v2712 = vld [vmem:[%s1883 + $0xc2] sm:$0xff]
    %v2713 = vld [vmem:[%s1883 + $0xca] sm:$0xff]
    %v2714 = vld [vmem:[%s1883 + $0xd2] sm:$0xff]
    %v2715 = vld [vmem:[%s1883 + $0xda] sm:$0xff]
    %v2716 = vld [vmem:[%s1883 + $0xe2] sm:$0xff]
    %v2717 = vld [vmem:[%s1883 + $0xea] sm:$0xff]
    %v2718 = vld [vmem:[%s1883 + $0xf2] sm:$0xff]
    %v2719 = vld [vmem:[%s1883 + $0xfa] sm:$0xff]
    %v2720 = vld [vmem:[%s1883 + $0x102] sm:$0xff]
    %v2721 = vld [vmem:[%s1883 + $0x10a] sm:$0xff]
    %v2722 = vld [vmem:[%s1883 + $0x112] sm:$0xff]
    %v2723 = vld [vmem:[%s1883 + $0x11a] sm:$0xff]
    %v2724 = vld [vmem:[%s1883 + $0x122] sm:$0xff]
    %v2725 = vld [vmem:[%s1883 + $0x12a] sm:$0x3f]
    %v2762 = vrot.slane %v2690, 2
    %v2763 = vrot.slane %v2691, 2
    %v2764 = vsel %vm1956, %v2762, %v2763
    %v2765 = vrot.slane %v2692, 2
    %v2766 = vsel %vm1956, %v2763, %v2765
    %v2767 = vrot.slane %v2693, 2
    %v2768 = vsel %vm1956, %v2765, %v2767
    %v2769 = vrot.slane %v2694, 2
    %v2770 = vsel %vm1956, %v2767, %v2769
    %v2771 = vrot.slane %v2695, 2
    %v2772 = vsel %vm1956, %v2769, %v2771
    %v2773 = vrot.slane %v2696, 2
    %v2774 = vsel %vm1956, %v2771, %v2773
    %v2775 = vrot.slane %v2697, 2
    %v2776 = vsel %vm1956, %v2773, %v2775
    %v2777 = vrot.slane %v2698, 2
    %v2778 = vsel %vm1956, %v2775, %v2777
    %v2779 = vrot.slane %v2699, 2
    %v2780 = vsel %vm1956, %v2777, %v2779
    %v2781 = vrot.slane %v2700, 2
    %v2782 = vsel %vm1956, %v2779, %v2781
    %v2783 = vrot.slane %v2701, 2
    %v2784 = vsel %vm1956, %v2781, %v2783
    %v2785 = vrot.slane %v2702, 2
    %v2786 = vsel %vm1956, %v2783, %v2785
    %v2787 = vrot.slane %v2703, 2
    %v2788 = vsel %vm1956, %v2785, %v2787
    %v2789 = vrot.slane %v2704, 2
    %v2790 = vsel %vm1956, %v2787, %v2789
    %v2791 = vrot.slane %v2705, 2
    %v2792 = vsel %vm1956, %v2789, %v2791
    %v2793 = vrot.slane %v2706, 2
    %v2794 = vsel %vm1956, %v2791, %v2793
    %v2795 = vrot.slane %v2707, 2
    %v2796 = vsel %vm1956, %v2793, %v2795
    %v2797 = vrot.slane %v2708, 2
    %v2798 = vsel %vm1956, %v2795, %v2797
    %v2799 = vrot.slane %v2709, 2
    %v2800 = vsel %vm1956, %v2797, %v2799
    %v2801 = vrot.slane %v2710, 2
    %v2802 = vsel %vm1956, %v2799, %v2801
    %v2803 = vrot.slane %v2711, 2
    %v2804 = vsel %vm1956, %v2801, %v2803
    %v2805 = vrot.slane %v2712, 2
    %v2806 = vsel %vm1956, %v2803, %v2805
    %v2807 = vrot.slane %v2713, 2
    %v2808 = vsel %vm1956, %v2805, %v2807
    %v2809 = vrot.slane %v2714, 2
    %v2810 = vsel %vm1956, %v2807, %v2809
    %v2811 = vrot.slane %v2715, 2
    %v2812 = vsel %vm1956, %v2809, %v2811
    %v2813 = vrot.slane %v2716, 2
    %v2814 = vsel %vm1956, %v2811, %v2813
    %v2815 = vrot.slane %v2717, 2
    %v2816 = vsel %vm1956, %v2813, %v2815
    %v2817 = vrot.slane %v2718, 2
    %v2818 = vsel %vm1956, %v2815, %v2817
    %v2819 = vrot.slane %v2719, 2
    %v2820 = vsel %vm1956, %v2817, %v2819
    %v2821 = vrot.slane %v2720, 2
    %v2822 = vsel %vm1956, %v2819, %v2821
    %v2823 = vrot.slane %v2721, 2
    %v2824 = vsel %vm1956, %v2821, %v2823
    %v2825 = vrot.slane %v2722, 2
    %v2826 = vsel %vm1956, %v2823, %v2825
    %v2827 = vrot.slane %v2723, 2
    %v2828 = vsel %vm1956, %v2825, %v2827
    %v2829 = vrot.slane %v2724, 2
    %v2830 = vsel %vm1956, %v2827, %v2829
    %v2831 = vrot.slane %v2725, 2
    %v2832 = vsel %vm1956, %v2829, %v2831
    %2833 = vrot.lane.b32.xlu0 %v2762, 54
    %v2834 = vpop.permute.xlu0 %2833
    %2835 = vrot.lane.b32.xlu0 %v2764, 54
    %v2836 = vpop.permute.xlu0 %2835
    %2837 = vrot.lane.b32.xlu0 %v2766, 54
    %v2838 = vpop.permute.xlu0 %2837
    %2839 = vrot.lane.b32.xlu0 %v2768, 54
    %v2840 = vpop.permute.xlu0 %2839
    %2841 = vrot.lane.b32.xlu0 %v2770, 54
    %v2842 = vpop.permute.xlu0 %2841
    %2843 = vrot.lane.b32.xlu0 %v2772, 54
    %v2844 = vpop.permute.xlu0 %2843
    %2845 = vrot.lane.b32.xlu0 %v2774, 54
    %v2846 = vpop.permute.xlu0 %2845
    %2847 = vrot.lane.b32.xlu0 %v2776, 54
    %v2848 = vpop.permute.xlu0 %2847
    %2849 = vrot.lane.b32.xlu0 %v2778, 54
    %v2850 = vpop.permute.xlu0 %2849
    %2851 = vrot.lane.b32.xlu0 %v2780, 54
    %v2852 = vpop.permute.xlu0 %2851
    %2853 = vrot.lane.b32.xlu0 %v2782, 54
    %v2854 = vpop.permute.xlu0 %2853
    %2855 = vrot.lane.b32.xlu0 %v2784, 54
    %v2856 = vpop.permute.xlu0 %2855
    %2857 = vrot.lane.b32.xlu0 %v2786, 54
    %v2858 = vpop.permute.xlu0 %2857
    %2859 = vrot.lane.b32.xlu0 %v2788, 54
    %v2860 = vpop.permute.xlu0 %2859
    %2861 = vrot.lane.b32.xlu0 %v2790, 54
    %v2862 = vpop.permute.xlu0 %2861
    %2863 = vrot.lane.b32.xlu0 %v2792, 54
    %v2864 = vpop.permute.xlu0 %2863
    %2865 = vrot.lane.b32.xlu0 %v2794, 54
    %v2866 = vpop.permute.xlu0 %2865
    %2867 = vrot.lane.b32.xlu0 %v2796, 54
    %v2868 = vpop.permute.xlu0 %2867
    %2869 = vrot.lane.b32.xlu0 %v2798, 54
    %v2870 = vpop.permute.xlu0 %2869
    %2871 = vrot.lane.b32.xlu0 %v2800, 54
    %v2872 = vpop.permute.xlu0 %2871
    %2873 = vrot.lane.b32.xlu0 %v2802, 54
    %v2874 = vpop.permute.xlu0 %2873
    %2875 = vrot.lane.b32.xlu0 %v2804, 54
    %v2876 = vpop.permute.xlu0 %2875
    %2877 = vrot.lane.b32.xlu0 %v2806, 54
    %v2878 = vpop.permute.xlu0 %2877
    %2879 = vrot.lane.b32.xlu0 %v2808, 54
    %v2880 = vpop.permute.xlu0 %2879
    %2881 = vrot.lane.b32.xlu0 %v2810, 54
    %v2882 = vpop.permute.xlu0 %2881
    %2883 = vrot.lane.b32.xlu0 %v2812, 54
    %v2884 = vpop.permute.xlu0 %2883
    %2885 = vrot.lane.b32.xlu0 %v2814, 54
    %v2886 = vpop.permute.xlu0 %2885
    %2887 = vrot.lane.b32.xlu0 %v2816, 54
    %v2888 = vpop.permute.xlu0 %2887
    %2889 = vrot.lane.b32.xlu0 %v2818, 54
    %v2890 = vpop.permute.xlu0 %2889
    %2891 = vrot.lane.b32.xlu0 %v2820, 54
    %v2892 = vpop.permute.xlu0 %2891
    %2893 = vrot.lane.b32.xlu0 %v2822, 54
    %v2894 = vpop.permute.xlu0 %2893
    %2895 = vrot.lane.b32.xlu0 %v2824, 54
    %v2896 = vpop.permute.xlu0 %2895
    %2897 = vrot.lane.b32.xlu0 %v2826, 54
    %v2898 = vpop.permute.xlu0 %2897
    %2899 = vrot.lane.b32.xlu0 %v2828, 54
    %v2900 = vpop.permute.xlu0 %2899
    %2901 = vrot.lane.b32.xlu0 %v2830, 54
    %v2902 = vpop.permute.xlu0 %2901
    %2903 = vrot.lane.b32.xlu0 %v2832, 54
    %v2904 = vpop.permute.xlu0 %2903
    %2905 = vrot.lane.b32.xlu0 %v2831, 54
    %v2906 = vpop.permute.xlu0 %2905
    %vm2944 = vcmask 589238
    %2945 = vst.msk [vmem:[#allocation2 + $0x230] sm:$0xc0] %vm2944, %v2834
    %2946 = vst.msk [vmem:[#allocation2 + $0x240] sm:$0xff] %vm717, %v2836
    %2947 = vst.msk [vmem:[#allocation2 + $0x250] sm:$0xff] %vm717, %v2838
    %2948 = vst.msk [vmem:[#allocation2 + $0x260] sm:$0xff] %vm717, %v2840
    %2949 = vst.msk [vmem:[#allocation2 + $0x270] sm:$0xff] %vm717, %v2842
    %2950 = vst.msk [vmem:[#allocation2 + $0x280] sm:$0xff] %vm717, %v2844
    %2951 = vst.msk [vmem:[#allocation2 + $0x290] sm:$0xff] %vm717, %v2846
    %2952 = vst.msk [vmem:[#allocation2 + $0x2a0] sm:$0xff] %vm717, %v2848
    %2953 = vst.msk [vmem:[#allocation2 + $0x2b0] sm:$0xff] %vm717, %v2850
    %2954 = vst.msk [vmem:[#allocation2 + $0x2c0] sm:$0xff] %vm717, %v2852
    %2955 = vst.msk [vmem:[#allocation2 + $0x2d0] sm:$0xff] %vm717, %v2854
    %2956 = vst.msk [vmem:[#allocation2 + $0x2e0] sm:$0xff] %vm717, %v2856
    %2957 = vst.msk [vmem:[#allocation2 + $0x2f0] sm:$0xff] %vm717, %v2858
    %2958 = vst.msk [vmem:[#allocation2 + $0x300] sm:$0xff] %vm717, %v2860
    %2959 = vst.msk [vmem:[#allocation2 + $0x310] sm:$0xff] %vm717, %v2862
    %2960 = vst.msk [vmem:[#allocation2 + $0x320] sm:$0xff] %vm717, %v2864
    %2961 = vst.msk [vmem:[#allocation2 + $0x330] sm:$0xff] %vm717, %v2866
    %2962 = vst.msk [vmem:[#allocation2 + $0x340] sm:$0xff] %vm717, %v2868
    %2963 = vst.msk [vmem:[#allocation2 + $0x350] sm:$0xff] %vm717, %v2870
    %2964 = vst.msk [vmem:[#allocation2 + $0x360] sm:$0xff] %vm717, %v2872
    %2965 = vst.msk [vmem:[#allocation2 + $0x370] sm:$0xff] %vm717, %v2874
    %2966 = vst.msk [vmem:[#allocation2 + $0x380] sm:$0xff] %vm717, %v2876
    %2967 = vst.msk [vmem:[#allocation2 + $0x390] sm:$0xff] %vm717, %v2878
    %2968 = vst.msk [vmem:[#allocation2 + $0x3a0] sm:$0xff] %vm717, %v2880
    %2969 = vst.msk [vmem:[#allocation2 + $0x3b0] sm:$0xff] %vm717, %v2882
    %2970 = vst.msk [vmem:[#allocation2 + $0x3c0] sm:$0xff] %vm717, %v2884
    %2971 = vst.msk [vmem:[#allocation2 + $0x3d0] sm:$0xff] %vm717, %v2886
    %2972 = vst.msk [vmem:[#allocation2 + $0x3e0] sm:$0xff] %vm717, %v2888
    %2973 = vst.msk [vmem:[#allocation2 + $0x3f0] sm:$0xff] %vm717, %v2890
    %2974 = vst.msk [vmem:[#allocation2 + $0x400] sm:$0xff] %vm717, %v2892
    %2975 = vst.msk [vmem:[#allocation2 + $0x410] sm:$0xff] %vm717, %v2894
    %2976 = vst.msk [vmem:[#allocation2 + $0x420] sm:$0xff] %vm717, %v2896
    %2977 = vst.msk [vmem:[#allocation2 + $0x430] sm:$0xff] %vm717, %v2898
    %2978 = vst.msk [vmem:[#allocation2 + $0x440] sm:$0xff] %vm717, %v2900
    %2979 = vst.msk [vmem:[#allocation2 + $0x450] sm:$0xff] %vm717, %v2902
    %2980 = vst.msk [vmem:[#allocation2 + $0x460] sm:$0xff] %vm717, %v2904
    %vm2981 = vcmask 585136
    %2982 = vst.msk [vmem:[#allocation2 + $0x470] sm:$0xf] %vm2981, %v2906
    %v2983 = vld [vmem:[%s1883 + $0x13] sm:$0xff]
    %v2984 = vld [vmem:[%s1883 + $0x1b] sm:$0xff]
    %v2985 = vld [vmem:[%s1883 + $0x23] sm:$0xff]
    %v2986 = vld [vmem:[%s1883 + $0x2b] sm:$0xff]
    %v2987 = vld [vmem:[%s1883 + $0x33] sm:$0xff]
    %v2988 = vld [vmem:[%s1883 + $0x3b] sm:$0xff]
    %v2989 = vld [vmem:[%s1883 + $0x43] sm:$0xff]
    %v2990 = vld [vmem:[%s1883 + $0x4b] sm:$0xff]
    %v2991 = vld [vmem:[%s1883 + $0x53] sm:$0xff]
    %v2992 = vld [vmem:[%s1883 + $0x5b] sm:$0xff]
    %v2993 = vld [vmem:[%s1883 + $0x63] sm:$0xff]
    %v2994 = vld [vmem:[%s1883 + $0x6b] sm:$0xff]
    %v2995 = vld [vmem:[%s1883 + $0x73] sm:$0xff]
    %v2996 = vld [vmem:[%s1883 + $0x7b] sm:$0xff]
    %v2997 = vld [vmem:[%s1883 + $0x83] sm:$0xff]
    %v2998 = vld [vmem:[%s1883 + $0x8b] sm:$0xff]
    %v2999 = vld [vmem:[%s1883 + $0x93] sm:$0xff]
    %v3000 = vld [vmem:[%s1883 + $0x9b] sm:$0xff]
    %v3001 = vld [vmem:[%s1883 + $0xa3] sm:$0xff]
    %v3002 = vld [vmem:[%s1883 + $0xab] sm:$0xff]
    %v3003 = vld [vmem:[%s1883 + $0xb3] sm:$0xff]
    %v3004 = vld [vmem:[%s1883 + $0xbb] sm:$0xff]
    %v3005 = vld [vmem:[%s1883 + $0xc3] sm:$0xff]
    %v3006 = vld [vmem:[%s1883 + $0xcb] sm:$0xff]
    %v3007 = vld [vmem:[%s1883 + $0xd3] sm:$0xff]
    %v3008 = vld [vmem:[%s1883 + $0xdb] sm:$0xff]
    %v3009 = vld [vmem:[%s1883 + $0xe3] sm:$0xff]
    %v3010 = vld [vmem:[%s1883 + $0xeb] sm:$0xff]
    %v3011 = vld [vmem:[%s1883 + $0xf3] sm:$0xff]
    %v3012 = vld [vmem:[%s1883 + $0xfb] sm:$0xff]
    %v3013 = vld [vmem:[%s1883 + $0x103] sm:$0xff]
    %v3014 = vld [vmem:[%s1883 + $0x10b] sm:$0xff]
    %v3015 = vld [vmem:[%s1883 + $0x113] sm:$0xff]
    %v3016 = vld [vmem:[%s1883 + $0x11b] sm:$0xff]
    %v3017 = vld [vmem:[%s1883 + $0x123] sm:$0xff]
    %v3018 = vld [vmem:[%s1883 + $0x12b] sm:$0x3f]
    %v3055 = vrot.slane %v2983, 2
    %v3056 = vrot.slane %v2984, 2
    %v3057 = vsel %vm1956, %v3055, %v3056
    %v3058 = vrot.slane %v2985, 2
    %v3059 = vsel %vm1956, %v3056, %v3058
    %v3060 = vrot.slane %v2986, 2
    %v3061 = vsel %vm1956, %v3058, %v3060
    %v3062 = vrot.slane %v2987, 2
    %v3063 = vsel %vm1956, %v3060, %v3062
    %v3064 = vrot.slane %v2988, 2
    %v3065 = vsel %vm1956, %v3062, %v3064
    %v3066 = vrot.slane %v2989, 2
    %v3067 = vsel %vm1956, %v3064, %v3066
    %v3068 = vrot.slane %v2990, 2
    %v3069 = vsel %vm1956, %v3066, %v3068
    %v3070 = vrot.slane %v2991, 2
    %v3071 = vsel %vm1956, %v3068, %v3070
    %v3072 = vrot.slane %v2992, 2
    %v3073 = vsel %vm1956, %v3070, %v3072
    %v3074 = vrot.slane %v2993, 2
    %v3075 = vsel %vm1956, %v3072, %v3074
    %v3076 = vrot.slane %v2994, 2
    %v3077 = vsel %vm1956, %v3074, %v3076
    %v3078 = vrot.slane %v2995, 2
    %v3079 = vsel %vm1956, %v3076, %v3078
    %v3080 = vrot.slane %v2996, 2
    %v3081 = vsel %vm1956, %v3078, %v3080
    %v3082 = vrot.slane %v2997, 2
    %v3083 = vsel %vm1956, %v3080, %v3082
    %v3084 = vrot.slane %v2998, 2
    %v3085 = vsel %vm1956, %v3082, %v3084
    %v3086 = vrot.slane %v2999, 2
    %v3087 = vsel %vm1956, %v3084, %v3086
    %v3088 = vrot.slane %v3000, 2
    %v3089 = vsel %vm1956, %v3086, %v3088
    %v3090 = vrot.slane %v3001, 2
    %v3091 = vsel %vm1956, %v3088, %v3090
    %v3092 = vrot.slane %v3002, 2
    %v3093 = vsel %vm1956, %v3090, %v3092
    %v3094 = vrot.slane %v3003, 2
    %v3095 = vsel %vm1956, %v3092, %v3094
    %v3096 = vrot.slane %v3004, 2
    %v3097 = vsel %vm1956, %v3094, %v3096
    %v3098 = vrot.slane %v3005, 2
    %v3099 = vsel %vm1956, %v3096, %v3098
    %v3100 = vrot.slane %v3006, 2
    %v3101 = vsel %vm1956, %v3098, %v3100
    %v3102 = vrot.slane %v3007, 2
    %v3103 = vsel %vm1956, %v3100, %v3102
    %v3104 = vrot.slane %v3008, 2
    %v3105 = vsel %vm1956, %v3102, %v3104
    %v3106 = vrot.slane %v3009, 2
    %v3107 = vsel %vm1956, %v3104, %v3106
    %v3108 = vrot.slane %v3010, 2
    %v3109 = vsel %vm1956, %v3106, %v3108
    %v3110 = vrot.slane %v3011, 2
    %v3111 = vsel %vm1956, %v3108, %v3110
    %v3112 = vrot.slane %v3012, 2
    %v3113 = vsel %vm1956, %v3110, %v3112
    %v3114 = vrot.slane %v3013, 2
    %v3115 = vsel %vm1956, %v3112, %v3114
    %v3116 = vrot.slane %v3014, 2
    %v3117 = vsel %vm1956, %v3114, %v3116
    %v3118 = vrot.slane %v3015, 2
    %v3119 = vsel %vm1956, %v3116, %v3118
    %v3120 = vrot.slane %v3016, 2
    %v3121 = vsel %vm1956, %v3118, %v3120
    %v3122 = vrot.slane %v3017, 2
    %v3123 = vsel %vm1956, %v3120, %v3122
    %v3124 = vrot.slane %v3018, 2
    %v3125 = vsel %vm1956, %v3122, %v3124
    %3126 = vrot.lane.b32.xlu0 %v3055, 72
    %v3127 = vpop.permute.xlu0 %3126
    %3128 = vrot.lane.b32.xlu0 %v3057, 72
    %v3129 = vpop.permute.xlu0 %3128
    %3130 = vrot.lane.b32.xlu0 %v3059, 72
    %v3131 = vpop.permute.xlu0 %3130
    %3132 = vrot.lane.b32.xlu0 %v3061, 72
    %v3133 = vpop.permute.xlu0 %3132
    %3134 = vrot.lane.b32.xlu0 %v3063, 72
    %v3135 = vpop.permute.xlu0 %3134
    %3136 = vrot.lane.b32.xlu0 %v3065, 72
    %v3137 = vpop.permute.xlu0 %3136
    %3138 = vrot.lane.b32.xlu0 %v3067, 72
    %v3139 = vpop.permute.xlu0 %3138
    %3140 = vrot.lane.b32.xlu0 %v3069, 72
    %v3141 = vpop.permute.xlu0 %3140
    %3142 = vrot.lane.b32.xlu0 %v3071, 72
    %v3143 = vpop.permute.xlu0 %3142
    %3144 = vrot.lane.b32.xlu0 %v3073, 72
    %v3145 = vpop.permute.xlu0 %3144
    %3146 = vrot.lane.b32.xlu0 %v3075, 72
    %v3147 = vpop.permute.xlu0 %3146
    %3148 = vrot.lane.b32.xlu0 %v3077, 72
    %v3149 = vpop.permute.xlu0 %3148
    %3150 = vrot.lane.b32.xlu0 %v3079, 72
    %v3151 = vpop.permute.xlu0 %3150
    %3152 = vrot.lane.b32.xlu0 %v3081, 72
    %v3153 = vpop.permute.xlu0 %3152
    %3154 = vrot.lane.b32.xlu0 %v3083, 72
    %v3155 = vpop.permute.xlu0 %3154
    %3156 = vrot.lane.b32.xlu0 %v3085, 72
    %v3157 = vpop.permute.xlu0 %3156
    %3158 = vrot.lane.b32.xlu0 %v3087, 72
    %v3159 = vpop.permute.xlu0 %3158
    %3160 = vrot.lane.b32.xlu0 %v3089, 72
    %v3161 = vpop.permute.xlu0 %3160
    %3162 = vrot.lane.b32.xlu0 %v3091, 72
    %v3163 = vpop.permute.xlu0 %3162
    %3164 = vrot.lane.b32.xlu0 %v3093, 72
    %v3165 = vpop.permute.xlu0 %3164
    %3166 = vrot.lane.b32.xlu0 %v3095, 72
    %v3167 = vpop.permute.xlu0 %3166
    %3168 = vrot.lane.b32.xlu0 %v3097, 72
    %v3169 = vpop.permute.xlu0 %3168
    %3170 = vrot.lane.b32.xlu0 %v3099, 72
    %v3171 = vpop.permute.xlu0 %3170
    %3172 = vrot.lane.b32.xlu0 %v3101, 72
    %v3173 = vpop.permute.xlu0 %3172
    %3174 = vrot.lane.b32.xlu0 %v3103, 72
    %v3175 = vpop.permute.xlu0 %3174
    %3176 = vrot.lane.b32.xlu0 %v3105, 72
    %v3177 = vpop.permute.xlu0 %3176
    %3178 = vrot.lane.b32.xlu0 %v3107, 72
    %v3179 = vpop.permute.xlu0 %3178
    %3180 = vrot.lane.b32.xlu0 %v3109, 72
    %v3181 = vpop.permute.xlu0 %3180
    %3182 = vrot.lane.b32.xlu0 %v3111, 72
    %v3183 = vpop.permute.xlu0 %3182
    %3184 = vrot.lane.b32.xlu0 %v3113, 72
    %v3185 = vpop.permute.xlu0 %3184
    %3186 = vrot.lane.b32.xlu0 %v3115, 72
    %v3187 = vpop.permute.xlu0 %3186
    %3188 = vrot.lane.b32.xlu0 %v3117, 72
    %v3189 = vpop.permute.xlu0 %3188
    %3190 = vrot.lane.b32.xlu0 %v3119, 72
    %v3191 = vpop.permute.xlu0 %3190
    %3192 = vrot.lane.b32.xlu0 %v3121, 72
    %v3193 = vpop.permute.xlu0 %3192
    %3194 = vrot.lane.b32.xlu0 %v3123, 72
    %v3195 = vpop.permute.xlu0 %3194
    %3196 = vrot.lane.b32.xlu0 %v3125, 72
    %v3197 = vpop.permute.xlu0 %3196
    %3198 = vrot.lane.b32.xlu0 %v3124, 72
    %v3199 = vpop.permute.xlu0 %3198
    %vm3237 = vcmask 736838
    %3238 = vst.msk [vmem:[#allocation2 + $0x230] sm:$0xc0] %vm3237, %v3127
    %3239 = vst.msk [vmem:[#allocation2 + $0x240] sm:$0xff] %vm935, %v3129
    %3240 = vst.msk [vmem:[#allocation2 + $0x250] sm:$0xff] %vm935, %v3131
    %3241 = vst.msk [vmem:[#allocation2 + $0x260] sm:$0xff] %vm935, %v3133
    %3242 = vst.msk [vmem:[#allocation2 + $0x270] sm:$0xff] %vm935, %v3135
    %3243 = vst.msk [vmem:[#allocation2 + $0x280] sm:$0xff] %vm935, %v3137
    %3244 = vst.msk [vmem:[#allocation2 + $0x290] sm:$0xff] %vm935, %v3139
    %3245 = vst.msk [vmem:[#allocation2 + $0x2a0] sm:$0xff] %vm935, %v3141
    %3246 = vst.msk [vmem:[#allocation2 + $0x2b0] sm:$0xff] %vm935, %v3143
    %3247 = vst.msk [vmem:[#allocation2 + $0x2c0] sm:$0xff] %vm935, %v3145
    %3248 = vst.msk [vmem:[#allocation2 + $0x2d0] sm:$0xff] %vm935, %v3147
    %3249 = vst.msk [vmem:[#allocation2 + $0x2e0] sm:$0xff] %vm935, %v3149
    %3250 = vst.msk [vmem:[#allocation2 + $0x2f0] sm:$0xff] %vm935, %v3151
    %3251 = vst.msk [vmem:[#allocation2 + $0x300] sm:$0xff] %vm935, %v3153
    %3252 = vst.msk [vmem:[#allocation2 + $0x310] sm:$0xff] %vm935, %v3155
    %3253 = vst.msk [vmem:[#allocation2 + $0x320] sm:$0xff] %vm935, %v3157
    %3254 = vst.msk [vmem:[#allocation2 + $0x330] sm:$0xff] %vm935, %v3159
    %3255 = vst.msk [vmem:[#allocation2 + $0x340] sm:$0xff] %vm935, %v3161
    %3256 = vst.msk [vmem:[#allocation2 + $0x350] sm:$0xff] %vm935, %v3163
    %3257 = vst.msk [vmem:[#allocation2 + $0x360] sm:$0xff] %vm935, %v3165
    %3258 = vst.msk [vmem:[#allocation2 + $0x370] sm:$0xff] %vm935, %v3167
    %3259 = vst.msk [vmem:[#allocation2 + $0x380] sm:$0xff] %vm935, %v3169
    %3260 = vst.msk [vmem:[#allocation2 + $0x390] sm:$0xff] %vm935, %v3171
    %3261 = vst.msk [vmem:[#allocation2 + $0x3a0] sm:$0xff] %vm935, %v3173
    %3262 = vst.msk [vmem:[#allocation2 + $0x3b0] sm:$0xff] %vm935, %v3175
    %3263 = vst.msk [vmem:[#allocation2 + $0x3c0] sm:$0xff] %vm935, %v3177
    %3264 = vst.msk [vmem:[#allocation2 + $0x3d0] sm:$0xff] %vm935, %v3179
    %3265 = vst.msk [vmem:[#allocation2 + $0x3e0] sm:$0xff] %vm935, %v3181
    %3266 = vst.msk [vmem:[#allocation2 + $0x3f0] sm:$0xff] %vm935, %v3183
    %3267 = vst.msk [vmem:[#allocation2 + $0x400] sm:$0xff] %vm935, %v3185
    %3268 = vst.msk [vmem:[#allocation2 + $0x410] sm:$0xff] %vm935, %v3187
    %3269 = vst.msk [vmem:[#allocation2 + $0x420] sm:$0xff] %vm935, %v3189
    %3270 = vst.msk [vmem:[#allocation2 + $0x430] sm:$0xff] %vm935, %v3191
    %3271 = vst.msk [vmem:[#allocation2 + $0x440] sm:$0xff] %vm935, %v3193
    %3272 = vst.msk [vmem:[#allocation2 + $0x450] sm:$0xff] %vm935, %v3195
    %3273 = vst.msk [vmem:[#allocation2 + $0x460] sm:$0xff] %vm935, %v3197
    %vm3274 = vcmask 732736
    %3275 = vst.msk [vmem:[#allocation2 + $0x470] sm:$0xf] %vm3274, %v3199
    %v3276 = vld [vmem:[%s1883 + $0x14] sm:$0xff]
    %v3277 = vld [vmem:[%s1883 + $0x1c] sm:$0xff]
    %v3278 = vld [vmem:[%s1883 + $0x24] sm:$0xff]
    %v3279 = vld [vmem:[%s1883 + $0x2c] sm:$0xff]
    %v3280 = vld [vmem:[%s1883 + $0x34] sm:$0xff]
    %v3281 = vld [vmem:[%s1883 + $0x3c] sm:$0xff]
    %v3282 = vld [vmem:[%s1883 + $0x44] sm:$0xff]
    %v3283 = vld [vmem:[%s1883 + $0x4c] sm:$0xff]
    %v3284 = vld [vmem:[%s1883 + $0x54] sm:$0xff]
    %v3285 = vld [vmem:[%s1883 + $0x5c] sm:$0xff]
    %v3286 = vld [vmem:[%s1883 + $0x64] sm:$0xff]
    %v3287 = vld [vmem:[%s1883 + $0x6c] sm:$0xff]
    %v3288 = vld [vmem:[%s1883 + $0x74] sm:$0xff]
    %v3289 = vld [vmem:[%s1883 + $0x7c] sm:$0xff]
    %v3290 = vld [vmem:[%s1883 + $0x84] sm:$0xff]
    %v3291 = vld [vmem:[%s1883 + $0x8c] sm:$0xff]
    %v3292 = vld [vmem:[%s1883 + $0x94] sm:$0xff]
    %v3293 = vld [vmem:[%s1883 + $0x9c] sm:$0xff]
    %v3294 = vld [vmem:[%s1883 + $0xa4] sm:$0xff]
    %v3295 = vld [vmem:[%s1883 + $0xac] sm:$0xff]
    %v3296 = vld [vmem:[%s1883 + $0xb4] sm:$0xff]
    %v3297 = vld [vmem:[%s1883 + $0xbc] sm:$0xff]
    %v3298 = vld [vmem:[%s1883 + $0xc4] sm:$0xff]
    %v3299 = vld [vmem:[%s1883 + $0xcc] sm:$0xff]
    %v3300 = vld [vmem:[%s1883 + $0xd4] sm:$0xff]
    %v3301 = vld [vmem:[%s1883 + $0xdc] sm:$0xff]
    %v3302 = vld [vmem:[%s1883 + $0xe4] sm:$0xff]
    %v3303 = vld [vmem:[%s1883 + $0xec] sm:$0xff]
    %v3304 = vld [vmem:[%s1883 + $0xf4] sm:$0xff]
    %v3305 = vld [vmem:[%s1883 + $0xfc] sm:$0xff]
    %v3306 = vld [vmem:[%s1883 + $0x104] sm:$0xff]
    %v3307 = vld [vmem:[%s1883 + $0x10c] sm:$0xff]
    %v3308 = vld [vmem:[%s1883 + $0x114] sm:$0xff]
    %v3309 = vld [vmem:[%s1883 + $0x11c] sm:$0xff]
    %v3310 = vld [vmem:[%s1883 + $0x124] sm:$0xff]
    %v3311 = vld [vmem:[%s1883 + $0x12c] sm:$0x3f]
    %v3348 = vrot.slane %v3276, 2
    %v3349 = vrot.slane %v3277, 2
    %v3350 = vsel %vm1956, %v3348, %v3349
    %v3351 = vrot.slane %v3278, 2
    %v3352 = vsel %vm1956, %v3349, %v3351
    %v3353 = vrot.slane %v3279, 2
    %v3354 = vsel %vm1956, %v3351, %v3353
    %v3355 = vrot.slane %v3280, 2
    %v3356 = vsel %vm1956, %v3353, %v3355
    %v3357 = vrot.slane %v3281, 2
    %v3358 = vsel %vm1956, %v3355, %v3357
    %v3359 = vrot.slane %v3282, 2
    %v3360 = vsel %vm1956, %v3357, %v3359
    %v3361 = vrot.slane %v3283, 2
    %v3362 = vsel %vm1956, %v3359, %v3361
    %v3363 = vrot.slane %v3284, 2
    %v3364 = vsel %vm1956, %v3361, %v3363
    %v3365 = vrot.slane %v3285, 2
    %v3366 = vsel %vm1956, %v3363, %v3365
    %v3367 = vrot.slane %v3286, 2
    %v3368 = vsel %vm1956, %v3365, %v3367
    %v3369 = vrot.slane %v3287, 2
    %v3370 = vsel %vm1956, %v3367, %v3369
    %v3371 = vrot.slane %v3288, 2
    %v3372 = vsel %vm1956, %v3369, %v3371
    %v3373 = vrot.slane %v3289, 2
    %v3374 = vsel %vm1956, %v3371, %v3373
    %v3375 = vrot.slane %v3290, 2
    %v3376 = vsel %vm1956, %v3373, %v3375
    %v3377 = vrot.slane %v3291, 2
    %v3378 = vsel %vm1956, %v3375, %v3377
    %v3379 = vrot.slane %v3292, 2
    %v3380 = vsel %vm1956, %v3377, %v3379
    %v3381 = vrot.slane %v3293, 2
    %v3382 = vsel %vm1956, %v3379, %v3381
    %v3383 = vrot.slane %v3294, 2
    %v3384 = vsel %vm1956, %v3381, %v3383
    %v3385 = vrot.slane %v3295, 2
    %v3386 = vsel %vm1956, %v3383, %v3385
    %v3387 = vrot.slane %v3296, 2
    %v3388 = vsel %vm1956, %v3385, %v3387
    %v3389 = vrot.slane %v3297, 2
    %v3390 = vsel %vm1956, %v3387, %v3389
    %v3391 = vrot.slane %v3298, 2
    %v3392 = vsel %vm1956, %v3389, %v3391
    %v3393 = vrot.slane %v3299, 2
    %v3394 = vsel %vm1956, %v3391, %v3393
    %v3395 = vrot.slane %v3300, 2
    %v3396 = vsel %vm1956, %v3393, %v3395
    %v3397 = vrot.slane %v3301, 2
    %v3398 = vsel %vm1956, %v3395, %v3397
    %v3399 = vrot.slane %v3302, 2
    %v3400 = vsel %vm1956, %v3397, %v3399
    %v3401 = vrot.slane %v3303, 2
    %v3402 = vsel %vm1956, %v3399, %v3401
    %v3403 = vrot.slane %v3304, 2
    %v3404 = vsel %vm1956, %v3401, %v3403
    %v3405 = vrot.slane %v3305, 2
    %v3406 = vsel %vm1956, %v3403, %v3405
    %v3407 = vrot.slane %v3306, 2
    %v3408 = vsel %vm1956, %v3405, %v3407
    %v3409 = vrot.slane %v3307, 2
    %v3410 = vsel %vm1956, %v3407, %v3409
    %v3411 = vrot.slane %v3308, 2
    %v3412 = vsel %vm1956, %v3409, %v3411
    %v3413 = vrot.slane %v3309, 2
    %v3414 = vsel %vm1956, %v3411, %v3413
    %v3415 = vrot.slane %v3310, 2
    %v3416 = vsel %vm1956, %v3413, %v3415
    %v3417 = vrot.slane %v3311, 2
    %v3418 = vsel %vm1956, %v3415, %v3417
    %3419 = vrot.lane.b32.xlu0 %v3348, 90
    %v3420 = vpop.permute.xlu0 %3419
    %3421 = vrot.lane.b32.xlu0 %v3350, 90
    %v3422 = vpop.permute.xlu0 %3421
    %3423 = vrot.lane.b32.xlu0 %v3352, 90
    %v3424 = vpop.permute.xlu0 %3423
    %3425 = vrot.lane.b32.xlu0 %v3354, 90
    %v3426 = vpop.permute.xlu0 %3425
    %3427 = vrot.lane.b32.xlu0 %v3356, 90
    %v3428 = vpop.permute.xlu0 %3427
    %3429 = vrot.lane.b32.xlu0 %v3358, 90
    %v3430 = vpop.permute.xlu0 %3429
    %3431 = vrot.lane.b32.xlu0 %v3360, 90
    %v3432 = vpop.permute.xlu0 %3431
    %3433 = vrot.lane.b32.xlu0 %v3362, 90
    %v3434 = vpop.permute.xlu0 %3433
    %3435 = vrot.lane.b32.xlu0 %v3364, 90
    %v3436 = vpop.permute.xlu0 %3435
    %3437 = vrot.lane.b32.xlu0 %v3366, 90
    %v3438 = vpop.permute.xlu0 %3437
    %3439 = vrot.lane.b32.xlu0 %v3368, 90
    %v3440 = vpop.permute.xlu0 %3439
    %3441 = vrot.lane.b32.xlu0 %v3370, 90
    %v3442 = vpop.permute.xlu0 %3441
    %3443 = vrot.lane.b32.xlu0 %v3372, 90
    %v3444 = vpop.permute.xlu0 %3443
    %3445 = vrot.lane.b32.xlu0 %v3374, 90
    %v3446 = vpop.permute.xlu0 %3445
    %3447 = vrot.lane.b32.xlu0 %v3376, 90
    %v3448 = vpop.permute.xlu0 %3447
    %3449 = vrot.lane.b32.xlu0 %v3378, 90
    %v3450 = vpop.permute.xlu0 %3449
    %3451 = vrot.lane.b32.xlu0 %v3380, 90
    %v3452 = vpop.permute.xlu0 %3451
    %3453 = vrot.lane.b32.xlu0 %v3382, 90
    %v3454 = vpop.permute.xlu0 %3453
    %3455 = vrot.lane.b32.xlu0 %v3384, 90
    %v3456 = vpop.permute.xlu0 %3455
    %3457 = vrot.lane.b32.xlu0 %v3386, 90
    %v3458 = vpop.permute.xlu0 %3457
    %3459 = vrot.lane.b32.xlu0 %v3388, 90
    %v3460 = vpop.permute.xlu0 %3459
    %3461 = vrot.lane.b32.xlu0 %v3390, 90
    %v3462 = vpop.permute.xlu0 %3461
    %3463 = vrot.lane.b32.xlu0 %v3392, 90
    %v3464 = vpop.permute.xlu0 %3463
    %3465 = vrot.lane.b32.xlu0 %v3394, 90
    %v3466 = vpop.permute.xlu0 %3465
    %3467 = vrot.lane.b32.xlu0 %v3396, 90
    %v3468 = vpop.permute.xlu0 %3467
    %3469 = vrot.lane.b32.xlu0 %v3398, 90
    %v3470 = vpop.permute.xlu0 %3469
    %3471 = vrot.lane.b32.xlu0 %v3400, 90
    %v3472 = vpop.permute.xlu0 %3471
    %3473 = vrot.lane.b32.xlu0 %v3402, 90
    %v3474 = vpop.permute.xlu0 %3473
    %3475 = vrot.lane.b32.xlu0 %v3404, 90
    %v3476 = vpop.permute.xlu0 %3475
    %3477 = vrot.lane.b32.xlu0 %v3406, 90
    %v3478 = vpop.permute.xlu0 %3477
    %3479 = vrot.lane.b32.xlu0 %v3408, 90
    %v3480 = vpop.permute.xlu0 %3479
    %3481 = vrot.lane.b32.xlu0 %v3410, 90
    %v3482 = vpop.permute.xlu0 %3481
    %3483 = vrot.lane.b32.xlu0 %v3412, 90
    %v3484 = vpop.permute.xlu0 %3483
    %3485 = vrot.lane.b32.xlu0 %v3414, 90
    %v3486 = vpop.permute.xlu0 %3485
    %3487 = vrot.lane.b32.xlu0 %v3416, 90
    %v3488 = vpop.permute.xlu0 %3487
    %3489 = vrot.lane.b32.xlu0 %v3418, 90
    %v3490 = vpop.permute.xlu0 %3489
    %3491 = vrot.lane.b32.xlu0 %v3417, 90
    %v3492 = vpop.permute.xlu0 %3491
    %vm3530 = vcmask 884438
    %3531 = vst.msk [vmem:[#allocation2 + $0x230] sm:$0xc0] %vm3530, %v3420
    %3532 = vst.msk [vmem:[#allocation2 + $0x240] sm:$0xff] %vm1153, %v3422
    %3533 = vst.msk [vmem:[#allocation2 + $0x250] sm:$0xff] %vm1153, %v3424
    %3534 = vst.msk [vmem:[#allocation2 + $0x260] sm:$0xff] %vm1153, %v3426
    %3535 = vst.msk [vmem:[#allocation2 + $0x270] sm:$0xff] %vm1153, %v3428
    %3536 = vst.msk [vmem:[#allocation2 + $0x280] sm:$0xff] %vm1153, %v3430
    %3537 = vst.msk [vmem:[#allocation2 + $0x290] sm:$0xff] %vm1153, %v3432
    %3538 = vst.msk [vmem:[#allocation2 + $0x2a0] sm:$0xff] %vm1153, %v3434
    %3539 = vst.msk [vmem:[#allocation2 + $0x2b0] sm:$0xff] %vm1153, %v3436
    %3540 = vst.msk [vmem:[#allocation2 + $0x2c0] sm:$0xff] %vm1153, %v3438
    %3541 = vst.msk [vmem:[#allocation2 + $0x2d0] sm:$0xff] %vm1153, %v3440
    %3542 = vst.msk [vmem:[#allocation2 + $0x2e0] sm:$0xff] %vm1153, %v3442
    %3543 = vst.msk [vmem:[#allocation2 + $0x2f0] sm:$0xff] %vm1153, %v3444
    %3544 = vst.msk [vmem:[#allocation2 + $0x300] sm:$0xff] %vm1153, %v3446
    %3545 = vst.msk [vmem:[#allocation2 + $0x310] sm:$0xff] %vm1153, %v3448
    %3546 = vst.msk [vmem:[#allocation2 + $0x320] sm:$0xff] %vm1153, %v3450
    %3547 = vst.msk [vmem:[#allocation2 + $0x330] sm:$0xff] %vm1153, %v3452
    %3548 = vst.msk [vmem:[#allocation2 + $0x340] sm:$0xff] %vm1153, %v3454
    %3549 = vst.msk [vmem:[#allocation2 + $0x350] sm:$0xff] %vm1153, %v3456
    %3550 = vst.msk [vmem:[#allocation2 + $0x360] sm:$0xff] %vm1153, %v3458
    %3551 = vst.msk [vmem:[#allocation2 + $0x370] sm:$0xff] %vm1153, %v3460
    %3552 = vst.msk [vmem:[#allocation2 + $0x380] sm:$0xff] %vm1153, %v3462
    %3553 = vst.msk [vmem:[#allocation2 + $0x390] sm:$0xff] %vm1153, %v3464
    %3554 = vst.msk [vmem:[#allocation2 + $0x3a0] sm:$0xff] %vm1153, %v3466
    %3555 = vst.msk [vmem:[#allocation2 + $0x3b0] sm:$0xff] %vm1153, %v3468
    %3556 = vst.msk [vmem:[#allocation2 + $0x3c0] sm:$0xff] %vm1153, %v3470
    %3557 = vst.msk [vmem:[#allocation2 + $0x3d0] sm:$0xff] %vm1153, %v3472
    %3558 = vst.msk [vmem:[#allocation2 + $0x3e0] sm:$0xff] %vm1153, %v3474
    %3559 = vst.msk [vmem:[#allocation2 + $0x3f0] sm:$0xff] %vm1153, %v3476
    %3560 = vst.msk [vmem:[#allocation2 + $0x400] sm:$0xff] %vm1153, %v3478
    %3561 = vst.msk [vmem:[#allocation2 + $0x410] sm:$0xff] %vm1153, %v3480
    %3562 = vst.msk [vmem:[#allocation2 + $0x420] sm:$0xff] %vm1153, %v3482
    %3563 = vst.msk [vmem:[#allocation2 + $0x430] sm:$0xff] %vm1153, %v3484
    %3564 = vst.msk [vmem:[#allocation2 + $0x440] sm:$0xff] %vm1153, %v3486
    %3565 = vst.msk [vmem:[#allocation2 + $0x450] sm:$0xff] %vm1153, %v3488
    %3566 = vst.msk [vmem:[#allocation2 + $0x460] sm:$0xff] %vm1153, %v3490
    %vm3567 = vcmask 880336
    %3568 = vst.msk [vmem:[#allocation2 + $0x470] sm:$0xf] %vm3567, %v3492
    %v3569 = vld [vmem:[%s1883 + $0x24] sm:$0xff]
    %v3570 = vld [vmem:[%s1883 + $0x2c] sm:$0xff]
    %v3571 = vld [vmem:[%s1883 + $0x34] sm:$0xff]
    %v3572 = vld [vmem:[%s1883 + $0x3c] sm:$0xff]
    %v3573 = vld [vmem:[%s1883 + $0x44] sm:$0xff]
    %v3574 = vld [vmem:[%s1883 + $0x4c] sm:$0xff]
    %v3575 = vld [vmem:[%s1883 + $0x54] sm:$0xff]
    %v3576 = vld [vmem:[%s1883 + $0x5c] sm:$0xff]
    %v3577 = vld [vmem:[%s1883 + $0x64] sm:$0xff]
    %v3578 = vld [vmem:[%s1883 + $0x6c] sm:$0xff]
    %v3579 = vld [vmem:[%s1883 + $0x74] sm:$0xff]
    %v3580 = vld [vmem:[%s1883 + $0x7c] sm:$0xff]
    %v3581 = vld [vmem:[%s1883 + $0x84] sm:$0xff]
    %v3582 = vld [vmem:[%s1883 + $0x8c] sm:$0xff]
    %v3583 = vld [vmem:[%s1883 + $0x94] sm:$0xff]
    %v3584 = vld [vmem:[%s1883 + $0x9c] sm:$0xff]
    %v3585 = vld [vmem:[%s1883 + $0xa4] sm:$0xff]
    %v3586 = vld [vmem:[%s1883 + $0xac] sm:$0xff]
    %v3587 = vld [vmem:[%s1883 + $0xb4] sm:$0xff]
    %v3588 = vld [vmem:[%s1883 + $0xbc] sm:$0xff]
    %v3589 = vld [vmem:[%s1883 + $0xc4] sm:$0xff]
    %v3590 = vld [vmem:[%s1883 + $0xcc] sm:$0xff]
    %v3591 = vld [vmem:[%s1883 + $0xd4] sm:$0xff]
    %v3592 = vld [vmem:[%s1883 + $0xdc] sm:$0xff]
    %v3593 = vld [vmem:[%s1883 + $0xe4] sm:$0xff]
    %v3594 = vld [vmem:[%s1883 + $0xec] sm:$0xff]
    %v3595 = vld [vmem:[%s1883 + $0xf4] sm:$0xff]
    %v3596 = vld [vmem:[%s1883 + $0xfc] sm:$0xff]
    %v3597 = vld [vmem:[%s1883 + $0x104] sm:$0xff]
    %v3598 = vld [vmem:[%s1883 + $0x10c] sm:$0xff]
    %v3599 = vld [vmem:[%s1883 + $0x114] sm:$0xff]
    %v3600 = vld [vmem:[%s1883 + $0x11c] sm:$0xff]
    %v3601 = vld [vmem:[%s1883 + $0x124] sm:$0xff]
    %v3602 = vld [vmem:[%s1883 + $0x12c] sm:$0xff]
    %v3603 = vld [vmem:[%s1883 + $0x134] sm:$0xff]
    %v3604 = vld [vmem:[%s1883 + $0x13c] sm:$0x3f]
    %v3641 = vrot.slane %v3569, 2
    %v3642 = vrot.slane %v3570, 2
    %v3643 = vsel %vm1956, %v3641, %v3642
    %v3644 = vrot.slane %v3571, 2
    %v3645 = vsel %vm1956, %v3642, %v3644
    %v3646 = vrot.slane %v3572, 2
    %v3647 = vsel %vm1956, %v3644, %v3646
    %v3648 = vrot.slane %v3573, 2
    %v3649 = vsel %vm1956, %v3646, %v3648
    %v3650 = vrot.slane %v3574, 2
    %v3651 = vsel %vm1956, %v3648, %v3650
    %v3652 = vrot.slane %v3575, 2
    %v3653 = vsel %vm1956, %v3650, %v3652
    %v3654 = vrot.slane %v3576, 2
    %v3655 = vsel %vm1956, %v3652, %v3654
    %v3656 = vrot.slane %v3577, 2
    %v3657 = vsel %vm1956, %v3654, %v3656
    %v3658 = vrot.slane %v3578, 2
    %v3659 = vsel %vm1956, %v3656, %v3658
    %v3660 = vrot.slane %v3579, 2
    %v3661 = vsel %vm1956, %v3658, %v3660
    %v3662 = vrot.slane %v3580, 2
    %v3663 = vsel %vm1956, %v3660, %v3662
    %v3664 = vrot.slane %v3581, 2
    %v3665 = vsel %vm1956, %v3662, %v3664
    %v3666 = vrot.slane %v3582, 2
    %v3667 = vsel %vm1956, %v3664, %v3666
    %v3668 = vrot.slane %v3583, 2
    %v3669 = vsel %vm1956, %v3666, %v3668
    %v3670 = vrot.slane %v3584, 2
    %v3671 = vsel %vm1956, %v3668, %v3670
    %v3672 = vrot.slane %v3585, 2
    %v3673 = vsel %vm1956, %v3670, %v3672
    %v3674 = vrot.slane %v3586, 2
    %v3675 = vsel %vm1956, %v3672, %v3674
    %v3676 = vrot.slane %v3587, 2
    %v3677 = vsel %vm1956, %v3674, %v3676
    %v3678 = vrot.slane %v3588, 2
    %v3679 = vsel %vm1956, %v3676, %v3678
    %v3680 = vrot.slane %v3589, 2
    %v3681 = vsel %vm1956, %v3678, %v3680
    %v3682 = vrot.slane %v3590, 2
    %v3683 = vsel %vm1956, %v3680, %v3682
    %v3684 = vrot.slane %v3591, 2
    %v3685 = vsel %vm1956, %v3682, %v3684
    %v3686 = vrot.slane %v3592, 2
    %v3687 = vsel %vm1956, %v3684, %v3686
    %v3688 = vrot.slane %v3593, 2
    %v3689 = vsel %vm1956, %v3686, %v3688
    %v3690 = vrot.slane %v3594, 2
    %v3691 = vsel %vm1956, %v3688, %v3690
    %v3692 = vrot.slane %v3595, 2
    %v3693 = vsel %vm1956, %v3690, %v3692
    %v3694 = vrot.slane %v3596, 2
    %v3695 = vsel %vm1956, %v3692, %v3694
    %v3696 = vrot.slane %v3597, 2
    %v3697 = vsel %vm1956, %v3694, %v3696
    %v3698 = vrot.slane %v3598, 2
    %v3699 = vsel %vm1956, %v3696, %v3698
    %v3700 = vrot.slane %v3599, 2
    %v3701 = vsel %vm1956, %v3698, %v3700
    %v3702 = vrot.slane %v3600, 2
    %v3703 = vsel %vm1956, %v3700, %v3702
    %v3704 = vrot.slane %v3601, 2
    %v3705 = vsel %vm1956, %v3702, %v3704
    %v3706 = vrot.slane %v3602, 2
    %v3707 = vsel %vm1956, %v3704, %v3706
    %v3708 = vrot.slane %v3603, 2
    %v3709 = vsel %vm1956, %v3706, %v3708
    %v3710 = vrot.slane %v3604, 2
    %v3711 = vsel %vm1956, %v3708, %v3710
    %3712 = vrot.lane.b32.xlu0 %v3641, 108
    %v3713 = vpop.permute.xlu0 %3712
    %3714 = vrot.lane.b32.xlu0 %v3643, 108
    %v3715 = vpop.permute.xlu0 %3714
    %3716 = vrot.lane.b32.xlu0 %v3645, 108
    %v3717 = vpop.permute.xlu0 %3716
    %3718 = vrot.lane.b32.xlu0 %v3647, 108
    %v3719 = vpop.permute.xlu0 %3718
    %3720 = vrot.lane.b32.xlu0 %v3649, 108
    %v3721 = vpop.permute.xlu0 %3720
    %3722 = vrot.lane.b32.xlu0 %v3651, 108
    %v3723 = vpop.permute.xlu0 %3722
    %3724 = vrot.lane.b32.xlu0 %v3653, 108
    %v3725 = vpop.permute.xlu0 %3724
    %3726 = vrot.lane.b32.xlu0 %v3655, 108
    %v3727 = vpop.permute.xlu0 %3726
    %3728 = vrot.lane.b32.xlu0 %v3657, 108
    %v3729 = vpop.permute.xlu0 %3728
    %3730 = vrot.lane.b32.xlu0 %v3659, 108
    %v3731 = vpop.permute.xlu0 %3730
    %3732 = vrot.lane.b32.xlu0 %v3661, 108
    %v3733 = vpop.permute.xlu0 %3732
    %3734 = vrot.lane.b32.xlu0 %v3663, 108
    %v3735 = vpop.permute.xlu0 %3734
    %3736 = vrot.lane.b32.xlu0 %v3665, 108
    %v3737 = vpop.permute.xlu0 %3736
    %3738 = vrot.lane.b32.xlu0 %v3667, 108
    %v3739 = vpop.permute.xlu0 %3738
    %3740 = vrot.lane.b32.xlu0 %v3669, 108
    %v3741 = vpop.permute.xlu0 %3740
    %3742 = vrot.lane.b32.xlu0 %v3671, 108
    %v3743 = vpop.permute.xlu0 %3742
    %3744 = vrot.lane.b32.xlu0 %v3673, 108
    %v3745 = vpop.permute.xlu0 %3744
    %3746 = vrot.lane.b32.xlu0 %v3675, 108
    %v3747 = vpop.permute.xlu0 %3746
    %3748 = vrot.lane.b32.xlu0 %v3677, 108
    %v3749 = vpop.permute.xlu0 %3748
    %3750 = vrot.lane.b32.xlu0 %v3679, 108
    %v3751 = vpop.permute.xlu0 %3750
    %3752 = vrot.lane.b32.xlu0 %v3681, 108
    %v3753 = vpop.permute.xlu0 %3752
    %3754 = vrot.lane.b32.xlu0 %v3683, 108
    %v3755 = vpop.permute.xlu0 %3754
    %3756 = vrot.lane.b32.xlu0 %v3685, 108
    %v3757 = vpop.permute.xlu0 %3756
    %3758 = vrot.lane.b32.xlu0 %v3687, 108
    %v3759 = vpop.permute.xlu0 %3758
    %3760 = vrot.lane.b32.xlu0 %v3689, 108
    %v3761 = vpop.permute.xlu0 %3760
    %3762 = vrot.lane.b32.xlu0 %v3691, 108
    %v3763 = vpop.permute.xlu0 %3762
    %3764 = vrot.lane.b32.xlu0 %v3693, 108
    %v3765 = vpop.permute.xlu0 %3764
    %3766 = vrot.lane.b32.xlu0 %v3695, 108
    %v3767 = vpop.permute.xlu0 %3766
    %3768 = vrot.lane.b32.xlu0 %v3697, 108
    %v3769 = vpop.permute.xlu0 %3768
    %3770 = vrot.lane.b32.xlu0 %v3699, 108
    %v3771 = vpop.permute.xlu0 %3770
    %3772 = vrot.lane.b32.xlu0 %v3701, 108
    %v3773 = vpop.permute.xlu0 %3772
    %3774 = vrot.lane.b32.xlu0 %v3703, 108
    %v3775 = vpop.permute.xlu0 %3774
    %3776 = vrot.lane.b32.xlu0 %v3705, 108
    %v3777 = vpop.permute.xlu0 %3776
    %3778 = vrot.lane.b32.xlu0 %v3707, 108
    %v3779 = vpop.permute.xlu0 %3778
    %3780 = vrot.lane.b32.xlu0 %v3709, 108
    %v3781 = vpop.permute.xlu0 %3780
    %3782 = vrot.lane.b32.xlu0 %v3711, 108
    %v3783 = vpop.permute.xlu0 %3782
    %3784 = vrot.lane.b32.xlu0 %v3710, 108
    %v3785 = vpop.permute.xlu0 %3784
    %vm3823 = vcmask 1032038
    %3824 = vst.msk [vmem:[#allocation2 + $0x230] sm:$0xc0] %vm3823, %v3713
    %3825 = vst.msk [vmem:[#allocation2 + $0x240] sm:$0xff] %vm1371, %v3715
    %3826 = vst.msk [vmem:[#allocation2 + $0x250] sm:$0xff] %vm1371, %v3717
    %3827 = vst.msk [vmem:[#allocation2 + $0x260] sm:$0xff] %vm1371, %v3719
    %3828 = vst.msk [vmem:[#allocation2 + $0x270] sm:$0xff] %vm1371, %v3721
    %3829 = vst.msk [vmem:[#allocation2 + $0x280] sm:$0xff] %vm1371, %v3723
    %3830 = vst.msk [vmem:[#allocation2 + $0x290] sm:$0xff] %vm1371, %v3725
    %3831 = vst.msk [vmem:[#allocation2 + $0x2a0] sm:$0xff] %vm1371, %v3727
    %3832 = vst.msk [vmem:[#allocation2 + $0x2b0] sm:$0xff] %vm1371, %v3729
    %3833 = vst.msk [vmem:[#allocation2 + $0x2c0] sm:$0xff] %vm1371, %v3731
    %3834 = vst.msk [vmem:[#allocation2 + $0x2d0] sm:$0xff] %vm1371, %v3733
    %3835 = vst.msk [vmem:[#allocation2 + $0x2e0] sm:$0xff] %vm1371, %v3735
    %3836 = vst.msk [vmem:[#allocation2 + $0x2f0] sm:$0xff] %vm1371, %v3737
    %3837 = vst.msk [vmem:[#allocation2 + $0x300] sm:$0xff] %vm1371, %v3739
    %3838 = vst.msk [vmem:[#allocation2 + $0x310] sm:$0xff] %vm1371, %v3741
    %3839 = vst.msk [vmem:[#allocation2 + $0x320] sm:$0xff] %vm1371, %v3743
    %3840 = vst.msk [vmem:[#allocation2 + $0x330] sm:$0xff] %vm1371, %v3745
    %3841 = vst.msk [vmem:[#allocation2 + $0x340] sm:$0xff] %vm1371, %v3747
    %3842 = vst.msk [vmem:[#allocation2 + $0x350] sm:$0xff] %vm1371, %v3749
    %3843 = vst.msk [vmem:[#allocation2 + $0x360] sm:$0xff] %vm1371, %v3751
    %3844 = vst.msk [vmem:[#allocation2 + $0x370] sm:$0xff] %vm1371, %v3753
    %3845 = vst.msk [vmem:[#allocation2 + $0x380] sm:$0xff] %vm1371, %v3755
    %3846 = vst.msk [vmem:[#allocation2 + $0x390] sm:$0xff] %vm1371, %v3757
    %3847 = vst.msk [vmem:[#allocation2 + $0x3a0] sm:$0xff] %vm1371, %v3759
    %3848 = vst.msk [vmem:[#allocation2 + $0x3b0] sm:$0xff] %vm1371, %v3761
    %3849 = vst.msk [vmem:[#allocation2 + $0x3c0] sm:$0xff] %vm1371, %v3763
    %3850 = vst.msk [vmem:[#allocation2 + $0x3d0] sm:$0xff] %vm1371, %v3765
    %3851 = vst.msk [vmem:[#allocation2 + $0x3e0] sm:$0xff] %vm1371, %v3767
    %3852 = vst.msk [vmem:[#allocation2 + $0x3f0] sm:$0xff] %vm1371, %v3769
    %3853 = vst.msk [vmem:[#allocation2 + $0x400] sm:$0xff] %vm1371, %v3771
    %3854 = vst.msk [vmem:[#allocation2 + $0x410] sm:$0xff] %vm1371, %v3773
    %3855 = vst.msk [vmem:[#allocation2 + $0x420] sm:$0xff] %vm1371, %v3775
    %3856 = vst.msk [vmem:[#allocation2 + $0x430] sm:$0xff] %vm1371, %v3777
    %3857 = vst.msk [vmem:[#allocation2 + $0x440] sm:$0xff] %vm1371, %v3779
    %3858 = vst.msk [vmem:[#allocation2 + $0x450] sm:$0xff] %vm1371, %v3781
    %3859 = vst.msk [vmem:[#allocation2 + $0x460] sm:$0xff] %vm1371, %v3783
    %vm3860 = vcmask 1027936
    %3861 = vst.msk [vmem:[#allocation2 + $0x470] sm:$0xf] %vm3860, %v3785
    %v3862 = vld [vmem:[%s1883 + $0x25] sm:$0xff]
    %v3863 = vld [vmem:[%s1883 + $0x2d] sm:$0xff]
    %v3864 = vld [vmem:[%s1883 + $0x35] sm:$0xff]
    %v3865 = vld [vmem:[%s1883 + $0x3d] sm:$0xff]
    %v3866 = vld [vmem:[%s1883 + $0x45] sm:$0xff]
    %v3867 = vld [vmem:[%s1883 + $0x4d] sm:$0xff]
    %v3868 = vld [vmem:[%s1883 + $0x55] sm:$0xff]
    %v3869 = vld [vmem:[%s1883 + $0x5d] sm:$0xff]
    %v3870 = vld [vmem:[%s1883 + $0x65] sm:$0xff]
    %v3871 = vld [vmem:[%s1883 + $0x6d] sm:$0xff]
    %v3872 = vld [vmem:[%s1883 + $0x75] sm:$0xff]
    %v3873 = vld [vmem:[%s1883 + $0x7d] sm:$0xff]
    %v3874 = vld [vmem:[%s1883 + $0x85] sm:$0xff]
    %v3875 = vld [vmem:[%s1883 + $0x8d] sm:$0xff]
    %v3876 = vld [vmem:[%s1883 + $0x95] sm:$0xff]
    %v3877 = vld [vmem:[%s1883 + $0x9d] sm:$0xff]
    %v3878 = vld [vmem:[%s1883 + $0xa5] sm:$0xff]
    %v3879 = vld [vmem:[%s1883 + $0xad] sm:$0xff]
    %v3880 = vld [vmem:[%s1883 + $0xb5] sm:$0xff]
    %v3881 = vld [vmem:[%s1883 + $0xbd] sm:$0xff]
    %v3882 = vld [vmem:[%s1883 + $0xc5] sm:$0xff]
    %v3883 = vld [vmem:[%s1883 + $0xcd] sm:$0xff]
    %v3884 = vld [vmem:[%s1883 + $0xd5] sm:$0xff]
    %v3885 = vld [vmem:[%s1883 + $0xdd] sm:$0xff]
    %v3886 = vld [vmem:[%s1883 + $0xe5] sm:$0xff]
    %v3887 = vld [vmem:[%s1883 + $0xed] sm:$0xff]
    %v3888 = vld [vmem:[%s1883 + $0xf5] sm:$0xff]
    %v3889 = vld [vmem:[%s1883 + $0xfd] sm:$0xff]
    %v3890 = vld [vmem:[%s1883 + $0x105] sm:$0xff]
    %v3891 = vld [vmem:[%s1883 + $0x10d] sm:$0xff]
    %v3892 = vld [vmem:[%s1883 + $0x115] sm:$0xff]
    %v3893 = vld [vmem:[%s1883 + $0x11d] sm:$0xff]
    %v3894 = vld [vmem:[%s1883 + $0x125] sm:$0xff]
    %v3895 = vld [vmem:[%s1883 + $0x12d] sm:$0xff]
    %v3896 = vld [vmem:[%s1883 + $0x135] sm:$0xff]
    %v3897 = vld [vmem:[%s1883 + $0x13d] sm:$0x3f]
    %v3934 = vrot.slane %v3862, 2
    %v3935 = vrot.slane %v3863, 2
    %v3936 = vsel %vm1956, %v3934, %v3935
    %v3937 = vrot.slane %v3864, 2
    %v3938 = vsel %vm1956, %v3935, %v3937
    %v3939 = vrot.slane %v3865, 2
    %v3940 = vsel %vm1956, %v3937, %v3939
    %v3941 = vrot.slane %v3866, 2
    %v3942 = vsel %vm1956, %v3939, %v3941
    %v3943 = vrot.slane %v3867, 2
    %v3944 = vsel %vm1956, %v3941, %v3943
    %v3945 = vrot.slane %v3868, 2
    %v3946 = vsel %vm1956, %v3943, %v3945
    %v3947 = vrot.slane %v3869, 2
    %v3948 = vsel %vm1956, %v3945, %v3947
    %v3949 = vrot.slane %v3870, 2
    %v3950 = vsel %vm1956, %v3947, %v3949
    %v3951 = vrot.slane %v3871, 2
    %v3952 = vsel %vm1956, %v3949, %v3951
    %v3953 = vrot.slane %v3872, 2
    %v3954 = vsel %vm1956, %v3951, %v3953
    %v3955 = vrot.slane %v3873, 2
    %v3956 = vsel %vm1956, %v3953, %v3955
    %v3957 = vrot.slane %v3874, 2
    %v3958 = vsel %vm1956, %v3955, %v3957
    %v3959 = vrot.slane %v3875, 2
    %v3960 = vsel %vm1956, %v3957, %v3959
    %v3961 = vrot.slane %v3876, 2
    %v3962 = vsel %vm1956, %v3959, %v3961
    %v3963 = vrot.slane %v3877, 2
    %v3964 = vsel %vm1956, %v3961, %v3963
    %v3965 = vrot.slane %v3878, 2
    %v3966 = vsel %vm1956, %v3963, %v3965
    %v3967 = vrot.slane %v3879, 2
    %v3968 = vsel %vm1956, %v3965, %v3967
    %v3969 = vrot.slane %v3880, 2
    %v3970 = vsel %vm1956, %v3967, %v3969
    %v3971 = vrot.slane %v3881, 2
    %v3972 = vsel %vm1956, %v3969, %v3971
    %v3973 = vrot.slane %v3882, 2
    %v3974 = vsel %vm1956, %v3971, %v3973
    %v3975 = vrot.slane %v3883, 2
    %v3976 = vsel %vm1956, %v3973, %v3975
    %v3977 = vrot.slane %v3884, 2
    %v3978 = vsel %vm1956, %v3975, %v3977
    %v3979 = vrot.slane %v3885, 2
    %v3980 = vsel %vm1956, %v3977, %v3979
    %v3981 = vrot.slane %v3886, 2
    %v3982 = vsel %vm1956, %v3979, %v3981
    %v3983 = vrot.slane %v3887, 2
    %v3984 = vsel %vm1956, %v3981, %v3983
    %v3985 = vrot.slane %v3888, 2
    %v3986 = vsel %vm1956, %v3983, %v3985
    %v3987 = vrot.slane %v3889, 2
    %v3988 = vsel %vm1956, %v3985, %v3987
    %v3989 = vrot.slane %v3890, 2
    %v3990 = vsel %vm1956, %v3987, %v3989
    %v3991 = vrot.slane %v3891, 2
    %v3992 = vsel %vm1956, %v3989, %v3991
    %v3993 = vrot.slane %v3892, 2
    %v3994 = vsel %vm1956, %v3991, %v3993
    %v3995 = vrot.slane %v3893, 2
    %v3996 = vsel %vm1956, %v3993, %v3995
    %v3997 = vrot.slane %v3894, 2
    %v3998 = vsel %vm1956, %v3995, %v3997
    %v3999 = vrot.slane %v3895, 2
    %v4000 = vsel %vm1956, %v3997, %v3999
    %v4001 = vrot.slane %v3896, 2
    %v4002 = vsel %vm1956, %v3999, %v4001
    %v4003 = vrot.slane %v3897, 2
    %v4004 = vsel %vm1956, %v4001, %v4003
    %4005 = vrot.lane.b32.xlu0 %v3934, 126
    %v4006 = vpop.permute.xlu0 %4005
    %4007 = vrot.lane.b32.xlu0 %v3936, 126
    %v4008 = vpop.permute.xlu0 %4007
    %4009 = vrot.lane.b32.xlu0 %v3938, 126
    %v4010 = vpop.permute.xlu0 %4009
    %4011 = vrot.lane.b32.xlu0 %v3940, 126
    %v4012 = vpop.permute.xlu0 %4011
    %4013 = vrot.lane.b32.xlu0 %v3942, 126
    %v4014 = vpop.permute.xlu0 %4013
    %4015 = vrot.lane.b32.xlu0 %v3944, 126
    %v4016 = vpop.permute.xlu0 %4015
    %4017 = vrot.lane.b32.xlu0 %v3946, 126
    %v4018 = vpop.permute.xlu0 %4017
    %4019 = vrot.lane.b32.xlu0 %v3948, 126
    %v4020 = vpop.permute.xlu0 %4019
    %4021 = vrot.lane.b32.xlu0 %v3950, 126
    %v4022 = vpop.permute.xlu0 %4021
    %4023 = vrot.lane.b32.xlu0 %v3952, 126
    %v4024 = vpop.permute.xlu0 %4023
    %4025 = vrot.lane.b32.xlu0 %v3954, 126
    %v4026 = vpop.permute.xlu0 %4025
    %4027 = vrot.lane.b32.xlu0 %v3956, 126
    %v4028 = vpop.permute.xlu0 %4027
    %4029 = vrot.lane.b32.xlu0 %v3958, 126
    %v4030 = vpop.permute.xlu0 %4029
    %4031 = vrot.lane.b32.xlu0 %v3960, 126
    %v4032 = vpop.permute.xlu0 %4031
    %4033 = vrot.lane.b32.xlu0 %v3962, 126
    %v4034 = vpop.permute.xlu0 %4033
    %4035 = vrot.lane.b32.xlu0 %v3964, 126
    %v4036 = vpop.permute.xlu0 %4035
    %4037 = vrot.lane.b32.xlu0 %v3966, 126
    %v4038 = vpop.permute.xlu0 %4037
    %4039 = vrot.lane.b32.xlu0 %v3968, 126
    %v4040 = vpop.permute.xlu0 %4039
    %4041 = vrot.lane.b32.xlu0 %v3970, 126
    %v4042 = vpop.permute.xlu0 %4041
    %4043 = vrot.lane.b32.xlu0 %v3972, 126
    %v4044 = vpop.permute.xlu0 %4043
    %4045 = vrot.lane.b32.xlu0 %v3974, 126
    %v4046 = vpop.permute.xlu0 %4045
    %4047 = vrot.lane.b32.xlu0 %v3976, 126
    %v4048 = vpop.permute.xlu0 %4047
    %4049 = vrot.lane.b32.xlu0 %v3978, 126
    %v4050 = vpop.permute.xlu0 %4049
    %4051 = vrot.lane.b32.xlu0 %v3980, 126
    %v4052 = vpop.permute.xlu0 %4051
    %4053 = vrot.lane.b32.xlu0 %v3982, 126
    %v4054 = vpop.permute.xlu0 %4053
    %4055 = vrot.lane.b32.xlu0 %v3984, 126
    %v4056 = vpop.permute.xlu0 %4055
    %4057 = vrot.lane.b32.xlu0 %v3986, 126
    %v4058 = vpop.permute.xlu0 %4057
    %4059 = vrot.lane.b32.xlu0 %v3988, 126
    %v4060 = vpop.permute.xlu0 %4059
    %4061 = vrot.lane.b32.xlu0 %v3990, 126
    %v4062 = vpop.permute.xlu0 %4061
    %4063 = vrot.lane.b32.xlu0 %v3992, 126
    %v4064 = vpop.permute.xlu0 %4063
    %4065 = vrot.lane.b32.xlu0 %v3994, 126
    %v4066 = vpop.permute.xlu0 %4065
    %4067 = vrot.lane.b32.xlu0 %v3996, 126
    %v4068 = vpop.permute.xlu0 %4067
    %4069 = vrot.lane.b32.xlu0 %v3998, 126
    %v4070 = vpop.permute.xlu0 %4069
    %4071 = vrot.lane.b32.xlu0 %v4000, 126
    %v4072 = vpop.permute.xlu0 %4071
    %4073 = vrot.lane.b32.xlu0 %v4002, 126
    %v4074 = vpop.permute.xlu0 %4073
    %4075 = vrot.lane.b32.xlu0 %v4004, 126
    %v4076 = vpop.permute.xlu0 %4075
    %4077 = vrot.lane.b32.xlu0 %v4003, 126
    %v4078 = vpop.permute.xlu0 %4077
    %vm4116 = vcmask 1048566
    %4117 = vst.msk [vmem:[#allocation2 + $0x230] sm:$0xc0] %vm4116, %v4006
    %vm4118 = vcmask 130054
    %4119 = vst.msk [vmem:[#allocation2 + $0x238] sm:$0xc0] %vm4118, %v4006
    %4120 = vst.msk [vmem:[#allocation2 + $0x240] sm:$0xff] %vm1589, %v4008
    %4121 = vst.msk [vmem:[#allocation2 + $0x248] sm:$0xff] %vm1591, %v4008
    %4122 = vst.msk [vmem:[#allocation2 + $0x250] sm:$0xff] %vm1589, %v4010
    %4123 = vst.msk [vmem:[#allocation2 + $0x258] sm:$0xff] %vm1591, %v4010
    %4124 = vst.msk [vmem:[#allocation2 + $0x260] sm:$0xff] %vm1589, %v4012
    %4125 = vst.msk [vmem:[#allocation2 + $0x268] sm:$0xff] %vm1591, %v4012
    %4126 = vst.msk [vmem:[#allocation2 + $0x270] sm:$0xff] %vm1589, %v4014
    %4127 = vst.msk [vmem:[#allocation2 + $0x278] sm:$0xff] %vm1591, %v4014
    %4128 = vst.msk [vmem:[#allocation2 + $0x280] sm:$0xff] %vm1589, %v4016
    %4129 = vst.msk [vmem:[#allocation2 + $0x288] sm:$0xff] %vm1591, %v4016
    %4130 = vst.msk [vmem:[#allocation2 + $0x290] sm:$0xff] %vm1589, %v4018
    %4131 = vst.msk [vmem:[#allocation2 + $0x298] sm:$0xff] %vm1591, %v4018
    %4132 = vst.msk [vmem:[#allocation2 + $0x2a0] sm:$0xff] %vm1589, %v4020
    %4133 = vst.msk [vmem:[#allocation2 + $0x2a8] sm:$0xff] %vm1591, %v4020
    %4134 = vst.msk [vmem:[#allocation2 + $0x2b0] sm:$0xff] %vm1589, %v4022
    %4135 = vst.msk [vmem:[#allocation2 + $0x2b8] sm:$0xff] %vm1591, %v4022
    %4136 = vst.msk [vmem:[#allocation2 + $0x2c0] sm:$0xff] %vm1589, %v4024
    %4137 = vst.msk [vmem:[#allocation2 + $0x2c8] sm:$0xff] %vm1591, %v4024
    %4138 = vst.msk [vmem:[#allocation2 + $0x2d0] sm:$0xff] %vm1589, %v4026
    %4139 = vst.msk [vmem:[#allocation2 + $0x2d8] sm:$0xff] %vm1591, %v4026
    %4140 = vst.msk [vmem:[#allocation2 + $0x2e0] sm:$0xff] %vm1589, %v4028
    %4141 = vst.msk [vmem:[#allocation2 + $0x2e8] sm:$0xff] %vm1591, %v4028
    %4142 = vst.msk [vmem:[#allocation2 + $0x2f0] sm:$0xff] %vm1589, %v4030
    %4143 = vst.msk [vmem:[#allocation2 + $0x2f8] sm:$0xff] %vm1591, %v4030
    %4144 = vst.msk [vmem:[#allocation2 + $0x300] sm:$0xff] %vm1589, %v4032
    %4145 = vst.msk [vmem:[#allocation2 + $0x308] sm:$0xff] %vm1591, %v4032
    %4146 = vst.msk [vmem:[#allocation2 + $0x310] sm:$0xff] %vm1589, %v4034
    %4147 = vst.msk [vmem:[#allocation2 + $0x318] sm:$0xff] %vm1591, %v4034
    %4148 = vst.msk [vmem:[#allocation2 + $0x320] sm:$0xff] %vm1589, %v4036
    %4149 = vst.msk [vmem:[#allocation2 + $0x328] sm:$0xff] %vm1591, %v4036
    %4150 = vst.msk [vmem:[#allocation2 + $0x330] sm:$0xff] %vm1589, %v4038
    %4151 = vst.msk [vmem:[#allocation2 + $0x338] sm:$0xff] %vm1591, %v4038
    %4152 = vst.msk [vmem:[#allocation2 + $0x340] sm:$0xff] %vm1589, %v4040
    %4153 = vst.msk [vmem:[#allocation2 + $0x348] sm:$0xff] %vm1591, %v4040
    %4154 = vst.msk [vmem:[#allocation2 + $0x350] sm:$0xff] %vm1589, %v4042
    %4155 = vst.msk [vmem:[#allocation2 + $0x358] sm:$0xff] %vm1591, %v4042
    %4156 = vst.msk [vmem:[#allocation2 + $0x360] sm:$0xff] %vm1589, %v4044
    %4157 = vst.msk [vmem:[#allocation2 + $0x368] sm:$0xff] %vm1591, %v4044
    %4158 = vst.msk [vmem:[#allocation2 + $0x370] sm:$0xff] %vm1589, %v4046
    %4159 = vst.msk [vmem:[#allocation2 + $0x378] sm:$0xff] %vm1591, %v4046
    %4160 = vst.msk [vmem:[#allocation2 + $0x380] sm:$0xff] %vm1589, %v4048
    %4161 = vst.msk [vmem:[#allocation2 + $0x388] sm:$0xff] %vm1591, %v4048
    %4162 = vst.msk [vmem:[#allocation2 + $0x390] sm:$0xff] %vm1589, %v4050
    %4163 = vst.msk [vmem:[#allocation2 + $0x398] sm:$0xff] %vm1591, %v4050
    %4164 = vst.msk [vmem:[#allocation2 + $0x3a0] sm:$0xff] %vm1589, %v4052
    %4165 = vst.msk [vmem:[#allocation2 + $0x3a8] sm:$0xff] %vm1591, %v4052
    %4166 = vst.msk [vmem:[#allocation2 + $0x3b0] sm:$0xff] %vm1589, %v4054
    %4167 = vst.msk [vmem:[#allocation2 + $0x3b8] sm:$0xff] %vm1591, %v4054
    %4168 = vst.msk [vmem:[#allocation2 + $0x3c0] sm:$0xff] %vm1589, %v4056
    %4169 = vst.msk [vmem:[#allocation2 + $0x3c8] sm:$0xff] %vm1591, %v4056
    %4170 = vst.msk [vmem:[#allocation2 + $0x3d0] sm:$0xff] %vm1589, %v4058
    %4171 = vst.msk [vmem:[#allocation2 + $0x3d8] sm:$0xff] %vm1591, %v4058
    %4172 = vst.msk [vmem:[#allocation2 + $0x3e0] sm:$0xff] %vm1589, %v4060
    %4173 = vst.msk [vmem:[#allocation2 + $0x3e8] sm:$0xff] %vm1591, %v4060
    %4174 = vst.msk [vmem:[#allocation2 + $0x3f0] sm:$0xff] %vm1589, %v4062
    %4175 = vst.msk [vmem:[#allocation2 + $0x3f8] sm:$0xff] %vm1591, %v4062
    %4176 = vst.msk [vmem:[#allocation2 + $0x400] sm:$0xff] %vm1589, %v4064
    %4177 = vst.msk [vmem:[#allocation2 + $0x408] sm:$0xff] %vm1591, %v4064
    %4178 = vst.msk [vmem:[#allocation2 + $0x410] sm:$0xff] %vm1589, %v4066
    %4179 = vst.msk [vmem:[#allocation2 + $0x418] sm:$0xff] %vm1591, %v4066
    %4180 = vst.msk [vmem:[#allocation2 + $0x420] sm:$0xff] %vm1589, %v4068
    %4181 = vst.msk [vmem:[#allocation2 + $0x428] sm:$0xff] %vm1591, %v4068
    %4182 = vst.msk [vmem:[#allocation2 + $0x430] sm:$0xff] %vm1589, %v4070
    %4183 = vst.msk [vmem:[#allocation2 + $0x438] sm:$0xff] %vm1591, %v4070
    %4184 = vst.msk [vmem:[#allocation2 + $0x440] sm:$0xff] %vm1589, %v4072
    %4185 = vst.msk [vmem:[#allocation2 + $0x448] sm:$0xff] %vm1591, %v4072
    %4186 = vst.msk [vmem:[#allocation2 + $0x450] sm:$0xff] %vm1589, %v4074
    %4187 = vst.msk [vmem:[#allocation2 + $0x458] sm:$0xff] %vm1591, %v4074
    %4188 = vst.msk [vmem:[#allocation2 + $0x460] sm:$0xff] %vm1589, %v4076
    %4189 = vst.msk [vmem:[#allocation2 + $0x468] sm:$0xff] %vm1591, %v4076
    %vm4190 = vcmask 1044464
    %4191 = vst.msk [vmem:[#allocation2 + $0x470] sm:$0xf] %vm4190, %v4078
    %vm4192 = vcmask 125952
    %4193 = vst.msk [vmem:[#allocation2 + $0x478] sm:$0xf] %vm4192, %v4078
    %v4194 = vld [vmem:[%s1883 + $0x26] sm:$0xff]
    %v4195 = vld [vmem:[%s1883 + $0x2e] sm:$0xff]
    %v4196 = vld [vmem:[%s1883 + $0x36] sm:$0xff]
    %v4197 = vld [vmem:[%s1883 + $0x3e] sm:$0xff]
    %v4198 = vld [vmem:[%s1883 + $0x46] sm:$0xff]
    %v4199 = vld [vmem:[%s1883 + $0x4e] sm:$0xff]
    %v4200 = vld [vmem:[%s1883 + $0x56] sm:$0xff]
    %v4201 = vld [vmem:[%s1883 + $0x5e] sm:$0xff]
    %v4202 = vld [vmem:[%s1883 + $0x66] sm:$0xff]
    %v4203 = vld [vmem:[%s1883 + $0x6e] sm:$0xff]
    %v4204 = vld [vmem:[%s1883 + $0x76] sm:$0xff]
    %v4205 = vld [vmem:[%s1883 + $0x7e] sm:$0xff]
    %v4206 = vld [vmem:[%s1883 + $0x86] sm:$0xff]
    %v4207 = vld [vmem:[%s1883 + $0x8e] sm:$0xff]
    %v4208 = vld [vmem:[%s1883 + $0x96] sm:$0xff]
    %v4209 = vld [vmem:[%s1883 + $0x9e] sm:$0xff]
    %v4210 = vld [vmem:[%s1883 + $0xa6] sm:$0xff]
    %v4211 = vld [vmem:[%s1883 + $0xae] sm:$0xff]
    %v4212 = vld [vmem:[%s1883 + $0xb6] sm:$0xff]
    %v4213 = vld [vmem:[%s1883 + $0xbe] sm:$0xff]
    %v4214 = vld [vmem:[%s1883 + $0xc6] sm:$0xff]
    %v4215 = vld [vmem:[%s1883 + $0xce] sm:$0xff]
    %v4216 = vld [vmem:[%s1883 + $0xd6] sm:$0xff]
    %v4217 = vld [vmem:[%s1883 + $0xde] sm:$0xff]
    %v4218 = vld [vmem:[%s1883 + $0xe6] sm:$0xff]
    %v4219 = vld [vmem:[%s1883 + $0xee] sm:$0xff]
    %v4220 = vld [vmem:[%s1883 + $0xf6] sm:$0xff]
    %v4221 = vld [vmem:[%s1883 + $0xfe] sm:$0xff]
    %v4222 = vld [vmem:[%s1883 + $0x106] sm:$0xff]
    %v4223 = vld [vmem:[%s1883 + $0x10e] sm:$0xff]
    %v4224 = vld [vmem:[%s1883 + $0x116] sm:$0xff]
    %v4225 = vld [vmem:[%s1883 + $0x11e] sm:$0xff]
    %v4226 = vld [vmem:[%s1883 + $0x126] sm:$0xff]
    %v4227 = vld [vmem:[%s1883 + $0x12e] sm:$0xff]
    %v4228 = vld [vmem:[%s1883 + $0x136] sm:$0xff]
    %v4229 = vld [vmem:[%s1883 + $0x13e] sm:$0x3f]
    %v4266 = vrot.slane %v4194, 2
    %v4267 = vrot.slane %v4195, 2
    %v4268 = vsel %vm1956, %v4266, %v4267
    %v4269 = vrot.slane %v4196, 2
    %v4270 = vsel %vm1956, %v4267, %v4269
    %v4271 = vrot.slane %v4197, 2
    %v4272 = vsel %vm1956, %v4269, %v4271
    %v4273 = vrot.slane %v4198, 2
    %v4274 = vsel %vm1956, %v4271, %v4273
    %v4275 = vrot.slane %v4199, 2
    %v4276 = vsel %vm1956, %v4273, %v4275
    %v4277 = vrot.slane %v4200, 2
    %v4278 = vsel %vm1956, %v4275, %v4277
    %v4279 = vrot.slane %v4201, 2
    %v4280 = vsel %vm1956, %v4277, %v4279
    %v4281 = vrot.slane %v4202, 2
    %v4282 = vsel %vm1956, %v4279, %v4281
    %v4283 = vrot.slane %v4203, 2
    %v4284 = vsel %vm1956, %v4281, %v4283
    %v4285 = vrot.slane %v4204, 2
    %v4286 = vsel %vm1956, %v4283, %v4285
    %v4287 = vrot.slane %v4205, 2
    %v4288 = vsel %vm1956, %v4285, %v4287
    %v4289 = vrot.slane %v4206, 2
    %v4290 = vsel %vm1956, %v4287, %v4289
    %v4291 = vrot.slane %v4207, 2
    %v4292 = vsel %vm1956, %v4289, %v4291
    %v4293 = vrot.slane %v4208, 2
    %v4294 = vsel %vm1956, %v4291, %v4293
    %v4295 = vrot.slane %v4209, 2
    %v4296 = vsel %vm1956, %v4293, %v4295
    %v4297 = vrot.slane %v4210, 2
    %v4298 = vsel %vm1956, %v4295, %v4297
    %v4299 = vrot.slane %v4211, 2
    %v4300 = vsel %vm1956, %v4297, %v4299
    %v4301 = vrot.slane %v4212, 2
    %v4302 = vsel %vm1956, %v4299, %v4301
    %v4303 = vrot.slane %v4213, 2
    %v4304 = vsel %vm1956, %v4301, %v4303
    %v4305 = vrot.slane %v4214, 2
    %v4306 = vsel %vm1956, %v4303, %v4305
    %v4307 = vrot.slane %v4215, 2
    %v4308 = vsel %vm1956, %v4305, %v4307
    %v4309 = vrot.slane %v4216, 2
    %v4310 = vsel %vm1956, %v4307, %v4309
    %v4311 = vrot.slane %v4217, 2
    %v4312 = vsel %vm1956, %v4309, %v4311
    %v4313 = vrot.slane %v4218, 2
    %v4314 = vsel %vm1956, %v4311, %v4313
    %v4315 = vrot.slane %v4219, 2
    %v4316 = vsel %vm1956, %v4313, %v4315
    %v4317 = vrot.slane %v4220, 2
    %v4318 = vsel %vm1956, %v4315, %v4317
    %v4319 = vrot.slane %v4221, 2
    %v4320 = vsel %vm1956, %v4317, %v4319
    %v4321 = vrot.slane %v4222, 2
    %v4322 = vsel %vm1956, %v4319, %v4321
    %v4323 = vrot.slane %v4223, 2
    %v4324 = vsel %vm1956, %v4321, %v4323
    %v4325 = vrot.slane %v4224, 2
    %v4326 = vsel %vm1956, %v4323, %v4325
    %v4327 = vrot.slane %v4225, 2
    %v4328 = vsel %vm1956, %v4325, %v4327
    %v4329 = vrot.slane %v4226, 2
    %v4330 = vsel %vm1956, %v4327, %v4329
    %v4331 = vrot.slane %v4227, 2
    %v4332 = vsel %vm1956, %v4329, %v4331
    %v4333 = vrot.slane %v4228, 2
    %v4334 = vsel %vm1956, %v4331, %v4333
    %v4335 = vrot.slane %v4229, 2
    %v4336 = vsel %vm1956, %v4333, %v4335
    %4337 = vrot.lane.b32.xlu0 %v4266, 16
    %v4338 = vpop.permute.xlu0 %4337
    %4339 = vrot.lane.b32.xlu0 %v4268, 16
    %v4340 = vpop.permute.xlu0 %4339
    %4341 = vrot.lane.b32.xlu0 %v4270, 16
    %v4342 = vpop.permute.xlu0 %4341
    %4343 = vrot.lane.b32.xlu0 %v4272, 16
    %v4344 = vpop.permute.xlu0 %4343
    %4345 = vrot.lane.b32.xlu0 %v4274, 16
    %v4346 = vpop.permute.xlu0 %4345
    %4347 = vrot.lane.b32.xlu0 %v4276, 16
    %v4348 = vpop.permute.xlu0 %4347
    %4349 = vrot.lane.b32.xlu0 %v4278, 16
    %v4350 = vpop.permute.xlu0 %4349
    %4351 = vrot.lane.b32.xlu0 %v4280, 16
    %v4352 = vpop.permute.xlu0 %4351
    %4353 = vrot.lane.b32.xlu0 %v4282, 16
    %v4354 = vpop.permute.xlu0 %4353
    %4355 = vrot.lane.b32.xlu0 %v4284, 16
    %v4356 = vpop.permute.xlu0 %4355
    %4357 = vrot.lane.b32.xlu0 %v4286, 16
    %v4358 = vpop.permute.xlu0 %4357
    %4359 = vrot.lane.b32.xlu0 %v4288, 16
    %v4360 = vpop.permute.xlu0 %4359
    %4361 = vrot.lane.b32.xlu0 %v4290, 16
    %v4362 = vpop.permute.xlu0 %4361
    %4363 = vrot.lane.b32.xlu0 %v4292, 16
    %v4364 = vpop.permute.xlu0 %4363
    %4365 = vrot.lane.b32.xlu0 %v4294, 16
    %v4366 = vpop.permute.xlu0 %4365
    %4367 = vrot.lane.b32.xlu0 %v4296, 16
    %v4368 = vpop.permute.xlu0 %4367
    %4369 = vrot.lane.b32.xlu0 %v4298, 16
    %v4370 = vpop.permute.xlu0 %4369
    %4371 = vrot.lane.b32.xlu0 %v4300, 16
    %v4372 = vpop.permute.xlu0 %4371
    %4373 = vrot.lane.b32.xlu0 %v4302, 16
    %v4374 = vpop.permute.xlu0 %4373
    %4375 = vrot.lane.b32.xlu0 %v4304, 16
    %v4376 = vpop.permute.xlu0 %4375
    %4377 = vrot.lane.b32.xlu0 %v4306, 16
    %v4378 = vpop.permute.xlu0 %4377
    %4379 = vrot.lane.b32.xlu0 %v4308, 16
    %v4380 = vpop.permute.xlu0 %4379
    %4381 = vrot.lane.b32.xlu0 %v4310, 16
    %v4382 = vpop.permute.xlu0 %4381
    %4383 = vrot.lane.b32.xlu0 %v4312, 16
    %v4384 = vpop.permute.xlu0 %4383
    %4385 = vrot.lane.b32.xlu0 %v4314, 16
    %v4386 = vpop.permute.xlu0 %4385
    %4387 = vrot.lane.b32.xlu0 %v4316, 16
    %v4388 = vpop.permute.xlu0 %4387
    %4389 = vrot.lane.b32.xlu0 %v4318, 16
    %v4390 = vpop.permute.xlu0 %4389
    %4391 = vrot.lane.b32.xlu0 %v4320, 16
    %v4392 = vpop.permute.xlu0 %4391
    %4393 = vrot.lane.b32.xlu0 %v4322, 16
    %v4394 = vpop.permute.xlu0 %4393
    %4395 = vrot.lane.b32.xlu0 %v4324, 16
    %v4396 = vpop.permute.xlu0 %4395
    %4397 = vrot.lane.b32.xlu0 %v4326, 16
    %v4398 = vpop.permute.xlu0 %4397
    %4399 = vrot.lane.b32.xlu0 %v4328, 16
    %v4400 = vpop.permute.xlu0 %4399
    %4401 = vrot.lane.b32.xlu0 %v4330, 16
    %v4402 = vpop.permute.xlu0 %4401
    %4403 = vrot.lane.b32.xlu0 %v4332, 16
    %v4404 = vpop.permute.xlu0 %4403
    %4405 = vrot.lane.b32.xlu0 %v4334, 16
    %v4406 = vpop.permute.xlu0 %4405
    %4407 = vrot.lane.b32.xlu0 %v4336, 16
    %v4408 = vpop.permute.xlu0 %4407
    %4409 = vrot.lane.b32.xlu0 %v4335, 16
    %v4410 = vpop.permute.xlu0 %4409
    %vm4448 = vcmask 277638
    %4449 = vst.msk [vmem:[#allocation2 + $0x238] sm:$0xc0] %vm4448, %v4338
    %4450 = vst.msk [vmem:[#allocation2 + $0x248] sm:$0xff] %vm1845, %v4340
    %4451 = vst.msk [vmem:[#allocation2 + $0x258] sm:$0xff] %vm1845, %v4342
    %4452 = vst.msk [vmem:[#allocation2 + $0x268] sm:$0xff] %vm1845, %v4344
    %4453 = vst.msk [vmem:[#allocation2 + $0x278] sm:$0xff] %vm1845, %v4346
    %4454 = vst.msk [vmem:[#allocation2 + $0x288] sm:$0xff] %vm1845, %v4348
    %4455 = vst.msk [vmem:[#allocation2 + $0x298] sm:$0xff] %vm1845, %v4350
    %4456 = vst.msk [vmem:[#allocation2 + $0x2a8] sm:$0xff] %vm1845, %v4352
    %4457 = vst.msk [vmem:[#allocation2 + $0x2b8] sm:$0xff] %vm1845, %v4354
    %4458 = vst.msk [vmem:[#allocation2 + $0x2c8] sm:$0xff] %vm1845, %v4356
    %4459 = vst.msk [vmem:[#allocation2 + $0x2d8] sm:$0xff] %vm1845, %v4358
    %4460 = vst.msk [vmem:[#allocation2 + $0x2e8] sm:$0xff] %vm1845, %v4360
    %4461 = vst.msk [vmem:[#allocation2 + $0x2f8] sm:$0xff] %vm1845, %v4362
    %4462 = vst.msk [vmem:[#allocation2 + $0x308] sm:$0xff] %vm1845, %v4364
    %4463 = vst.msk [vmem:[#allocation2 + $0x318] sm:$0xff] %vm1845, %v4366
    %4464 = vst.msk [vmem:[#allocation2 + $0x328] sm:$0xff] %vm1845, %v4368
    %4465 = vst.msk [vmem:[#allocation2 + $0x338] sm:$0xff] %vm1845, %v4370
    %4466 = vst.msk [vmem:[#allocation2 + $0x348] sm:$0xff] %vm1845, %v4372
    %4467 = vst.msk [vmem:[#allocation2 + $0x358] sm:$0xff] %vm1845, %v4374
    %4468 = vst.msk [vmem:[#allocation2 + $0x368] sm:$0xff] %vm1845, %v4376
    %4469 = vst.msk [vmem:[#allocation2 + $0x378] sm:$0xff] %vm1845, %v4378
    %4470 = vst.msk [vmem:[#allocation2 + $0x388] sm:$0xff] %vm1845, %v4380
    %4471 = vst.msk [vmem:[#allocation2 + $0x398] sm:$0xff] %vm1845, %v4382
    %4472 = vst.msk [vmem:[#allocation2 + $0x3a8] sm:$0xff] %vm1845, %v4384
    %4473 = vst.msk [vmem:[#allocation2 + $0x3b8] sm:$0xff] %vm1845, %v4386
    %4474 = vst.msk [vmem:[#allocation2 + $0x3c8] sm:$0xff] %vm1845, %v4388
    %4475 = vst.msk [vmem:[#allocation2 + $0x3d8] sm:$0xff] %vm1845, %v4390
    %4476 = vst.msk [vmem:[#allocation2 + $0x3e8] sm:$0xff] %vm1845, %v4392
    %4477 = vst.msk [vmem:[#allocation2 + $0x3f8] sm:$0xff] %vm1845, %v4394
    %4478 = vst.msk [vmem:[#allocation2 + $0x408] sm:$0xff] %vm1845, %v4396
    %4479 = vst.msk [vmem:[#allocation2 + $0x418] sm:$0xff] %vm1845, %v4398
    %4480 = vst.msk [vmem:[#allocation2 + $0x428] sm:$0xff] %vm1845, %v4400
    %4481 = vst.msk [vmem:[#allocation2 + $0x438] sm:$0xff] %vm1845, %v4402
    %4482 = vst.msk [vmem:[#allocation2 + $0x448] sm:$0xff] %vm1845, %v4404
    %4483 = vst.msk [vmem:[#allocation2 + $0x458] sm:$0xff] %vm1845, %v4406
    %4484 = vst.msk [vmem:[#allocation2 + $0x468] sm:$0xff] %vm1845, %v4408
    %vm4485 = vcmask 273536
    %4486 = vst.msk [vmem:[#allocation2 + $0x478] sm:$0xf] %vm4485, %v4410
    %v4487 = vld [vmem:[#allocation2] sm:$0xff]
    %v4488 = vld [vmem:[#allocation2 + $0x8] sm:$0xff]
    %v4489 = vld [vmem:[#allocation2 + $0x10] sm:$0xff]
    %v4490 = vld [vmem:[#allocation2 + $0x18] sm:$0xff]
    %v4491 = vld [vmem:[#allocation2 + $0x20] sm:$0xff]
    %v4492 = vld [vmem:[#allocation2 + $0x28] sm:$0xff]
    %v4493 = vld [vmem:[#allocation2 + $0x30] sm:$0xff]
    %v4494 = vld [vmem:[#allocation2 + $0x38] sm:$0xff]
    %v4495 = vld [vmem:[#allocation2 + $0x40] sm:$0xff]
    %v4496 = vld [vmem:[#allocation2 + $0x48] sm:$0xff]
    %v4497 = vld [vmem:[#allocation2 + $0x50] sm:$0xff]
    %v4498 = vld [vmem:[#allocation2 + $0x58] sm:$0xff]
    %v4499 = vld [vmem:[#allocation2 + $0x60] sm:$0xff]
    %v4500 = vld [vmem:[#allocation2 + $0x68] sm:$0xff]
    %v4501 = vld [vmem:[#allocation2 + $0x70] sm:$0xff]
    %v4502 = vld [vmem:[#allocation2 + $0x78] sm:$0xff]
    %v4503 = vld [vmem:[#allocation2 + $0x80] sm:$0xff]
    %v4504 = vld [vmem:[#allocation2 + $0x88] sm:$0xff]
    %v4505 = vld [vmem:[#allocation2 + $0x90] sm:$0xff]
    %v4506 = vld [vmem:[#allocation2 + $0x98] sm:$0xff]
    %v4507 = vld [vmem:[#allocation2 + $0xa0] sm:$0xff]
    %v4508 = vld [vmem:[#allocation2 + $0xa8] sm:$0xff]
    %v4509 = vld [vmem:[#allocation2 + $0xb0] sm:$0xff]
    %v4510 = vld [vmem:[#allocation2 + $0xb8] sm:$0xff]
    %v4511 = vld [vmem:[#allocation2 + $0xc0] sm:$0xff]
    %v4512 = vld [vmem:[#allocation2 + $0xc8] sm:$0xff]
    %v4513 = vld [vmem:[#allocation2 + $0xd0] sm:$0xff]
    %v4514 = vld [vmem:[#allocation2 + $0xd8] sm:$0xff]
    %v4515 = vld [vmem:[#allocation2 + $0xe0] sm:$0xff]
    %v4516 = vld [vmem:[#allocation2 + $0xe8] sm:$0xff]
    %v4517 = vld [vmem:[#allocation2 + $0xf0] sm:$0xff]
    %v4518 = vld [vmem:[#allocation2 + $0xf8] sm:$0xff]
    %v4519 = vld [vmem:[#allocation2 + $0x100] sm:$0xff]
    %v4520 = vld [vmem:[#allocation2 + $0x108] sm:$0xff]
    %v4521 = vld [vmem:[#allocation2 + $0x110] sm:$0xff]
    %v4522 = vld [vmem:[#allocation2 + $0x118] sm:$0xff]
    %v4523 = vld [vmem:[#allocation2 + $0x120] sm:$0xff]
    %v4524 = vld [vmem:[#allocation2 + $0x128] sm:$0xff]
    %v4525 = vld [vmem:[#allocation2 + $0x130] sm:$0xff]
    %v4526 = vld [vmem:[#allocation2 + $0x138] sm:$0xff]
    %v4527 = vld [vmem:[#allocation2 + $0x140] sm:$0xff]
    %v4528 = vld [vmem:[#allocation2 + $0x148] sm:$0xff]
    %v4529 = vld [vmem:[#allocation2 + $0x150] sm:$0xff]
    %v4530 = vld [vmem:[#allocation2 + $0x158] sm:$0xff]
    %v4531 = vld [vmem:[#allocation2 + $0x160] sm:$0xff]
    %v4532 = vld [vmem:[#allocation2 + $0x168] sm:$0xff]
    %v4533 = vld [vmem:[#allocation2 + $0x170] sm:$0xff]
    %v4534 = vld [vmem:[#allocation2 + $0x178] sm:$0xff]
    %v4535 = vld [vmem:[#allocation2 + $0x180] sm:$0xff]
    %v4536 = vld [vmem:[#allocation2 + $0x188] sm:$0xff]
    %v4537 = vld [vmem:[#allocation2 + $0x190] sm:$0xff]
    %v4538 = vld [vmem:[#allocation2 + $0x198] sm:$0xff]
    %v4539 = vld [vmem:[#allocation2 + $0x1a0] sm:$0xff]
    %v4540 = vld [vmem:[#allocation2 + $0x1a8] sm:$0xff]
    %v4541 = vld [vmem:[#allocation2 + $0x1b0] sm:$0xff]
    %v4542 = vld [vmem:[#allocation2 + $0x1b8] sm:$0xff]
    %v4543 = vld [vmem:[#allocation2 + $0x1c0] sm:$0xff]
    %v4544 = vld [vmem:[#allocation2 + $0x1c8] sm:$0xff]
    %v4545 = vld [vmem:[#allocation2 + $0x1d0] sm:$0xff]
    %v4546 = vld [vmem:[#allocation2 + $0x1d8] sm:$0xff]
    %v4547 = vld [vmem:[#allocation2 + $0x1e0] sm:$0xff]
    %v4548 = vld [vmem:[#allocation2 + $0x1e8] sm:$0xff]
    %v4549 = vld [vmem:[#allocation2 + $0x1f0] sm:$0xff]
    %v4550 = vld [vmem:[#allocation2 + $0x1f8] sm:$0xff]
    %v4551 = vld [vmem:[#allocation2 + $0x200] sm:$0xff]
    %v4552 = vld [vmem:[#allocation2 + $0x208] sm:$0xff]
    %v4553 = vld [vmem:[#allocation2 + $0x210] sm:$0xff]
    %v4554 = vld [vmem:[#allocation2 + $0x218] sm:$0xff]
    %v4555 = vld [vmem:[#allocation2 + $0x220] sm:$0xff]
    %v4556 = vld [vmem:[#allocation2 + $0x228] sm:$0xff]
    %v4557 = vld [vmem:[#allocation2 + $0x230] sm:$0xff]
    %v4558 = vld [vmem:[#allocation2 + $0x238] sm:$0xff]
    %v4559 = vld [vmem:[#allocation2 + $0x240] sm:$0xff]
    %v4560 = vld [vmem:[#allocation2 + $0x248] sm:$0xff]
    %v4561 = vld [vmem:[#allocation2 + $0x250] sm:$0xff]
    %v4562 = vld [vmem:[#allocation2 + $0x258] sm:$0xff]
    %v4563 = vld [vmem:[#allocation2 + $0x260] sm:$0xff]
    %v4564 = vld [vmem:[#allocation2 + $0x268] sm:$0xff]
    %v4565 = vld [vmem:[#allocation2 + $0x270] sm:$0xff]
    %v4566 = vld [vmem:[#allocation2 + $0x278] sm:$0xff]
    %v4567 = vld [vmem:[#allocation2 + $0x280] sm:$0xff]
    %v4568 = vld [vmem:[#allocation2 + $0x288] sm:$0xff]
    %v4569 = vld [vmem:[#allocation2 + $0x290] sm:$0xff]
    %v4570 = vld [vmem:[#allocation2 + $0x298] sm:$0xff]
    %v4571 = vld [vmem:[#allocation2 + $0x2a0] sm:$0xff]
    %v4572 = vld [vmem:[#allocation2 + $0x2a8] sm:$0xff]
    %v4573 = vld [vmem:[#allocation2 + $0x2b0] sm:$0xff]
    %v4574 = vld [vmem:[#allocation2 + $0x2b8] sm:$0xff]
    %v4575 = vld [vmem:[#allocation2 + $0x2c0] sm:$0xff]
    %v4576 = vld [vmem:[#allocation2 + $0x2c8] sm:$0xff]
    %v4577 = vld [vmem:[#allocation2 + $0x2d0] sm:$0xff]
    %v4578 = vld [vmem:[#allocation2 + $0x2d8] sm:$0xff]
    %v4579 = vld [vmem:[#allocation2 + $0x2e0] sm:$0xff]
    %v4580 = vld [vmem:[#allocation2 + $0x2e8] sm:$0xff]
    %v4581 = vld [vmem:[#allocation2 + $0x2f0] sm:$0xff]
    %v4582 = vld [vmem:[#allocation2 + $0x2f8] sm:$0xff]
    %v4583 = vld [vmem:[#allocation2 + $0x300] sm:$0xff]
    %v4584 = vld [vmem:[#allocation2 + $0x308] sm:$0xff]
    %v4585 = vld [vmem:[#allocation2 + $0x310] sm:$0xff]
    %v4586 = vld [vmem:[#allocation2 + $0x318] sm:$0xff]
    %v4587 = vld [vmem:[#allocation2 + $0x320] sm:$0xff]
    %v4588 = vld [vmem:[#allocation2 + $0x328] sm:$0xff]
    %v4589 = vld [vmem:[#allocation2 + $0x330] sm:$0xff]
    %v4590 = vld [vmem:[#allocation2 + $0x338] sm:$0xff]
    %v4591 = vld [vmem:[#allocation2 + $0x340] sm:$0xff]
    %v4592 = vld [vmem:[#allocation2 + $0x348] sm:$0xff]
    %v4593 = vld [vmem:[#allocation2 + $0x350] sm:$0xff]
    %v4594 = vld [vmem:[#allocation2 + $0x358] sm:$0xff]
    %v4595 = vld [vmem:[#allocation2 + $0x360] sm:$0xff]
    %v4596 = vld [vmem:[#allocation2 + $0x368] sm:$0xff]
    %v4597 = vld [vmem:[#allocation2 + $0x370] sm:$0xff]
    %v4598 = vld [vmem:[#allocation2 + $0x378] sm:$0xff]
    %v4599 = vld [vmem:[#allocation2 + $0x380] sm:$0xff]
    %v4600 = vld [vmem:[#allocation2 + $0x388] sm:$0xff]
    %v4601 = vld [vmem:[#allocation2 + $0x390] sm:$0xff]
    %v4602 = vld [vmem:[#allocation2 + $0x398] sm:$0xff]
    %v4603 = vld [vmem:[#allocation2 + $0x3a0] sm:$0xff]
    %v4604 = vld [vmem:[#allocation2 + $0x3a8] sm:$0xff]
    %v4605 = vld [vmem:[#allocation2 + $0x3b0] sm:$0xff]
    %v4606 = vld [vmem:[#allocation2 + $0x3b8] sm:$0xff]
    %v4607 = vld [vmem:[#allocation2 + $0x3c0] sm:$0xff]
    %v4608 = vld [vmem:[#allocation2 + $0x3c8] sm:$0xff]
    %v4609 = vld [vmem:[#allocation2 + $0x3d0] sm:$0xff]
    %v4610 = vld [vmem:[#allocation2 + $0x3d8] sm:$0xff]
    %v4611 = vld [vmem:[#allocation2 + $0x3e0] sm:$0xff]
    %v4612 = vld [vmem:[#allocation2 + $0x3e8] sm:$0xff]
    %v4613 = vld [vmem:[#allocation2 + $0x3f0] sm:$0xff]
    %v4614 = vld [vmem:[#allocation2 + $0x3f8] sm:$0xff]
    %v4615 = vld [vmem:[#allocation2 + $0x400] sm:$0xff]
    %v4616 = vld [vmem:[#allocation2 + $0x408] sm:$0xff]
    %v4617 = vld [vmem:[#allocation2 + $0x410] sm:$0xff]
    %v4618 = vld [vmem:[#allocation2 + $0x418] sm:$0xff]
    %v4619 = vld [vmem:[#allocation2 + $0x420] sm:$0xff]
    %v4620 = vld [vmem:[#allocation2 + $0x428] sm:$0xff]
    %v4621 = vld [vmem:[#allocation2 + $0x430] sm:$0xff]
    %v4622 = vld [vmem:[#allocation2 + $0x438] sm:$0xff]
    %v4623 = vld [vmem:[#allocation2 + $0x440] sm:$0xff]
    %v4624 = vld [vmem:[#allocation2 + $0x448] sm:$0xff]
    %v4625 = vld [vmem:[#allocation2 + $0x450] sm:$0xff]
    %v4626 = vld [vmem:[#allocation2 + $0x458] sm:$0xff]
    %v4627 = vld [vmem:[#allocation2 + $0x460] sm:$0xff]
    %v4628 = vld [vmem:[#allocation2 + $0x468] sm:$0xff]
    %v4629 = vld [vmem:[#allocation2 + $0x470] sm:$0xf]
    %v4630 = vld [vmem:[#allocation2 + $0x478] sm:$0xf]
    %v4631 = vld [vmem:[%s1] sm:$0xff]
    %v4632 = vld [vmem:[%s1 + $0x8] sm:$0xff]
    %v4633 = vld [vmem:[%s1 + $0x10] sm:$0xff]
    %v4634 = vld [vmem:[%s1 + $0x18] sm:$0xff]
    %v4635 = vld [vmem:[%s1 + $0x20] sm:$0xff]
    %v4636 = vld [vmem:[%s1 + $0x28] sm:$0xff]
    %v4637 = vld [vmem:[%s1 + $0x30] sm:$0xff]
    %v4638 = vld [vmem:[%s1 + $0x38] sm:$0xff]
    %v4639 = vld [vmem:[%s1 + $0x40] sm:$0xff]
    %v4640 = vld [vmem:[%s1 + $0x48] sm:$0xff]
    %v4641 = vld [vmem:[%s1 + $0x50] sm:$0xff]
    %v4642 = vld [vmem:[%s1 + $0x58] sm:$0xff]
    %v4643 = vld [vmem:[%s1 + $0x60] sm:$0xff]
    %v4644 = vld [vmem:[%s1 + $0x68] sm:$0xff]
    %v4645 = vld [vmem:[%s1 + $0x70] sm:$0xff]
    %v4646 = vld [vmem:[%s1 + $0x78] sm:$0xff]
    %v4647 = vld [vmem:[%s1 + $0x80] sm:$0xff]
    %v4648 = vld [vmem:[%s1 + $0x88] sm:$0xff]
    %v4649 = vld [vmem:[%s1 + $0x90] sm:$0xff]
    %v4650 = vld [vmem:[%s1 + $0x98] sm:$0xff]
    %v4651 = vld [vmem:[%s1 + $0xa0] sm:$0x3]
    %v4652 = vld [vmem:[%s6] sm:$0x1]
    %v4653 = vlaneseq
    %v4654 = vshrl.u32 %v4653, 7
    %v4655 = vsub.s32 0, %v4654
    %v4656 = vrot.slane %v4652, %v4655
    %vm4657 = vcmask 277504
    %v4659 = vsel %vm4657, %v4488, 0
    %v4662 = vsel %vm4657, %v4490, 0
    %v4665 = vsel %vm4657, %v4492, 0
    %v4668 = vsel %vm4657, %v4494, 0
    %v4671 = vsel %vm4657, %v4496, 0
    %v4674 = vsel %vm4657, %v4498, 0
    %v4677 = vsel %vm4657, %v4500, 0
    %v4680 = vsel %vm4657, %v4502, 0
    %v4683 = vsel %vm4657, %v4504, 0
    %v4686 = vsel %vm4657, %v4506, 0
    %v4689 = vsel %vm4657, %v4508, 0
    %v4692 = vsel %vm4657, %v4510, 0
    %v4695 = vsel %vm4657, %v4512, 0
    %v4698 = vsel %vm4657, %v4514, 0
    %v4701 = vsel %vm4657, %v4516, 0
    %v4704 = vsel %vm4657, %v4518, 0
    %v4707 = vsel %vm4657, %v4520, 0
    %v4710 = vsel %vm4657, %v4522, 0
    %v4713 = vsel %vm4657, %v4524, 0
    %v4716 = vsel %vm4657, %v4526, 0
    %v4719 = vsel %vm4657, %v4528, 0
    %v4722 = vsel %vm4657, %v4530, 0
    %v4725 = vsel %vm4657, %v4532, 0
    %v4728 = vsel %vm4657, %v4534, 0
    %v4731 = vsel %vm4657, %v4536, 0
    %v4734 = vsel %vm4657, %v4538, 0
    %v4737 = vsel %vm4657, %v4540, 0
    %v4740 = vsel %vm4657, %v4542, 0
    %v4743 = vsel %vm4657, %v4544, 0
    %v4746 = vsel %vm4657, %v4546, 0
    %v4749 = vsel %vm4657, %v4548, 0
    %v4752 = vsel %vm4657, %v4550, 0
    %v4755 = vsel %vm4657, %v4552, 0
    %v4758 = vsel %vm4657, %v4554, 0
    %v4761 = vsel %vm4657, %v4556, 0
    %v4764 = vsel %vm4657, %v4558, 0
    %v4767 = vsel %vm4657, %v4560, 0
    %v4770 = vsel %vm4657, %v4562, 0
    %v4773 = vsel %vm4657, %v4564, 0
    %v4776 = vsel %vm4657, %v4566, 0
    %v4779 = vsel %vm4657, %v4568, 0
    %v4782 = vsel %vm4657, %v4570, 0
    %v4785 = vsel %vm4657, %v4572, 0
    %v4788 = vsel %vm4657, %v4574, 0
    %v4791 = vsel %vm4657, %v4576, 0
    %v4794 = vsel %vm4657, %v4578, 0
    %v4797 = vsel %vm4657, %v4580, 0
    %v4800 = vsel %vm4657, %v4582, 0
    %v4803 = vsel %vm4657, %v4584, 0
    %v4806 = vsel %vm4657, %v4586, 0
    %v4809 = vsel %vm4657, %v4588, 0
    %v4812 = vsel %vm4657, %v4590, 0
    %v4815 = vsel %vm4657, %v4592, 0
    %v4818 = vsel %vm4657, %v4594, 0
    %v4821 = vsel %vm4657, %v4596, 0
    %v4824 = vsel %vm4657, %v4598, 0
    %v4827 = vsel %vm4657, %v4600, 0
    %v4830 = vsel %vm4657, %v4602, 0
    %v4833 = vsel %vm4657, %v4604, 0
    %v4836 = vsel %vm4657, %v4606, 0
    %v4839 = vsel %vm4657, %v4608, 0
    %v4842 = vsel %vm4657, %v4610, 0
    %v4845 = vsel %vm4657, %v4612, 0
    %v4848 = vsel %vm4657, %v4614, 0
    %v4851 = vsel %vm4657, %v4616, 0
    %v4854 = vsel %vm4657, %v4618, 0
    %v4857 = vsel %vm4657, %v4620, 0
    %v4860 = vsel %vm4657, %v4622, 0
    %v4863 = vsel %vm4657, %v4624, 0
    %v4866 = vsel %vm4657, %v4626, 0
    %v4869 = vsel %vm4657, %v4628, 0
    %v4872 = vsel %vm4657, %v4630, 0
    %vm4874 = vcmask 1041408
    %v4876 = vsel %vm4874, %v4651, 0
    %4878 = vmatprep.subr.mxu0 0.0
    %4879 = vmatpush1.msra.mxu0 %v4646
    %4880 = vmatprep.subr.mxu0 0.0
    %4881 = vmatpush1.msra.mxu0 %v4645
    %4882 = vmatprep.subr.mxu0 0.0
    %4883 = vmatpush1.msra.mxu0 %v4644
    %4884 = vmatprep.subr.mxu0 0.0
    %4885 = vmatpush1.msra.mxu0 %v4643
    %4886 = vmatprep.subr.mxu0 0.0
    %4887 = vmatpush1.msra.mxu0 %v4642
    %4888 = vmatprep.subr.mxu0 0.0
    %4889 = vmatpush1.msra.mxu0 %v4641
    %4890 = vmatprep.subr.mxu0 0.0
    %4891 = vmatpush1.msra.mxu0 %v4640
    %4892 = vmatprep.subr.mxu0 0.0
    %4893 = vmatpush1.msra.mxu0 %v4639
    %4894 = vmatprep.subr.mxu0 0.0
    %4895 = vmatpush1.msra.mxu0 %v4638
    %4896 = vmatprep.subr.mxu0 0.0
    %4897 = vmatpush1.msra.mxu0 %v4637
    %4898 = vmatprep.subr.mxu0 0.0
    %4899 = vmatpush1.msra.mxu0 %v4636
    %4900 = vmatprep.subr.mxu0 0.0
    %4901 = vmatpush1.msra.mxu0 %v4635
    %4902 = vmatprep.subr.mxu0 0.0
    %4903 = vmatpush1.msra.mxu0 %v4634
    %4904 = vmatprep.subr.mxu0 0.0
    %4905 = vmatpush1.msra.mxu0 %v4633
    %4906 = vmatprep.subr.mxu0 0.0
    %4907 = vmatpush1.msra.mxu0 %v4632
    %4908 = vmatprep.subr.mxu0 0.0
    %4909 = vmatpush1.msra.mxu0 %v4631
    %4910 = vmatprep.subr.mxu0 0.0
    %4911 = vmatpush2.msra.mxu0 0.0
    %4912 = vmatprep.subr.mxu0 0.0
    %4913 = vmatpush2.msra.mxu0 0.0
    %4914 = vmatprep.subr.mxu0 0.0
    %4915 = vmatpush2.msra.mxu0 0.0
    %4916 = vmatprep.subr.mxu0 0.0
    %4917 = vmatpush2.msra.mxu0 0.0
    %4918 = vmatprep.subr.mxu0 0.0
    %4919 = vmatpush2.msra.mxu0 0.0
    %4920 = vmatprep.subr.mxu0 0.0
    %4921 = vmatpush2.msra.mxu0 0.0
    %4922 = vmatprep.subr.mxu0 0.0
    %4923 = vmatpush2.msra.mxu0 0.0
    %4924 = vmatprep.subr.mxu0 0.0
    %4925 = vmatpush2.msra.mxu0 0.0
    %4926 = vmatprep.subr.mxu0 0.0
    %4927 = vmatpush2.msra.mxu0 0.0
    %4928 = vmatprep.subr.mxu0 0.0
    %4929 = vmatpush2.msra.mxu0 0.0
    %4930 = vmatprep.subr.mxu0 0.0
    %4931 = vmatpush2.msra.mxu0 0.0
    %4932 = vmatprep.subr.mxu0 0.0
    %4933 = vmatpush2.msra.mxu0 %v4876
    %4934 = vmatprep.subr.mxu0 0.0
    %4935 = vmatpush2.msra.mxu0 %v4650
    %4936 = vmatprep.subr.mxu0 0.0
    %4937 = vmatpush2.msra.mxu0 %v4649
    %4938 = vmatprep.subr.mxu0 0.0
    %4939 = vmatpush2.msra.mxu0 %v4648
    %4940 = vmatprep.subr.mxu0 0.0
    %4941 = vmatpush2.msra.mxu0 %v4647
    %4942 = vmatprep.mubr.f32.mxu0 %v4659
    %4943 = vmatmul.mubr.f32.gmra.mxu0 %v4487
    %v4944 = vpop.f32.mrf.mxu0
    %v4945 = vadd.f32 %v4656, %v4944
    %v4946 = vpop.f32.mrf.mxu0
    %4947 = vmatprep.mubr.f32.mxu0 %v4662
    %4948 = vmatmul.mubr.f32.gmra.mxu0 %v4489
    %v4949 = vpop.f32.mrf.mxu0
    %v4950 = vadd.f32 %v4656, %v4949
    %v4951 = vpop.f32.mrf.mxu0
    %4952 = vmatprep.mubr.f32.mxu0 %v4665
    %4953 = vmatmul.mubr.f32.gmra.mxu0 %v4491
    %v4954 = vpop.f32.mrf.mxu0
    %v4955 = vadd.f32 %v4656, %v4954
    %v4956 = vpop.f32.mrf.mxu0
    %4957 = vmatprep.mubr.f32.mxu0 %v4668
    %4958 = vmatmul.mubr.f32.gmra.mxu0 %v4493
    %v4959 = vpop.f32.mrf.mxu0
    %v4960 = vadd.f32 %v4656, %v4959
    %v4961 = vpop.f32.mrf.mxu0
    %4962 = vmatprep.mubr.f32.mxu0 %v4671
    %4963 = vmatmul.mubr.f32.gmra.mxu0 %v4495
    %v4964 = vpop.f32.mrf.mxu0
    %v4965 = vadd.f32 %v4656, %v4964
    %v4966 = vpop.f32.mrf.mxu0
    %4967 = vmatprep.mubr.f32.mxu0 %v4674
    %4968 = vmatmul.mubr.f32.gmra.mxu0 %v4497
    %v4969 = vpop.f32.mrf.mxu0
    %v4970 = vadd.f32 %v4656, %v4969
    %v4971 = vpop.f32.mrf.mxu0
    %4972 = vmatprep.mubr.f32.mxu0 %v4677
    %4973 = vmatmul.mubr.f32.gmra.mxu0 %v4499
    %v4974 = vpop.f32.mrf.mxu0
    %v4975 = vadd.f32 %v4656, %v4974
    %v4976 = vpop.f32.mrf.mxu0
    %4977 = vmatprep.mubr.f32.mxu0 %v4680
    %4978 = vmatmul.mubr.f32.gmra.mxu0 %v4501
    %v4979 = vpop.f32.mrf.mxu0
    %v4980 = vadd.f32 %v4656, %v4979
    %v4981 = vpop.f32.mrf.mxu0
    %4982 = vmatprep.mubr.f32.mxu0 %v4683
    %4983 = vmatmul.mubr.f32.gmra.mxu0 %v4503
    %v4984 = vpop.f32.mrf.mxu0
    %v4985 = vadd.f32 %v4656, %v4984
    %v4986 = vpop.f32.mrf.mxu0
    %4987 = vmatprep.mubr.f32.mxu0 %v4686
    %4988 = vmatmul.mubr.f32.gmra.mxu0 %v4505
    %v4989 = vpop.f32.mrf.mxu0
    %v4990 = vadd.f32 %v4656, %v4989
    %v4991 = vpop.f32.mrf.mxu0
    %4992 = vmatprep.mubr.f32.mxu0 %v4689
    %4993 = vmatmul.mubr.f32.gmra.mxu0 %v4507
    %v4994 = vpop.f32.mrf.mxu0
    %v4995 = vadd.f32 %v4656, %v4994
    %v4996 = vpop.f32.mrf.mxu0
    %4997 = vmatprep.mubr.f32.mxu0 %v4692
    %4998 = vmatmul.mubr.f32.gmra.mxu0 %v4509
    %v4999 = vpop.f32.mrf.mxu0
    %v5000 = vadd.f32 %v4656, %v4999
    %v5001 = vpop.f32.mrf.mxu0
    %5002 = vmatprep.mubr.f32.mxu0 %v4695
    %5003 = vmatmul.mubr.f32.gmra.mxu0 %v4511
    %v5004 = vpop.f32.mrf.mxu0
    %v5005 = vadd.f32 %v4656, %v5004
    %v5006 = vpop.f32.mrf.mxu0
    %5007 = vmatprep.mubr.f32.mxu0 %v4698
    %5008 = vmatmul.mubr.f32.gmra.mxu0 %v4513
    %v5009 = vpop.f32.mrf.mxu0
    %v5010 = vadd.f32 %v4656, %v5009
    %v5011 = vpop.f32.mrf.mxu0
    %5012 = vmatprep.mubr.f32.mxu0 %v4701
    %5013 = vmatmul.mubr.f32.gmra.mxu0 %v4515
    %v5014 = vpop.f32.mrf.mxu0
    %v5015 = vadd.f32 %v4656, %v5014
    %v5016 = vpop.f32.mrf.mxu0
    %5017 = vmatprep.mubr.f32.mxu0 %v4704
    %5018 = vmatmul.mubr.f32.gmra.mxu0 %v4517
    %v5019 = vpop.f32.mrf.mxu0
    %v5020 = vadd.f32 %v4656, %v5019
    %v5021 = vpop.f32.mrf.mxu0
    %5022 = vmatprep.mubr.f32.mxu0 %v4707
    %5023 = vmatmul.mubr.f32.gmra.mxu0 %v4519
    %v5024 = vpop.f32.mrf.mxu0
    %v5025 = vadd.f32 %v4656, %v5024
    %v5026 = vpop.f32.mrf.mxu0
    %5027 = vmatprep.mubr.f32.mxu0 %v4710
    %5028 = vmatmul.mubr.f32.gmra.mxu0 %v4521
    %v5029 = vpop.f32.mrf.mxu0
    %v5030 = vadd.f32 %v4656, %v5029
    %v5031 = vpop.f32.mrf.mxu0
    %5032 = vmatprep.mubr.f32.mxu0 %v4713
    %5033 = vmatmul.mubr.f32.gmra.mxu0 %v4523
    %v5034 = vpop.f32.mrf.mxu0
    %v5035 = vadd.f32 %v4656, %v5034
    %v5036 = vpop.f32.mrf.mxu0
    %5037 = vmatprep.mubr.f32.mxu0 %v4716
    %5038 = vmatmul.mubr.f32.gmra.mxu0 %v4525
    %v5039 = vpop.f32.mrf.mxu0
    %v5040 = vadd.f32 %v4656, %v5039
    %v5041 = vpop.f32.mrf.mxu0
    %5042 = vmatprep.mubr.f32.mxu0 %v4719
    %5043 = vmatmul.mubr.f32.gmra.mxu0 %v4527
    %v5044 = vpop.f32.mrf.mxu0
    %v5045 = vadd.f32 %v4656, %v5044
    %v5046 = vpop.f32.mrf.mxu0
    %5047 = vmatprep.mubr.f32.mxu0 %v4722
    %5048 = vmatmul.mubr.f32.gmra.mxu0 %v4529
    %v5049 = vpop.f32.mrf.mxu0
    %v5050 = vadd.f32 %v4656, %v5049
    %v5051 = vpop.f32.mrf.mxu0
    %5052 = vmatprep.mubr.f32.mxu0 %v4725
    %5053 = vmatmul.mubr.f32.gmra.mxu0 %v4531
    %v5054 = vpop.f32.mrf.mxu0
    %v5055 = vadd.f32 %v4656, %v5054
    %v5056 = vpop.f32.mrf.mxu0
    %5057 = vmatprep.mubr.f32.mxu0 %v4728
    %5058 = vmatmul.mubr.f32.gmra.mxu0 %v4533
    %v5059 = vpop.f32.mrf.mxu0
    %v5060 = vadd.f32 %v4656, %v5059
    %v5061 = vpop.f32.mrf.mxu0
    %5062 = vmatprep.mubr.f32.mxu0 %v4731
    %5063 = vmatmul.mubr.f32.gmra.mxu0 %v4535
    %v5064 = vpop.f32.mrf.mxu0
    %v5065 = vadd.f32 %v4656, %v5064
    %v5066 = vpop.f32.mrf.mxu0
    %5067 = vmatprep.mubr.f32.mxu0 %v4734
    %5068 = vmatmul.mubr.f32.gmra.mxu0 %v4537
    %v5069 = vpop.f32.mrf.mxu0
    %v5070 = vadd.f32 %v4656, %v5069
    %v5071 = vpop.f32.mrf.mxu0
    %5072 = vmatprep.mubr.f32.mxu0 %v4737
    %5073 = vmatmul.mubr.f32.gmra.mxu0 %v4539
    %v5074 = vpop.f32.mrf.mxu0
    %v5075 = vadd.f32 %v4656, %v5074
    %v5076 = vpop.f32.mrf.mxu0
    %5077 = vmatprep.mubr.f32.mxu0 %v4740
    %5078 = vmatmul.mubr.f32.gmra.mxu0 %v4541
    %v5079 = vpop.f32.mrf.mxu0
    %v5080 = vadd.f32 %v4656, %v5079
    %v5081 = vpop.f32.mrf.mxu0
    %5082 = vmatprep.mubr.f32.mxu0 %v4743
    %5083 = vmatmul.mubr.f32.gmra.mxu0 %v4543
    %v5084 = vpop.f32.mrf.mxu0
    %v5085 = vadd.f32 %v4656, %v5084
    %v5086 = vpop.f32.mrf.mxu0
    %5087 = vmatprep.mubr.f32.mxu0 %v4746
    %5088 = vmatmul.mubr.f32.gmra.mxu0 %v4545
    %v5089 = vpop.f32.mrf.mxu0
    %v5090 = vadd.f32 %v4656, %v5089
    %v5091 = vpop.f32.mrf.mxu0
    %5092 = vmatprep.mubr.f32.mxu0 %v4749
    %5093 = vmatmul.mubr.f32.gmra.mxu0 %v4547
    %v5094 = vpop.f32.mrf.mxu0
    %v5095 = vadd.f32 %v4656, %v5094
    %v5096 = vpop.f32.mrf.mxu0
    %5097 = vmatprep.mubr.f32.mxu0 %v4752
    %5098 = vmatmul.mubr.f32.gmra.mxu0 %v4549
    %v5099 = vpop.f32.mrf.mxu0
    %v5100 = vadd.f32 %v4656, %v5099
    %v5101 = vpop.f32.mrf.mxu0
    %5102 = vmatprep.mubr.f32.mxu0 %v4755
    %5103 = vmatmul.mubr.f32.gmra.mxu0 %v4551
    %v5104 = vpop.f32.mrf.mxu0
    %v5105 = vadd.f32 %v4656, %v5104
    %v5106 = vpop.f32.mrf.mxu0
    %5107 = vmatprep.mubr.f32.mxu0 %v4758
    %5108 = vmatmul.mubr.f32.gmra.mxu0 %v4553
    %v5109 = vpop.f32.mrf.mxu0
    %v5110 = vadd.f32 %v4656, %v5109
    %v5111 = vpop.f32.mrf.mxu0
    %5112 = vmatprep.mubr.f32.mxu0 %v4761
    %5113 = vmatmul.mubr.f32.gmra.mxu0 %v4555
    %v5114 = vpop.f32.mrf.mxu0
    %v5115 = vadd.f32 %v4656, %v5114
    %v5116 = vpop.f32.mrf.mxu0
    %5117 = vmatprep.mubr.f32.mxu0 %v4764
    %5118 = vmatmul.mubr.f32.gmra.mxu0 %v4557
    %v5119 = vpop.f32.mrf.mxu0
    %v5120 = vadd.f32 %v4656, %v5119
    %v5121 = vpop.f32.mrf.mxu0
    %5122 = vmatprep.mubr.f32.mxu0 %v4767
    %5123 = vmatmul.mubr.f32.gmra.mxu0 %v4559
    %v5124 = vpop.f32.mrf.mxu0
    %v5125 = vadd.f32 %v4656, %v5124
    %v5126 = vpop.f32.mrf.mxu0
    %5127 = vmatprep.mubr.f32.mxu0 %v4770
    %5128 = vmatmul.mubr.f32.gmra.mxu0 %v4561
    %v5129 = vpop.f32.mrf.mxu0
    %v5130 = vadd.f32 %v4656, %v5129
    %v5131 = vpop.f32.mrf.mxu0
    %5132 = vmatprep.mubr.f32.mxu0 %v4773
    %5133 = vmatmul.mubr.f32.gmra.mxu0 %v4563
    %v5134 = vpop.f32.mrf.mxu0
    %v5135 = vadd.f32 %v4656, %v5134
    %v5136 = vpop.f32.mrf.mxu0
    %5137 = vmatprep.mubr.f32.mxu0 %v4776
    %5138 = vmatmul.mubr.f32.gmra.mxu0 %v4565
    %v5139 = vpop.f32.mrf.mxu0
    %v5140 = vadd.f32 %v4656, %v5139
    %v5141 = vpop.f32.mrf.mxu0
    %5142 = vmatprep.mubr.f32.mxu0 %v4779
    %5143 = vmatmul.mubr.f32.gmra.mxu0 %v4567
    %v5144 = vpop.f32.mrf.mxu0
    %v5145 = vadd.f32 %v4656, %v5144
    %v5146 = vpop.f32.mrf.mxu0
    %5147 = vmatprep.mubr.f32.mxu0 %v4782
    %5148 = vmatmul.mubr.f32.gmra.mxu0 %v4569
    %v5149 = vpop.f32.mrf.mxu0
    %v5150 = vadd.f32 %v4656, %v5149
    %v5151 = vpop.f32.mrf.mxu0
    %5152 = vmatprep.mubr.f32.mxu0 %v4785
    %5153 = vmatmul.mubr.f32.gmra.mxu0 %v4571
    %v5154 = vpop.f32.mrf.mxu0
    %v5155 = vadd.f32 %v4656, %v5154
    %v5156 = vpop.f32.mrf.mxu0
    %5157 = vmatprep.mubr.f32.mxu0 %v4788
    %5158 = vmatmul.mubr.f32.gmra.mxu0 %v4573
    %v5159 = vpop.f32.mrf.mxu0
    %v5160 = vadd.f32 %v4656, %v5159
    %v5161 = vpop.f32.mrf.mxu0
    %5162 = vmatprep.mubr.f32.mxu0 %v4791
    %5163 = vmatmul.mubr.f32.gmra.mxu0 %v4575
    %v5164 = vpop.f32.mrf.mxu0
    %v5165 = vadd.f32 %v4656, %v5164
    %v5166 = vpop.f32.mrf.mxu0
    %5167 = vmatprep.mubr.f32.mxu0 %v4794
    %5168 = vmatmul.mubr.f32.gmra.mxu0 %v4577
    %v5169 = vpop.f32.mrf.mxu0
    %v5170 = vadd.f32 %v4656, %v5169
    %v5171 = vpop.f32.mrf.mxu0
    %5172 = vmatprep.mubr.f32.mxu0 %v4797
    %5173 = vmatmul.mubr.f32.gmra.mxu0 %v4579
    %v5174 = vpop.f32.mrf.mxu0
    %v5175 = vadd.f32 %v4656, %v5174
    %v5176 = vpop.f32.mrf.mxu0
    %5177 = vmatprep.mubr.f32.mxu0 %v4800
    %5178 = vmatmul.mubr.f32.gmra.mxu0 %v4581
    %v5179 = vpop.f32.mrf.mxu0
    %v5180 = vadd.f32 %v4656, %v5179
    %v5181 = vpop.f32.mrf.mxu0
    %5182 = vmatprep.mubr.f32.mxu0 %v4803
    %5183 = vmatmul.mubr.f32.gmra.mxu0 %v4583
    %v5184 = vpop.f32.mrf.mxu0
    %v5185 = vadd.f32 %v4656, %v5184
    %v5186 = vpop.f32.mrf.mxu0
    %5187 = vmatprep.mubr.f32.mxu0 %v4806
    %5188 = vmatmul.mubr.f32.gmra.mxu0 %v4585
    %v5189 = vpop.f32.mrf.mxu0
    %v5190 = vadd.f32 %v4656, %v5189
    %v5191 = vpop.f32.mrf.mxu0
    %5192 = vmatprep.mubr.f32.mxu0 %v4809
    %5193 = vmatmul.mubr.f32.gmra.mxu0 %v4587
    %v5194 = vpop.f32.mrf.mxu0
    %v5195 = vadd.f32 %v4656, %v5194
    %v5196 = vpop.f32.mrf.mxu0
    %5197 = vmatprep.mubr.f32.mxu0 %v4812
    %5198 = vmatmul.mubr.f32.gmra.mxu0 %v4589
    %v5199 = vpop.f32.mrf.mxu0
    %v5200 = vadd.f32 %v4656, %v5199
    %v5201 = vpop.f32.mrf.mxu0
    %5202 = vmatprep.mubr.f32.mxu0 %v4815
    %5203 = vmatmul.mubr.f32.gmra.mxu0 %v4591
    %v5204 = vpop.f32.mrf.mxu0
    %v5205 = vadd.f32 %v4656, %v5204
    %v5206 = vpop.f32.mrf.mxu0
    %5207 = vmatprep.mubr.f32.mxu0 %v4818
    %5208 = vmatmul.mubr.f32.gmra.mxu0 %v4593
    %v5209 = vpop.f32.mrf.mxu0
    %v5210 = vadd.f32 %v4656, %v5209
    %v5211 = vpop.f32.mrf.mxu0
    %5212 = vmatprep.mubr.f32.mxu0 %v4821
    %5213 = vmatmul.mubr.f32.gmra.mxu0 %v4595
    %v5214 = vpop.f32.mrf.mxu0
    %v5215 = vadd.f32 %v4656, %v5214
    %v5216 = vpop.f32.mrf.mxu0
    %5217 = vmatprep.mubr.f32.mxu0 %v4824
    %5218 = vmatmul.mubr.f32.gmra.mxu0 %v4597
    %v5219 = vpop.f32.mrf.mxu0
    %v5220 = vadd.f32 %v4656, %v5219
    %v5221 = vpop.f32.mrf.mxu0
    %5222 = vmatprep.mubr.f32.mxu0 %v4827
    %5223 = vmatmul.mubr.f32.gmra.mxu0 %v4599
    %v5224 = vpop.f32.mrf.mxu0
    %v5225 = vadd.f32 %v4656, %v5224
    %v5226 = vpop.f32.mrf.mxu0
    %5227 = vmatprep.mubr.f32.mxu0 %v4830
    %5228 = vmatmul.mubr.f32.gmra.mxu0 %v4601
    %v5229 = vpop.f32.mrf.mxu0
    %v5230 = vadd.f32 %v4656, %v5229
    %v5231 = vpop.f32.mrf.mxu0
    %5232 = vmatprep.mubr.f32.mxu0 %v4833
    %5233 = vmatmul.mubr.f32.gmra.mxu0 %v4603
    %v5234 = vpop.f32.mrf.mxu0
    %v5235 = vadd.f32 %v4656, %v5234
    %v5236 = vpop.f32.mrf.mxu0
    %5237 = vmatprep.mubr.f32.mxu0 %v4836
    %5238 = vmatmul.mubr.f32.gmra.mxu0 %v4605
    %v5239 = vpop.f32.mrf.mxu0
    %v5240 = vadd.f32 %v4656, %v5239
    %v5241 = vpop.f32.mrf.mxu0
    %5242 = vmatprep.mubr.f32.mxu0 %v4839
    %5243 = vmatmul.mubr.f32.gmra.mxu0 %v4607
    %v5244 = vpop.f32.mrf.mxu0
    %v5245 = vadd.f32 %v4656, %v5244
    %v5246 = vpop.f32.mrf.mxu0
    %5247 = vmatprep.mubr.f32.mxu0 %v4842
    %5248 = vmatmul.mubr.f32.gmra.mxu0 %v4609
    %v5249 = vpop.f32.mrf.mxu0
    %v5250 = vadd.f32 %v4656, %v5249
    %v5251 = vpop.f32.mrf.mxu0
    %5252 = vmatprep.mubr.f32.mxu0 %v4845
    %5253 = vmatmul.mubr.f32.gmra.mxu0 %v4611
    %v5254 = vpop.f32.mrf.mxu0
    %v5255 = vadd.f32 %v4656, %v5254
    %v5256 = vpop.f32.mrf.mxu0
    %5257 = vmatprep.mubr.f32.mxu0 %v4848
    %5258 = vmatmul.mubr.f32.gmra.mxu0 %v4613
    %v5259 = vpop.f32.mrf.mxu0
    %v5260 = vadd.f32 %v4656, %v5259
    %v5261 = vpop.f32.mrf.mxu0
    %5262 = vmatprep.mubr.f32.mxu0 %v4851
    %5263 = vmatmul.mubr.f32.gmra.mxu0 %v4615
    %v5264 = vpop.f32.mrf.mxu0
    %v5265 = vadd.f32 %v4656, %v5264
    %v5266 = vpop.f32.mrf.mxu0
    %5267 = vmatprep.mubr.f32.mxu0 %v4854
    %5268 = vmatmul.mubr.f32.gmra.mxu0 %v4617
    %v5269 = vpop.f32.mrf.mxu0
    %v5270 = vadd.f32 %v4656, %v5269
    %v5271 = vpop.f32.mrf.mxu0
    %5272 = vmatprep.mubr.f32.mxu0 %v4857
    %5273 = vmatmul.mubr.f32.gmra.mxu0 %v4619
    %v5274 = vpop.f32.mrf.mxu0
    %v5275 = vadd.f32 %v4656, %v5274
    %v5276 = vpop.f32.mrf.mxu0
    %5277 = vmatprep.mubr.f32.mxu0 %v4860
    %5278 = vmatmul.mubr.f32.gmra.mxu0 %v4621
    %v5279 = vpop.f32.mrf.mxu0
    %v5280 = vadd.f32 %v4656, %v5279
    %v5281 = vpop.f32.mrf.mxu0
    %5282 = vmatprep.mubr.f32.mxu0 %v4863
    %5283 = vmatmul.mubr.f32.gmra.mxu0 %v4623
    %v5284 = vpop.f32.mrf.mxu0
    %v5285 = vadd.f32 %v4656, %v5284
    %v5286 = vpop.f32.mrf.mxu0
    %5287 = vmatprep.mubr.f32.mxu0 %v4866
    %5288 = vmatmul.mubr.f32.gmra.mxu0 %v4625
    %v5289 = vpop.f32.mrf.mxu0
    %v5290 = vadd.f32 %v4656, %v5289
    %v5291 = vpop.f32.mrf.mxu0
    %5292 = vmatprep.mubr.f32.mxu0 %v4869
    %5293 = vmatmul.mubr.f32.gmra.mxu0 %v4627
    %v5294 = vpop.f32.mrf.mxu0
    %v5295 = vadd.f32 %v4656, %v5294
    %v5296 = vpop.f32.mrf.mxu0
    %5297 = vmatprep.mubr.f32.mxu0 %v4872
    %5298 = vmatmul.mubr.f32.gmra.mxu0 %v4629
    %v5299 = vpop.f32.mrf.mxu0
    %v5300 = vadd.f32 %v4656, %v5299
    %v5301 = vpop.f32.mrf.mxu0
    %5302 = vdwg.mxu0
    %v5303 = vmax.f32 %v4945, 0.0
    %v5304 = vmax.f32 %v4950, 0.0
    %v5305 = vmax.f32 %v4955, 0.0
    %v5306 = vmax.f32 %v4960, 0.0
    %v5307 = vmax.f32 %v4965, 0.0
    %v5308 = vmax.f32 %v4970, 0.0
    %v5309 = vmax.f32 %v4975, 0.0
    %v5310 = vmax.f32 %v4980, 0.0
    %v5311 = vmax.f32 %v4985, 0.0
    %v5312 = vmax.f32 %v4990, 0.0
    %v5313 = vmax.f32 %v4995, 0.0
    %v5314 = vmax.f32 %v5000, 0.0
    %v5315 = vmax.f32 %v5005, 0.0
    %v5316 = vmax.f32 %v5010, 0.0
    %v5317 = vmax.f32 %v5015, 0.0
    %v5318 = vmax.f32 %v5020, 0.0
    %v5319 = vmax.f32 %v5025, 0.0
    %v5320 = vmax.f32 %v5030, 0.0
    %v5321 = vmax.f32 %v5035, 0.0
    %v5322 = vmax.f32 %v5040, 0.0
    %v5323 = vmax.f32 %v5045, 0.0
    %v5324 = vmax.f32 %v5050, 0.0
    %v5325 = vmax.f32 %v5055, 0.0
    %v5326 = vmax.f32 %v5060, 0.0
    %v5327 = vmax.f32 %v5065, 0.0
    %v5328 = vmax.f32 %v5070, 0.0
    %v5329 = vmax.f32 %v5075, 0.0
    %v5330 = vmax.f32 %v5080, 0.0
    %v5331 = vmax.f32 %v5085, 0.0
    %v5332 = vmax.f32 %v5090, 0.0
    %v5333 = vmax.f32 %v5095, 0.0
    %v5334 = vmax.f32 %v5100, 0.0
    %v5335 = vmax.f32 %v5105, 0.0
    %v5336 = vmax.f32 %v5110, 0.0
    %v5337 = vmax.f32 %v5115, 0.0
    %v5338 = vmax.f32 %v5120, 0.0
    %v5339 = vmax.f32 %v5125, 0.0
    %v5340 = vmax.f32 %v5130, 0.0
    %v5341 = vmax.f32 %v5135, 0.0
    %v5342 = vmax.f32 %v5140, 0.0
    %v5343 = vmax.f32 %v5145, 0.0
    %v5344 = vmax.f32 %v5150, 0.0
    %v5345 = vmax.f32 %v5155, 0.0
    %v5346 = vmax.f32 %v5160, 0.0
    %v5347 = vmax.f32 %v5165, 0.0
    %v5348 = vmax.f32 %v5170, 0.0
    %v5349 = vmax.f32 %v5175, 0.0
    %v5350 = vmax.f32 %v5180, 0.0
    %v5351 = vmax.f32 %v5185, 0.0
    %v5352 = vmax.f32 %v5190, 0.0
    %v5353 = vmax.f32 %v5195, 0.0
    %v5354 = vmax.f32 %v5200, 0.0
    %v5355 = vmax.f32 %v5205, 0.0
    %v5356 = vmax.f32 %v5210, 0.0
    %v5357 = vmax.f32 %v5215, 0.0
    %v5358 = vmax.f32 %v5220, 0.0
    %v5359 = vmax.f32 %v5225, 0.0
    %v5360 = vmax.f32 %v5230, 0.0
    %v5361 = vmax.f32 %v5235, 0.0
    %v5362 = vmax.f32 %v5240, 0.0
    %v5363 = vmax.f32 %v5245, 0.0
    %v5364 = vmax.f32 %v5250, 0.0
    %v5365 = vmax.f32 %v5255, 0.0
    %v5366 = vmax.f32 %v5260, 0.0
    %v5367 = vmax.f32 %v5265, 0.0
    %v5368 = vmax.f32 %v5270, 0.0
    %v5369 = vmax.f32 %v5275, 0.0
    %v5370 = vmax.f32 %v5280, 0.0
    %v5371 = vmax.f32 %v5285, 0.0
    %v5372 = vmax.f32 %v5290, 0.0
    %v5373 = vmax.f32 %v5295, 0.0
    %v5374 = vmax.f32 %v5300, 0.0
    %v5375 = vld [vmem:[%s2] sm:$0xff]
    %v5376 = vld [vmem:[%s2 + $0x8] sm:$0x3]
    %v5379 = vcombine.high %v5375, %v5375
    %v5381 = vunpack.c.l.s4 1983009808
    %v5382 = vunpack.c.0.s8 %v5381
    %v5383 = vlaneseq
    %v5384 = vshrl.u32 %v5383, 7
    %v5385 = vsub.s32 %v5382, %v5384
    %v5386 = vrot.slane %v5375, %v5385
    %v5388 = vunpack.c.l.s4 1983009808
    %v5389 = vunpack.c.0.s8 %v5388
    %v5390 = vlaneseq
    %v5391 = vshrl.u32 %v5390, 7
    %v5392 = vsub.s32 %v5389, %v5391
    %v5393 = vrot.slane %v5379, %v5392
    %v5394 = vcombine.high %v5386, %v5386
    %v5395 = vcombine.high %v5393, %v5393
    %v5397 = vunpack.c.l.s4 1983009808
    %v5398 = vunpack.c.0.s8 %v5397
    %v5399 = vlaneseq
    %v5400 = vshrl.u32 %v5399, 7
    %v5401 = vsub.s32 %v5398, %v5400
    %v5402 = vrot.slane %v5376, %v5401
    %vm5407 = vcmask 490496
    %v5408 = vsel %vm5407, %v5402, 0
    %vm5410 = vcmask 1043456
    %v5412 = vsel %vm5410, %v5374, 0
    %5414 = vmatprep.subr.mxu0 0.0
    %5415 = vmatpush1.msra.mxu0 %v5318
    %5416 = vmatprep.subr.mxu0 0.0
    %5417 = vmatpush1.msra.mxu0 %v5317
    %5418 = vmatprep.subr.mxu0 0.0
    %5419 = vmatpush1.msra.mxu0 %v5316
    %5420 = vmatprep.subr.mxu0 0.0
    %5421 = vmatpush1.msra.mxu0 %v5315
    %5422 = vmatprep.subr.mxu0 0.0
    %5423 = vmatpush1.msra.mxu0 %v5314
    %5424 = vmatprep.subr.mxu0 0.0
    %5425 = vmatpush1.msra.mxu0 %v5313
    %5426 = vmatprep.subr.mxu0 0.0
    %5427 = vmatpush1.msra.mxu0 %v5312
    %5428 = vmatprep.subr.mxu0 0.0
    %5429 = vmatpush1.msra.mxu0 %v5311
    %5430 = vmatprep.subr.mxu0 0.0
    %5431 = vmatpush1.msra.mxu0 %v5310
    %5432 = vmatprep.subr.mxu0 0.0
    %5433 = vmatpush1.msra.mxu0 %v5309
    %5434 = vmatprep.subr.mxu0 0.0
    %5435 = vmatpush1.msra.mxu0 %v5308
    %5436 = vmatprep.subr.mxu0 0.0
    %5437 = vmatpush1.msra.mxu0 %v5307
    %5438 = vmatprep.subr.mxu0 0.0
    %5439 = vmatpush1.msra.mxu0 %v5306
    %5440 = vmatprep.subr.mxu0 0.0
    %5441 = vmatpush1.msra.mxu0 %v5305
    %5442 = vmatprep.subr.mxu0 0.0
    %5443 = vmatpush1.msra.mxu0 %v5304
    %5444 = vmatprep.subr.mxu0 0.0
    %5445 = vmatpush1.msra.mxu0 %v5303
    %5446 = vmatprep.subr.mxu0 0.0
    %5447 = vmatpush2.msra.mxu0 %v5334
    %5448 = vmatprep.subr.mxu0 0.0
    %5449 = vmatpush2.msra.mxu0 %v5333
    %5450 = vmatprep.subr.mxu0 0.0
    %5451 = vmatpush2.msra.mxu0 %v5332
    %5452 = vmatprep.subr.mxu0 0.0
    %5453 = vmatpush2.msra.mxu0 %v5331
    %5454 = vmatprep.subr.mxu0 0.0
    %5455 = vmatpush2.msra.mxu0 %v5330
    %5456 = vmatprep.subr.mxu0 0.0
    %5457 = vmatpush2.msra.mxu0 %v5329
    %5458 = vmatprep.subr.mxu0 0.0
    %5459 = vmatpush2.msra.mxu0 %v5328
    %5460 = vmatprep.subr.mxu0 0.0
    %5461 = vmatpush2.msra.mxu0 %v5327
    %5462 = vmatprep.subr.mxu0 0.0
    %5463 = vmatpush2.msra.mxu0 %v5326
    %5464 = vmatprep.subr.mxu0 0.0
    %5465 = vmatpush2.msra.mxu0 %v5325
    %5466 = vmatprep.subr.mxu0 0.0
    %5467 = vmatpush2.msra.mxu0 %v5324
    %5468 = vmatprep.subr.mxu0 0.0
    %5469 = vmatpush2.msra.mxu0 %v5323
    %5470 = vmatprep.subr.mxu0 0.0
    %5471 = vmatpush2.msra.mxu0 %v5322
    %5472 = vmatprep.subr.mxu0 0.0
    %5473 = vmatpush2.msra.mxu0 %v5321
    %5474 = vmatprep.subr.mxu0 0.0
    %5475 = vmatpush2.msra.mxu0 %v5320
    %5476 = vmatprep.subr.mxu0 0.0
    %5477 = vmatpush2.msra.mxu0 %v5319
    %5478 = vmatprep.mubr.f32.mxu0 %v5394
    %5479 = vmatmul.mubr.f32.gmra.mxu0 %v5386
    %v5480 = vpop.f32.mrf.mxu0
    %v5481 = vadd.f32 0.0, %v5480
    %v5482 = vpop.f32.mrf.mxu0
    %5483 = vdwg.mxu0
    %5484 = vmatprep.subr.mxu0 0.0
    %5485 = vmatpush1.msra.mxu0 %v5350
    %5486 = vmatprep.subr.mxu0 0.0
    %5487 = vmatpush1.msra.mxu0 %v5349
    %5488 = vmatprep.subr.mxu0 0.0
    %5489 = vmatpush1.msra.mxu0 %v5348
    %5490 = vmatprep.subr.mxu0 0.0
    %5491 = vmatpush1.msra.mxu0 %v5347
    %5492 = vmatprep.subr.mxu0 0.0
    %5493 = vmatpush1.msra.mxu0 %v5346
    %5494 = vmatprep.subr.mxu0 0.0
    %5495 = vmatpush1.msra.mxu0 %v5345
    %5496 = vmatprep.subr.mxu0 0.0
    %5497 = vmatpush1.msra.mxu0 %v5344
    %5498 = vmatprep.subr.mxu0 0.0
    %5499 = vmatpush1.msra.mxu0 %v5343
    %5500 = vmatprep.subr.mxu0 0.0
    %5501 = vmatpush1.msra.mxu0 %v5342
    %5502 = vmatprep.subr.mxu0 0.0
    %5503 = vmatpush1.msra.mxu0 %v5341
    %5504 = vmatprep.subr.mxu0 0.0
    %5505 = vmatpush1.msra.mxu0 %v5340
    %5506 = vmatprep.subr.mxu0 0.0
    %5507 = vmatpush1.msra.mxu0 %v5339
    %5508 = vmatprep.subr.mxu0 0.0
    %5509 = vmatpush1.msra.mxu0 %v5338
    %5510 = vmatprep.subr.mxu0 0.0
    %5511 = vmatpush1.msra.mxu0 %v5337
    %5512 = vmatprep.subr.mxu0 0.0
    %5513 = vmatpush1.msra.mxu0 %v5336
    %5514 = vmatprep.subr.mxu0 0.0
    %5515 = vmatpush1.msra.mxu0 %v5335
    %5516 = vmatprep.subr.mxu0 0.0
    %5517 = vmatpush2.msra.mxu0 %v5366
    %5518 = vmatprep.subr.mxu0 0.0
    %5519 = vmatpush2.msra.mxu0 %v5365
    %5520 = vmatprep.subr.mxu0 0.0
    %5521 = vmatpush2.msra.mxu0 %v5364
    %5522 = vmatprep.subr.mxu0 0.0
    %5523 = vmatpush2.msra.mxu0 %v5363
    %5524 = vmatprep.subr.mxu0 0.0
    %5525 = vmatpush2.msra.mxu0 %v5362
    %5526 = vmatprep.subr.mxu0 0.0
    %5527 = vmatpush2.msra.mxu0 %v5361
    %5528 = vmatprep.subr.mxu0 0.0
    %5529 = vmatpush2.msra.mxu0 %v5360
    %5530 = vmatprep.subr.mxu0 0.0
    %5531 = vmatpush2.msra.mxu0 %v5359
    %5532 = vmatprep.subr.mxu0 0.0
    %5533 = vmatpush2.msra.mxu0 %v5358
    %5534 = vmatprep.subr.mxu0 0.0
    %5535 = vmatpush2.msra.mxu0 %v5357
    %5536 = vmatprep.subr.mxu0 0.0
    %5537 = vmatpush2.msra.mxu0 %v5356
    %5538 = vmatprep.subr.mxu0 0.0
    %5539 = vmatpush2.msra.mxu0 %v5355
    %5540 = vmatprep.subr.mxu0 0.0
    %5541 = vmatpush2.msra.mxu0 %v5354
    %5542 = vmatprep.subr.mxu0 0.0
    %5543 = vmatpush2.msra.mxu0 %v5353
    %5544 = vmatprep.subr.mxu0 0.0
    %5545 = vmatpush2.msra.mxu0 %v5352
    %5546 = vmatprep.subr.mxu0 0.0
    %5547 = vmatpush2.msra.mxu0 %v5351
    %5548 = vmatprep.mubr.f32.mxu0 %v5395
    %5549 = vmatmul.mubr.f32.gmra.mxu0 %v5393
    %v5550 = vpop.f32.mrf.mxu0
    %v5551 = vadd.f32 %v5481, %v5550
    %v5552 = vpop.f32.mrf.mxu0
    %5553 = vdwg.mxu0
    %5554 = vmatprep.subr.mxu0 0.0
    %5555 = vmatpush1.msra.mxu0 0.0
    %5556 = vmatprep.subr.mxu0 0.0
    %5557 = vmatpush1.msra.mxu0 0.0
    %5558 = vmatprep.subr.mxu0 0.0
    %5559 = vmatpush1.msra.mxu0 0.0
    %5560 = vmatprep.subr.mxu0 0.0
    %5561 = vmatpush1.msra.mxu0 0.0
    %5562 = vmatprep.subr.mxu0 0.0
    %5563 = vmatpush1.msra.mxu0 0.0
    %5564 = vmatprep.subr.mxu0 0.0
    %5565 = vmatpush1.msra.mxu0 0.0
    %5566 = vmatprep.subr.mxu0 0.0
    %5567 = vmatpush1.msra.mxu0 0.0
    %5568 = vmatprep.subr.mxu0 0.0
    %5569 = vmatpush1.msra.mxu0 0.0
    %5570 = vmatprep.subr.mxu0 0.0
    %5571 = vmatpush1.msra.mxu0 %v5412
    %5572 = vmatprep.subr.mxu0 0.0
    %5573 = vmatpush1.msra.mxu0 %v5373
    %5574 = vmatprep.subr.mxu0 0.0
    %5575 = vmatpush1.msra.mxu0 %v5372
    %5576 = vmatprep.subr.mxu0 0.0
    %5577 = vmatpush1.msra.mxu0 %v5371
    %5578 = vmatprep.subr.mxu0 0.0
    %5579 = vmatpush1.msra.mxu0 %v5370
    %5580 = vmatprep.subr.mxu0 0.0
    %5581 = vmatpush1.msra.mxu0 %v5369
    %5582 = vmatprep.subr.mxu0 0.0
    %5583 = vmatpush1.msra.mxu0 %v5368
    %5584 = vmatprep.subr.mxu0 0.0
    %5585 = vmatpush1.msra.mxu0 %v5367
    %5586 = vmatprep.subr.mxu0 0.0
    %5587 = vmatpush2.msra.mxu0 0.0
    %5588 = vmatprep.subr.mxu0 0.0
    %5589 = vmatpush2.msra.mxu0 0.0
    %5590 = vmatprep.subr.mxu0 0.0
    %5591 = vmatpush2.msra.mxu0 0.0
    %5592 = vmatprep.subr.mxu0 0.0
    %5593 = vmatpush2.msra.mxu0 0.0
    %5594 = vmatprep.subr.mxu0 0.0
    %5595 = vmatpush2.msra.mxu0 0.0
    %5596 = vmatprep.subr.mxu0 0.0
    %5597 = vmatpush2.msra.mxu0 0.0
    %5598 = vmatprep.subr.mxu0 0.0
    %5599 = vmatpush2.msra.mxu0 0.0
    %5600 = vmatprep.subr.mxu0 0.0
    %5601 = vmatpush2.msra.mxu0 0.0
    %5602 = vmatprep.subr.mxu0 0.0
    %5603 = vmatpush2.msra.mxu0 0.0
    %5604 = vmatprep.subr.mxu0 0.0
    %5605 = vmatpush2.msra.mxu0 0.0
    %5606 = vmatprep.subr.mxu0 0.0
    %5607 = vmatpush2.msra.mxu0 0.0
    %5608 = vmatprep.subr.mxu0 0.0
    %5609 = vmatpush2.msra.mxu0 0.0
    %5610 = vmatprep.subr.mxu0 0.0
    %5611 = vmatpush2.msra.mxu0 0.0
    %5612 = vmatprep.subr.mxu0 0.0
    %5613 = vmatpush2.msra.mxu0 0.0
    %5614 = vmatprep.subr.mxu0 0.0
    %5615 = vmatpush2.msra.mxu0 0.0
    %5616 = vmatprep.subr.mxu0 0.0
    %5617 = vmatpush2.msra.mxu0 0.0
    %5618 = vmatprep.mubr.f32.mxu0 0.0
    %5619 = vmatmul.mubr.f32.gmra.mxu0 %v5408
    %v5620 = vpop.f32.mrf.mxu0
    %v5621 = vadd.f32 %v5551, %v5620
    %v5622 = vpop.f32.mrf.mxu0
    %5623 = vdwg.mxu0
    %v5624 = vld [vmem:[%s4] sm:$0xff]
    %v5625 = vld [vmem:[%s4 + $0x8] sm:$0xff]
    %v5626 = vld [vmem:[%s4 + $0x10] sm:$0xff]
    %v5627 = vld [vmem:[%s4 + $0x18] sm:$0xff]
    %v5628 = vld [vmem:[%s3] sm:$0x3]
    %v5629 = vld [vmem:[%s4 + $0x20] sm:$0x1]
    %5631 = vset.pattern.permute.xlu0 0
    %5632 = vperm.xlu0 %5631, %v5628
    %v5633 = vpop.permute.xlu0 %5632
    %v5635 = vlaneseq
    %v5636 = vshrl.u32 %v5635, 7
    %v5637 = vsub.s32 0, %v5636
    %v5638 = vrot.slane %v5629, %v5637
    %v5639 = vmul.f32 %v5633, %v5638
    %vm5640 = vcmask 261120
    %v5642 = vsel %vm5640, %v5621, 0
    %5644 = vmatprep.subr.mxu0 0.0
    %5645 = vmatpush1.msra.mxu0 0.0
    %5646 = vmatprep.subr.mxu0 0.0
    %5647 = vmatpush1.msra.mxu0 0.0
    %5648 = vmatprep.subr.mxu0 0.0
    %5649 = vmatpush1.msra.mxu0 0.0
    %5650 = vmatprep.subr.mxu0 0.0
    %5651 = vmatpush1.msra.mxu0 0.0
    %5652 = vmatprep.subr.mxu0 0.0
    %5653 = vmatpush1.msra.mxu0 0.0
    %5654 = vmatprep.subr.mxu0 0.0
    %5655 = vmatpush1.msra.mxu0 0.0
    %5656 = vmatprep.subr.mxu0 0.0
    %5657 = vmatpush1.msra.mxu0 0.0
    %5658 = vmatprep.subr.mxu0 0.0
    %5659 = vmatpush1.msra.mxu0 0.0
    %5660 = vmatprep.subr.mxu0 0.0
    %5661 = vmatpush1.msra.mxu0 0.0
    %5662 = vmatprep.subr.mxu0 0.0
    %5663 = vmatpush1.msra.mxu0 0.0
    %5664 = vmatprep.subr.mxu0 0.0
    %5665 = vmatpush1.msra.mxu0 0.0
    %5666 = vmatprep.subr.mxu0 0.0
    %5667 = vmatpush1.msra.mxu0 0.0
    %5668 = vmatprep.subr.mxu0 0.0
    %5669 = vmatpush1.msra.mxu0 %v5627
    %5670 = vmatprep.subr.mxu0 0.0
    %5671 = vmatpush1.msra.mxu0 %v5626
    %5672 = vmatprep.subr.mxu0 0.0
    %5673 = vmatpush1.msra.mxu0 %v5625
    %5674 = vmatprep.subr.mxu0 0.0
    %5675 = vmatpush1.msra.mxu0 %v5624
    %5676 = vmatprep.subr.mxu0 0.0
    %5677 = vmatpush2.msra.mxu0 0.0
    %5678 = vmatprep.subr.mxu0 0.0
    %5679 = vmatpush2.msra.mxu0 0.0
    %5680 = vmatprep.subr.mxu0 0.0
    %5681 = vmatpush2.msra.mxu0 0.0
    %5682 = vmatprep.subr.mxu0 0.0
    %5683 = vmatpush2.msra.mxu0 0.0
    %5684 = vmatprep.subr.mxu0 0.0
    %5685 = vmatpush2.msra.mxu0 0.0
    %5686 = vmatprep.subr.mxu0 0.0
    %5687 = vmatpush2.msra.mxu0 0.0
    %5688 = vmatprep.subr.mxu0 0.0
    %5689 = vmatpush2.msra.mxu0 0.0
    %5690 = vmatprep.subr.mxu0 0.0
    %5691 = vmatpush2.msra.mxu0 0.0
    %5692 = vmatprep.subr.mxu0 0.0
    %5693 = vmatpush2.msra.mxu0 0.0
    %5694 = vmatprep.subr.mxu0 0.0
    %5695 = vmatpush2.msra.mxu0 0.0
    %5696 = vmatprep.subr.mxu0 0.0
    %5697 = vmatpush2.msra.mxu0 0.0
    %5698 = vmatprep.subr.mxu0 0.0
    %5699 = vmatpush2.msra.mxu0 0.0
    %5700 = vmatprep.subr.mxu0 0.0
    %5701 = vmatpush2.msra.mxu0 0.0
    %5702 = vmatprep.subr.mxu0 0.0
    %5703 = vmatpush2.msra.mxu0 0.0
    %5704 = vmatprep.subr.mxu0 0.0
    %5705 = vmatpush2.msra.mxu0 0.0
    %5706 = vmatprep.subr.mxu0 0.0
    %5707 = vmatpush2.msra.mxu0 0.0
    %5708 = vmatprep.mubr.f32.mxu0 0.0
    %5709 = vmatmul.mubr.f32.gmra.mxu0 %v5642
    %v5710 = vpop.f32.mrf.mxu0
    %v5711 = vadd.f32 %v5639, %v5710
    %v5712 = vpop.f32.mrf.mxu0
    %5713 = vdwg.mxu0
    %v5714 = vld [vmem:[%s4 + $0x21] sm:$0x1]
    %5715 = vset.pattern.permute.xlu0 1
    %5716 = vperm.xlu0 %5715, %v5628
    %v5717 = vpop.permute.xlu0 %5716
    %v5719 = vlaneseq
    %v5720 = vshrl.u32 %v5719, 7
    %v5721 = vsub.s32 0, %v5720
    %v5722 = vrot.slane %v5714, %v5721
    %v5723 = vmul.f32 %v5717, %v5722
    %v5724 = vadd.f32 %v5711, %v5723
    %v5725 = vld [vmem:[%s6 + $0x1] sm:$0x1]
    %v5726 = vlaneseq
    %v5727 = vshrl.u32 %v5726, 7
    %v5728 = vsub.s32 0, %v5727
    %v5729 = vrot.slane %v5725, %v5728
    %v5730 = vadd.f32 %v5724, %v5729
    %v5731 = vmax.f32 %v5730, 0.0
    %v5732 = vld [vmem:[%s5] sm:$0xff]
    %v5733 = vld [vmem:[%s5 + $0x8] sm:$0xff]
    %v5734 = vld [vmem:[%s5 + $0x10] sm:$0xff]
    %v5735 = vld [vmem:[%s5 + $0x18] sm:$0xff]
    %v5736 = vld [vmem:[%s5 + $0x20] sm:$0xff]
    %v5737 = vld [vmem:[%s5 + $0x28] sm:$0xff]
    %v5738 = vld [vmem:[%s5 + $0x30] sm:$0xff]
    %v5739 = vld [vmem:[%s5 + $0x38] sm:$0xff]
    %v5740 = vld [vmem:[%s6 + $0x2] sm:$0x1]
    %v5741 = vlaneseq
    %v5742 = vshrl.u32 %v5741, 7
    %v5743 = vsub.s32 0, %v5742
    %v5744 = vrot.slane %v5740, %v5743
    %vm5745 = vcmask 523264
    %v5747 = vsel %vm5745, %v5731, 0
    %5749 = vmatprep.subr.mxu0 0.0
    %5750 = vmatpush1.msra.mxu0 0.0
    %5751 = vmatprep.subr.mxu0 0.0
    %5752 = vmatpush1.msra.mxu0 0.0
    %5753 = vmatprep.subr.mxu0 0.0
    %5754 = vmatpush1.msra.mxu0 0.0
    %5755 = vmatprep.subr.mxu0 0.0
    %5756 = vmatpush1.msra.mxu0 0.0
    %5757 = vmatprep.subr.mxu0 0.0
    %5758 = vmatpush1.msra.mxu0 0.0
    %5759 = vmatprep.subr.mxu0 0.0
    %5760 = vmatpush1.msra.mxu0 0.0
    %5761 = vmatprep.subr.mxu0 0.0
    %5762 = vmatpush1.msra.mxu0 0.0
    %5763 = vmatprep.subr.mxu0 0.0
    %5764 = vmatpush1.msra.mxu0 0.0
    %5765 = vmatprep.subr.mxu0 0.0
    %5766 = vmatpush1.msra.mxu0 %v5739
    %5767 = vmatprep.subr.mxu0 0.0
    %5768 = vmatpush1.msra.mxu0 %v5738
    %5769 = vmatprep.subr.mxu0 0.0
    %5770 = vmatpush1.msra.mxu0 %v5737
    %5771 = vmatprep.subr.mxu0 0.0
    %5772 = vmatpush1.msra.mxu0 %v5736
    %5773 = vmatprep.subr.mxu0 0.0
    %5774 = vmatpush1.msra.mxu0 %v5735
    %5775 = vmatprep.subr.mxu0 0.0
    %5776 = vmatpush1.msra.mxu0 %v5734
    %5777 = vmatprep.subr.mxu0 0.0
    %5778 = vmatpush1.msra.mxu0 %v5733
    %5779 = vmatprep.subr.mxu0 0.0
    %5780 = vmatpush1.msra.mxu0 %v5732
    %5781 = vmatprep.subr.mxu0 0.0
    %5782 = vmatpush2.msra.mxu0 0.0
    %5783 = vmatprep.subr.mxu0 0.0
    %5784 = vmatpush2.msra.mxu0 0.0
    %5785 = vmatprep.subr.mxu0 0.0
    %5786 = vmatpush2.msra.mxu0 0.0
    %5787 = vmatprep.subr.mxu0 0.0
    %5788 = vmatpush2.msra.mxu0 0.0
    %5789 = vmatprep.subr.mxu0 0.0
    %5790 = vmatpush2.msra.mxu0 0.0
    %5791 = vmatprep.subr.mxu0 0.0
    %5792 = vmatpush2.msra.mxu0 0.0
    %5793 = vmatprep.subr.mxu0 0.0
    %5794 = vmatpush2.msra.mxu0 0.0
    %5795 = vmatprep.subr.mxu0 0.0
    %5796 = vmatpush2.msra.mxu0 0.0
    %5797 = vmatprep.subr.mxu0 0.0
    %5798 = vmatpush2.msra.mxu0 0.0
    %5799 = vmatprep.subr.mxu0 0.0
    %5800 = vmatpush2.msra.mxu0 0.0
    %5801 = vmatprep.subr.mxu0 0.0
    %5802 = vmatpush2.msra.mxu0 0.0
    %5803 = vmatprep.subr.mxu0 0.0
    %5804 = vmatpush2.msra.mxu0 0.0
    %5805 = vmatprep.subr.mxu0 0.0
    %5806 = vmatpush2.msra.mxu0 0.0
    %5807 = vmatprep.subr.mxu0 0.0
    %5808 = vmatpush2.msra.mxu0 0.0
    %5809 = vmatprep.subr.mxu0 0.0
    %5810 = vmatpush2.msra.mxu0 0.0
    %5811 = vmatprep.subr.mxu0 0.0
    %5812 = vmatpush2.msra.mxu0 0.0
    %5813 = vmatprep.mubr.f32.mxu0 0.0
    %5814 = vmatmul.mubr.f32.gmra.mxu0 %v5747
    %v5815 = vpop.f32.mrf.mxu0
    %v5816 = vadd.f32 %v5744, %v5815
    %v5817 = vpop.f32.mrf.mxu0
    %5818 = vdwg.mxu0
    %5819 = vst [vmem:[#allocation3] sm:$0x3] %v5816
    // Predicated region
    $region30: #{tpu_custom_call.1} parent=1 // pred_check
      _
    $region31: #{tpu_custom_call.1} parent=1 // pred_check_branch
      %5821 = sbr.rel (0) target = $region33
    $region32: #{tpu_custom_call.1} parent=1 // pred_region
      %s5823 = ssub.s32 32, 32
      %5824 = vsyncadd [#allocation4], %s5823
      %s5826 = sshll.u32 [#allocation3], 4
      %s5827 = int_to_ptr.vmem [resolvable:$true] %s5826
      %5829 = dma.vmem_to_hbm [thread:$0]  %s5827, 32, %s7, [#allocation4]
    $region33: #{tpu_custom_call.1} parent=1 // pred_fallthru
      _
    // Predicated region
    $region34: #{tpu_custom_call.1} parent=1 // pred_check
      _
    $region35: #{tpu_custom_call.1} parent=1 // pred_check_branch
      %5831 = sbr.rel (0) target = $region37
    $region36: #{tpu_custom_call.1} parent=1 // pred_region
      %5832 = dma.done [#allocation4], 32
    $region37: #{tpu_custom_call.1} parent=1 // pred_fallthru
      _
    %5833 = vsyncpa [#allocation4], 1

</llo_original>
